<compile_context>
chip_gen: v7x
topology: tpu7x:2x2x1
jax: 0.10.0
libtpu: 0.0.40
codegen_flags: <defaults>
</compile_context>

<pallas_src>
import functools

import jax
import jax.numpy as jnp
from jax import lax
from jax.experimental import pallas as pl
from jax.experimental.pallas import tpu as pltpu

# ----- small, module-consistent shapes -----
B, T = 2, 8            # batch, sequence length
H = 32                 # hidden_size (4H = 128 lanes, nicely aligned)
L = 2                  # lstm layers
VOCAB = 10             # vocab_size
VOCAB_PAD = 16         # embedding rows padded to a sublane multiple for the one-hot matmul
MLP_LAYERS = 2
MLP_H = 32             # mlp_hidden_size
EPS = 1e-12            # F.normalize eps

VMEM_SPEC = functools.partial(pl.BlockSpec, memory_space=pltpu.MemorySpace.VMEM)


# --------------------------------------------------------------------------
# Fused kernel: embed -> L-layer LSTM -> normalize -> mean(T) -> normalize ->
#               MLP -> regressor -> sigmoid
# Gate order inside the kernel is (i, f, o, g); weights are reordered host-side.
# --------------------------------------------------------------------------
def fused_kernel(*refs):
    # inputs : tok (T*B,1) i32 time-major, emb (VOCAB_PAD,H),
    #          w_ih (L,H,4H), w_hh (L,H,4H), b (L,1,4H)   [b = b_ih + b_hh, order i,f,o,g]
    #          mlp (w,b) pairs, wr (.,1), br (1,1)
    # outputs: predict (B,1)
    # scratch: slab (T*B,H) -- the current layer's input sequence (time-major)
    tok_ref, emb_ref, w_ih_ref, w_hh_ref, b_ref = refs[:5]
    head_refs = refs[5:-2]
    out_ref = refs[-2]
    slab_ref = refs[-1]
    TB = T * B

    # Embedding gather as a one-hot matmul (keeps the gather inside the kernel, on the MXU).
    lane_ids = lax.broadcasted_iota(jnp.int32, (TB, VOCAB_PAD), 1)
    onehot = (tok_ref[...] == lane_ids).astype(jnp.float32)                 # (TB, VOCAB_PAD)
    slab_ref[...] = jnp.dot(onehot, emb_ref[...],
                            preferred_element_type=jnp.float32)             # (TB, H)

    acc = jnp.zeros((B, H), jnp.float32)   # running sum of normalized last-layer h_t
    for layer in range(L):                 # static unroll over layers
        w_hh = w_hh_ref[layer]             # (H, 4H)
        # Hoisted input projection + bias for ALL timesteps of this layer (one matmul).
        xw = jnp.dot(slab_ref[...], w_ih_ref[layer],
                     preferred_element_type=jnp.float32) + b_ref[layer]     # (TB, 4H)
        h = jnp.zeros((B, H), jnp.float32)
        c = jnp.zeros((B, H), jnp.float32)
        last = layer == L - 1
        for t in range(T):                 # fully unrolled time loop (T=8); h/c stay in vregs
            gates = xw[t * B:(t + 1) * B, :] + jnp.dot(
                h, w_hh, preferred_element_type=jnp.float32)                # (B, 4H) i,f,o,g
            sig = jax.nn.sigmoid(gates[:, :3 * H])                          # i | f | o
            g_g = jnp.tanh(gates[:, 3 * H:])                                # g
            c = sig[:, H:2 * H] * c + sig[:, :H] * g_g
            h = sig[:, 2 * H:3 * H] * jnp.tanh(c)
            if last:
                # F.normalize(h, 2, dim=-1) fused with the running mean over time
                nrm = jnp.sqrt(jnp.sum(h * h, axis=-1, keepdims=True))
                acc = acc + h / jnp.maximum(nrm, EPS)
            else:
                slab_ref[t * B:(t + 1) * B, :] = h                          # next layer's input

    seq = acc * (1.0 / T)                                                   # mean over time
    nrm = jnp.sqrt(jnp.sum(seq * seq, axis=-1, keepdims=True))
    x = seq / jnp.maximum(nrm, EPS)                                         # second F.normalize
    # MLP (dropout layers are identity at inference) + regressor + sigmoid
    n_mlp = (len(head_refs) - 2) // 2
    for i in range(n_mlp):
        x = jnp.dot(x, head_refs[2 * i][...],
                    preferred_element_type=jnp.float32) + head_refs[2 * i + 1][...]
    y = jnp.dot(x, head_refs[-2][...],
                preferred_element_type=jnp.float32) + head_refs[-1][...]
    out_ref[...] = jax.nn.sigmoid(y)                                        # (B, 1)


# --------------------------------------------------------------------------
# Wrapper (single pallas_call; the only host-side op is a 64-byte int transpose)
# --------------------------------------------------------------------------
def rnn_encoder_forward(tokens, kparams):
    tok_tm = jnp.transpose(tokens, (1, 0)).reshape(T * B, 1).astype(jnp.int32)
    args = [tok_tm, kparams["emb_pad"], kparams["w_ih_k"], kparams["w_hh_k"], kparams["b_k"]]
    for w, bb in kparams["mlp"]:
        args += [w, bb]
    args += [kparams["wr"], kparams["br"]]
    return pl.pallas_call(
        fused_kernel,
        out_shape=jax.ShapeDtypeStruct((B, 1), jnp.float32),
        in_specs=[VMEM_SPEC()] * len(args),
        out_specs=VMEM_SPEC(),
        scratch_shapes=[pltpu.VMEM((T * B, H), jnp.float32)],
        # NOTE(v7x): no grid here (problem is tiny); if B/T ever scale, add a batch grid axis with
        # dimension_semantics=("parallel",) so work shards across the 2 TensorCores.
    )(*args)


# --------------------------------------------------------------------------
# Pure-JAX reference (PyTorch gate order i,f,g,o; original weight layout)
# --------------------------------------------------------------------------
def rnn_encoder_reference(tokens, params):
    emb = params["emb"][tokens]                     # (B, T, H)
    seq = emb
    for layer in range(L):
        w_ih_t = params["w_ih_t"][layer]
        w_hh_t = params["w_hh_t"][layer]
        b = params["b"][layer]

        def step(carry, x_t):
            h, c = carry
            gates = x_t @ w_ih_t + h @ w_hh_t + b
            i_g = jax.nn.sigmoid(gates[:, :H])
            f_g = jax.nn.sigmoid(gates[:, H:2 * H])
            g_g = jnp.tanh(gates[:, 2 * H:3 * H])
            o_g = jax.nn.sigmoid(gates[:, 3 * H:])
            c = f_g * c + i_g * g_g
            h = o_g * jnp.tanh(c)
            return (h, c), h

        init = (jnp.zeros((B, H), jnp.float32), jnp.zeros((B, H), jnp.float32))
        _, out_t = lax.scan(step, init, jnp.swapaxes(seq, 0, 1))
        seq = jnp.swapaxes(out_t, 0, 1)             # (B, T, H)

    out = seq
    out = out / jnp.maximum(jnp.linalg.norm(out, axis=-1, keepdims=True), EPS)
    s = jnp.mean(out, axis=1)
    s = s / jnp.maximum(jnp.linalg.norm(s, axis=-1, keepdims=True), EPS)
    x = s
    for w, bb in params["mlp"]:
        x = x @ w + bb
    y = x @ params["wr"] + params["br"]
    return jax.nn.sigmoid(y)


# --------------------------------------------------------------------------
# Deterministic parameter construction (synthetic; no checkpoint loading)
# --------------------------------------------------------------------------
def make_params(key):
    keys = jax.random.split(key, 16)
    k = 1.0 / jnp.sqrt(H)
    emb = jax.random.normal(keys[0], (VOCAB, H), jnp.float32)
    # LSTM weights in PyTorch layout (4H, H), pre-transposed to (H, 4H), gate order (i,f,g,o)
    w_ih_t = jax.random.uniform(keys[1], (L, H, 4 * H), jnp.float32, -k, k)
    w_hh_t = jax.random.uniform(keys[2], (L, H, 4 * H), jnp.float32, -k, k)
    b_ih = jax.random.uniform(keys[3], (L, 1, 4 * H), jnp.float32, -k, k)
    b_hh = jax.random.uniform(keys[4], (L, 1, 4 * H), jnp.float32, -k, k)
    b = b_ih + b_hh
    # MLP: layer 0 weight ~ N(0,1) (matches init=True), later layers default-ish scale
    mlp = []
    for i in range(MLP_LAYERS):
        in_dim = H if i == 0 else MLP_H
        std = 1.0 if i == 0 else 1.0 / jnp.sqrt(in_dim)
        w = std * jax.random.normal(keys[5 + 2 * i], (in_dim, MLP_H), jnp.float32)
        bb = 0.01 * jax.random.normal(keys[6 + 2 * i], (1, MLP_H), jnp.float32)
        mlp.append((w, bb))
    # Regressor weight ~ N(0,1)
    reg_in = H if MLP_LAYERS == 0 else MLP_H
    wr = jax.random.normal(keys[12], (reg_in, 1), jnp.float32)
    br = 0.01 * jax.random.normal(keys[13], (1, 1), jnp.float32)
    return {"emb": emb, "w_ih_t": w_ih_t, "w_hh_t": w_hh_t, "b": b,
            "mlp": mlp, "wr": wr, "br": br}


def _reorder_gates(a):
    # (..., 4H) from PyTorch order (i, f, g, o) -> kernel order (i, f, o, g)
    i, f, g, o = jnp.split(a, 4, axis=-1)
    return jnp.concatenate([i, f, o, g], axis=-1)


def prepare_kernel_params(params):
    emb_pad = jnp.zeros((VOCAB_PAD, H), jnp.float32).at[:VOCAB].set(params["emb"])
    return {
        "emb_pad": emb_pad,
        "w_ih_k": _reorder_gates(params["w_ih_t"]),
        "w_hh_k": _reorder_gates(params["w_hh_t"]),
        "b_k": _reorder_gates(params["b"]),
        "mlp": params["mlp"],
        "wr": params["wr"],
        "br": params["br"],
    }


if __name__ == "__main__":
    key = jax.random.PRNGKey(0)
    k_tok, k_par = jax.random.split(key)
    tokens = jax.random.randint(k_tok, (B, T), 0, VOCAB, dtype=jnp.int32)
    params = make_params(k_par)
    kparams = prepare_kernel_params(params)

    predict_value = jax.block_until_ready(rnn_encoder_forward(tokens, kparams))  # (B, 1)
    ref = jax.block_until_ready(rnn_encoder_reference(tokens, params))

    assert predict_value.shape == (B, 1)
    assert jnp.max(jnp.abs(predict_value - ref)) < 1e-5, "mismatch vs JAX reference"

    print("KERNEL_OK")
</pallas_src>

<mosaic_0001>
module attributes {stable_mosaic.version = 11 : i64} {
  func.func @fused_kernel(%arg0: memref<16x1xi32, #tpu.memory_space<vmem>>, %arg1: memref<16x32xf32, #tpu.memory_space<vmem>>, %arg2: memref<2x32x128xf32, #tpu.memory_space<vmem>>, %arg3: memref<2x32x128xf32, #tpu.memory_space<vmem>>, %arg4: memref<2x1x128xf32, #tpu.memory_space<vmem>>, %arg5: memref<32x32xf32, #tpu.memory_space<vmem>>, %arg6: memref<1x32xf32, #tpu.memory_space<vmem>>, %arg7: memref<32x32xf32, #tpu.memory_space<vmem>>, %arg8: memref<1x32xf32, #tpu.memory_space<vmem>>, %arg9: memref<32x1xf32, #tpu.memory_space<vmem>>, %arg10: memref<1x1xf32, #tpu.memory_space<vmem>>, %arg11: memref<2x1xf32, #tpu.memory_space<vmem>>, %arg12: memref<16x32xf32, #tpu.memory_space<vmem>>) attributes {dimension_semantics = [], scalar_prefetch = 0 : i64, scratch_operands = 1 : i64, tpu.core_type = #tpu.core_type<tc>} {
    %0 = tpu.iota {dimensions = array<i32: 1>} : vector<16x16xi32>
    %c0 = arith.constant 0 : index
    %c0_0 = arith.constant 0 : index
    %1 = vector.load %arg0[%c0, %c0_0] : memref<16x1xi32, #tpu.memory_space<vmem>>, vector<16x1xi32>
    %2 = vector.broadcast %1 : vector<16x1xi32> to vector<16x16xi32>
    %3 = arith.cmpi eq, %2, %0 : vector<16x16xi32>
    %4 = arith.extui %3 : vector<16x16xi1> to vector<16x16xi32>
    %5 = arith.sitofp %4 : vector<16x16xi32> to vector<16x16xf32>
    %c0_1 = arith.constant 0 : index
    %c0_2 = arith.constant 0 : index
    %6 = vector.load %arg1[%c0_1, %c0_2] : memref<16x32xf32, #tpu.memory_space<vmem>>, vector<16x32xf32>
    %cst = arith.constant dense<0.000000e+00> : vector<16x32xf32>
    %7 = tpu.matmul %5, %6, %cst {dimension_numbers = #tpu.dot_dimension_numbers<[1], [0], [0], [1], [0, 0, 1, 1], [], []>} : vector<16x16xf32>, vector<16x32xf32>, vector<16x32xf32> -> vector<16x32xf32>
    %c0_3 = arith.constant 0 : index
    %c0_4 = arith.constant 0 : index
    %8 = vector.load %arg12[%c0_3, %c0_4] : memref<16x32xf32, #tpu.memory_space<vmem>>, vector<16x32xf32>
    tpu.vector_store %arg12[%c0_3, %c0_4], %7 {strides = array<i32>} : memref<16x32xf32, #tpu.memory_space<vmem>>, vector<16x32xf32>,
    %cst_5 = arith.constant 0.000000e+00 : f32
    %9 = vector.broadcast %cst_5 : f32 to vector<2x32xf32>
    %c0_6 = arith.constant 0 : index
    %c0_7 = arith.constant 0 : index
    %c0_8 = arith.constant 0 : index
    %10 = vector.load %arg3[%c0_6, %c0_7, %c0_8] : memref<2x32x128xf32, #tpu.memory_space<vmem>>, vector<1x32x128xf32>
    %11 = vector.shape_cast %10 : vector<1x32x128xf32> to vector<32x128xf32>
    %c0_9 = arith.constant 0 : index
    %c0_10 = arith.constant 0 : index
    %12 = vector.load %arg12[%c0_9, %c0_10] : memref<16x32xf32, #tpu.memory_space<vmem>>, vector<16x32xf32>
    %c0_11 = arith.constant 0 : index
    %c0_12 = arith.constant 0 : index
    %c0_13 = arith.constant 0 : index
    %13 = vector.load %arg2[%c0_11, %c0_12, %c0_13] : memref<2x32x128xf32, #tpu.memory_space<vmem>>, vector<1x32x128xf32>
    %14 = vector.shape_cast %13 : vector<1x32x128xf32> to vector<32x128xf32>
    %cst_14 = arith.constant dense<0.000000e+00> : vector<16x128xf32>
    %15 = tpu.matmul %12, %14, %cst_14 {dimension_numbers = #tpu.dot_dimension_numbers<[1], [0], [0], [1], [0, 0, 1, 1], [], []>} : vector<16x32xf32>, vector<32x128xf32>, vector<16x128xf32> -> vector<16x128xf32>
    %c0_15 = arith.constant 0 : index
    %c0_16 = arith.constant 0 : index
    %c0_17 = arith.constant 0 : index
    %16 = vector.load %arg4[%c0_15, %c0_16, %c0_17] : memref<2x1x128xf32, #tpu.memory_space<vmem>>, vector<1x1x128xf32>
    %17 = vector.shape_cast %16 : vector<1x1x128xf32> to vector<1x128xf32>
    %18 = vector.broadcast %17 : vector<1x128xf32> to vector<16x128xf32>
    %19 = arith.addf %15, %18 : vector<16x128xf32>
    %cst_18 = arith.constant 0.000000e+00 : f32
    %20 = vector.broadcast %cst_18 : f32 to vector<2x32xf32>
    %cst_19 = arith.constant 0.000000e+00 : f32
    %21 = vector.broadcast %cst_19 : f32 to vector<2x32xf32>
    %22 = vector.extract_strided_slice %19 {offsets = [0, 0], sizes = [2, 128], strides = [1, 1]} : vector<16x128xf32> to vector<2x128xf32>
    %cst_20 = arith.constant dense<0.000000e+00> : vector<2x128xf32>
    %23 = tpu.matmul %20, %11, %cst_20 {dimension_numbers = #tpu.dot_dimension_numbers<[1], [0], [0], [1], [0, 0, 1, 1], [], []>} : vector<2x32xf32>, vector<32x128xf32>, vector<2x128xf32> -> vector<2x128xf32>
    %24 = arith.addf %22, %23 : vector<2x128xf32>
    %25 = vector.extract_strided_slice %24 {offsets = [0, 0], sizes = [2, 96], strides = [1, 1]} : vector<2x128xf32> to vector<2x96xf32>
    %26 = arith.negf %25 : vector<2x96xf32>
    %27 = math.exp %26 : vector<2x96xf32>
    %cst_21 = arith.constant 1.000000e+00 : f32
    %28 = vector.broadcast %cst_21 : f32 to vector<2x96xf32>
    %29 = arith.addf %28, %27 : vector<2x96xf32>
    %30 = arith.divf %28, %29 : vector<2x96xf32>
    %31 = vector.extract_strided_slice %24 {offsets = [0, 96], sizes = [2, 32], strides = [1, 1]} : vector<2x128xf32> to vector<2x32xf32>
    %32 = math.tanh %31 : vector<2x32xf32>
    %33 = vector.extract_strided_slice %30 {offsets = [0, 32], sizes = [2, 32], strides = [1, 1]} : vector<2x96xf32> to vector<2x32xf32>
    %34 = arith.mulf %33, %21 : vector<2x32xf32>
    %35 = vector.extract_strided_slice %30 {offsets = [0, 0], sizes = [2, 32], strides = [1, 1]} : vector<2x96xf32> to vector<2x32xf32>
    %36 = arith.mulf %35, %32 : vector<2x32xf32>
    %37 = arith.addf %34, %36 : vector<2x32xf32>
    %38 = vector.extract_strided_slice %30 {offsets = [0, 64], sizes = [2, 32], strides = [1, 1]} : vector<2x96xf32> to vector<2x32xf32>
    %39 = math.tanh %37 : vector<2x32xf32>
    %40 = arith.mulf %38, %39 : vector<2x32xf32>
    %c0_22 = arith.constant 0 : index
    %c0_23 = arith.constant 0 : index
    %41 = vector.load %arg12[%c0_22, %c0_23] : memref<16x32xf32, #tpu.memory_space<vmem>>, vector<2x32xf32>
    tpu.vector_store %arg12[%c0_22, %c0_23], %40 {strides = array<i32>} : memref<16x32xf32, #tpu.memory_space<vmem>>, vector<2x32xf32>,
    %42 = vector.extract_strided_slice %19 {offsets = [2, 0], sizes = [2, 128], strides = [1, 1]} : vector<16x128xf32> to vector<2x128xf32>
    %cst_24 = arith.constant dense<0.000000e+00> : vector<2x128xf32>
    %43 = tpu.matmul %40, %11, %cst_24 {dimension_numbers = #tpu.dot_dimension_numbers<[1], [0], [0], [1], [0, 0, 1, 1], [], []>} : vector<2x32xf32>, vector<32x128xf32>, vector<2x128xf32> -> vector<2x128xf32>
    %44 = arith.addf %42, %43 : vector<2x128xf32>
    %45 = vector.extract_strided_slice %44 {offsets = [0, 0], sizes = [2, 96], strides = [1, 1]} : vector<2x128xf32> to vector<2x96xf32>
    %46 = arith.negf %45 : vector<2x96xf32>
    %47 = math.exp %46 : vector<2x96xf32>
    %cst_25 = arith.constant 1.000000e+00 : f32
    %48 = vector.broadcast %cst_25 : f32 to vector<2x96xf32>
    %49 = arith.addf %48, %47 : vector<2x96xf32>
    %50 = arith.divf %48, %49 : vector<2x96xf32>
    %51 = vector.extract_strided_slice %44 {offsets = [0, 96], sizes = [2, 32], strides = [1, 1]} : vector<2x128xf32> to vector<2x32xf32>
    %52 = math.tanh %51 : vector<2x32xf32>
    %53 = vector.extract_strided_slice %50 {offsets = [0, 32], sizes = [2, 32], strides = [1, 1]} : vector<2x96xf32> to vector<2x32xf32>
    %54 = arith.mulf %53, %37 : vector<2x32xf32>
    %55 = vector.extract_strided_slice %50 {offsets = [0, 0], sizes = [2, 32], strides = [1, 1]} : vector<2x96xf32> to vector<2x32xf32>
    %56 = arith.mulf %55, %52 : vector<2x32xf32>
    %57 = arith.addf %54, %56 : vector<2x32xf32>
    %58 = vector.extract_strided_slice %50 {offsets = [0, 64], sizes = [2, 32], strides = [1, 1]} : vector<2x96xf32> to vector<2x32xf32>
    %59 = math.tanh %57 : vector<2x32xf32>
    %60 = arith.mulf %58, %59 : vector<2x32xf32>
    %c2 = arith.constant 2 : index
    %c0_26 = arith.constant 0 : index
    %61 = vector.load %arg12[%c2, %c0_26] : memref<16x32xf32, #tpu.memory_space<vmem>>, vector<2x32xf32>
    tpu.vector_store %arg12[%c2, %c0_26], %60 {strides = array<i32>} : memref<16x32xf32, #tpu.memory_space<vmem>>, vector<2x32xf32>,
    %62 = vector.extract_strided_slice %19 {offsets = [4, 0], sizes = [2, 128], strides = [1, 1]} : vector<16x128xf32> to vector<2x128xf32>
    %cst_27 = arith.constant dense<0.000000e+00> : vector<2x128xf32>
    %63 = tpu.matmul %60, %11, %cst_27 {dimension_numbers = #tpu.dot_dimension_numbers<[1], [0], [0], [1], [0, 0, 1, 1], [], []>} : vector<2x32xf32>, vector<32x128xf32>, vector<2x128xf32> -> vector<2x128xf32>
    %64 = arith.addf %62, %63 : vector<2x128xf32>
    %65 = vector.extract_strided_slice %64 {offsets = [0, 0], sizes = [2, 96], strides = [1, 1]} : vector<2x128xf32> to vector<2x96xf32>
    %66 = arith.negf %65 : vector<2x96xf32>
    %67 = math.exp %66 : vector<2x96xf32>
    %cst_28 = arith.constant 1.000000e+00 : f32
    %68 = vector.broadcast %cst_28 : f32 to vector<2x96xf32>
    %69 = arith.addf %68, %67 : vector<2x96xf32>
    %70 = arith.divf %68, %69 : vector<2x96xf32>
    %71 = vector.extract_strided_slice %64 {offsets = [0, 96], sizes = [2, 32], strides = [1, 1]} : vector<2x128xf32> to vector<2x32xf32>
    %72 = math.tanh %71 : vector<2x32xf32>
    %73 = vector.extract_strided_slice %70 {offsets = [0, 32], sizes = [2, 32], strides = [1, 1]} : vector<2x96xf32> to vector<2x32xf32>
    %74 = arith.mulf %73, %57 : vector<2x32xf32>
    %75 = vector.extract_strided_slice %70 {offsets = [0, 0], sizes = [2, 32], strides = [1, 1]} : vector<2x96xf32> to vector<2x32xf32>
    %76 = arith.mulf %75, %72 : vector<2x32xf32>
    %77 = arith.addf %74, %76 : vector<2x32xf32>
    %78 = vector.extract_strided_slice %70 {offsets = [0, 64], sizes = [2, 32], strides = [1, 1]} : vector<2x96xf32> to vector<2x32xf32>
    %79 = math.tanh %77 : vector<2x32xf32>
    %80 = arith.mulf %78, %79 : vector<2x32xf32>
    %c4 = arith.constant 4 : index
    %c0_29 = arith.constant 0 : index
    %81 = vector.load %arg12[%c4, %c0_29] : memref<16x32xf32, #tpu.memory_space<vmem>>, vector<2x32xf32>
    tpu.vector_store %arg12[%c4, %c0_29], %80 {strides = array<i32>} : memref<16x32xf32, #tpu.memory_space<vmem>>, vector<2x32xf32>,
    %82 = vector.extract_strided_slice %19 {offsets = [6, 0], sizes = [2, 128], strides = [1, 1]} : vector<16x128xf32> to vector<2x128xf32>
    %cst_30 = arith.constant dense<0.000000e+00> : vector<2x128xf32>
    %83 = tpu.matmul %80, %11, %cst_30 {dimension_numbers = #tpu.dot_dimension_numbers<[1], [0], [0], [1], [0, 0, 1, 1], [], []>} : vector<2x32xf32>, vector<32x128xf32>, vector<2x128xf32> -> vector<2x128xf32>
    %84 = arith.addf %82, %83 : vector<2x128xf32>
    %85 = vector.extract_strided_slice %84 {offsets = [0, 0], sizes = [2, 96], strides = [1, 1]} : vector<2x128xf32> to vector<2x96xf32>
    %86 = arith.negf %85 : vector<2x96xf32>
    %87 = math.exp %86 : vector<2x96xf32>
    %cst_31 = arith.constant 1.000000e+00 : f32
    %88 = vector.broadcast %cst_31 : f32 to vector<2x96xf32>
    %89 = arith.addf %88, %87 : vector<2x96xf32>
    %90 = arith.divf %88, %89 : vector<2x96xf32>
    %91 = vector.extract_strided_slice %84 {offsets = [0, 96], sizes = [2, 32], strides = [1, 1]} : vector<2x128xf32> to vector<2x32xf32>
    %92 = math.tanh %91 : vector<2x32xf32>
    %93 = vector.extract_strided_slice %90 {offsets = [0, 32], sizes = [2, 32], strides = [1, 1]} : vector<2x96xf32> to vector<2x32xf32>
    %94 = arith.mulf %93, %77 : vector<2x32xf32>
    %95 = vector.extract_strided_slice %90 {offsets = [0, 0], sizes = [2, 32], strides = [1, 1]} : vector<2x96xf32> to vector<2x32xf32>
    %96 = arith.mulf %95, %92 : vector<2x32xf32>
    %97 = arith.addf %94, %96 : vector<2x32xf32>
    %98 = vector.extract_strided_slice %90 {offsets = [0, 64], sizes = [2, 32], strides = [1, 1]} : vector<2x96xf32> to vector<2x32xf32>
    %99 = math.tanh %97 : vector<2x32xf32>
    %100 = arith.mulf %98, %99 : vector<2x32xf32>
    %c6 = arith.constant 6 : index
    %c0_32 = arith.constant 0 : index
    %101 = vector.load %arg12[%c6, %c0_32] : memref<16x32xf32, #tpu.memory_space<vmem>>, vector<2x32xf32>
    tpu.vector_store %arg12[%c6, %c0_32], %100 {strides = array<i32>} : memref<16x32xf32, #tpu.memory_space<vmem>>, vector<2x32xf32>,
    %102 = vector.extract_strided_slice %19 {offsets = [8, 0], sizes = [2, 128], strides = [1, 1]} : vector<16x128xf32> to vector<2x128xf32>
    %cst_33 = arith.constant dense<0.000000e+00> : vector<2x128xf32>
    %103 = tpu.matmul %100, %11, %cst_33 {dimension_numbers = #tpu.dot_dimension_numbers<[1], [0], [0], [1], [0, 0, 1, 1], [], []>} : vector<2x32xf32>, vector<32x128xf32>, vector<2x128xf32> -> vector<2x128xf32>
    %104 = arith.addf %102, %103 : vector<2x128xf32>
    %105 = vector.extract_strided_slice %104 {offsets = [0, 0], sizes = [2, 96], strides = [1, 1]} : vector<2x128xf32> to vector<2x96xf32>
    %106 = arith.negf %105 : vector<2x96xf32>
    %107 = math.exp %106 : vector<2x96xf32>
    %cst_34 = arith.constant 1.000000e+00 : f32
    %108 = vector.broadcast %cst_34 : f32 to vector<2x96xf32>
    %109 = arith.addf %108, %107 : vector<2x96xf32>
    %110 = arith.divf %108, %109 : vector<2x96xf32>
    %111 = vector.extract_strided_slice %104 {offsets = [0, 96], sizes = [2, 32], strides = [1, 1]} : vector<2x128xf32> to vector<2x32xf32>
    %112 = math.tanh %111 : vector<2x32xf32>
    %113 = vector.extract_strided_slice %110 {offsets = [0, 32], sizes = [2, 32], strides = [1, 1]} : vector<2x96xf32> to vector<2x32xf32>
    %114 = arith.mulf %113, %97 : vector<2x32xf32>
    %115 = vector.extract_strided_slice %110 {offsets = [0, 0], sizes = [2, 32], strides = [1, 1]} : vector<2x96xf32> to vector<2x32xf32>
    %116 = arith.mulf %115, %112 : vector<2x32xf32>
    %117 = arith.addf %114, %116 : vector<2x32xf32>
    %118 = vector.extract_strided_slice %110 {offsets = [0, 64], sizes = [2, 32], strides = [1, 1]} : vector<2x96xf32> to vector<2x32xf32>
    %119 = math.tanh %117 : vector<2x32xf32>
    %120 = arith.mulf %118, %119 : vector<2x32xf32>
    %c8 = arith.constant 8 : index
    %c0_35 = arith.constant 0 : index
    %121 = vector.load %arg12[%c8, %c0_35] : memref<16x32xf32, #tpu.memory_space<vmem>>, vector<2x32xf32>
    tpu.vector_store %arg12[%c8, %c0_35], %120 {strides = array<i32>} : memref<16x32xf32, #tpu.memory_space<vmem>>, vector<2x32xf32>,
    %122 = vector.extract_strided_slice %19 {offsets = [10, 0], sizes = [2, 128], strides = [1, 1]} : vector<16x128xf32> to vector<2x128xf32>
    %cst_36 = arith.constant dense<0.000000e+00> : vector<2x128xf32>
    %123 = tpu.matmul %120, %11, %cst_36 {dimension_numbers = #tpu.dot_dimension_numbers<[1], [0], [0], [1], [0, 0, 1, 1], [], []>} : vector<2x32xf32>, vector<32x128xf32>, vector<2x128xf32> -> vector<2x128xf32>
    %124 = arith.addf %122, %123 : vector<2x128xf32>
    %125 = vector.extract_strided_slice %124 {offsets = [0, 0], sizes = [2, 96], strides = [1, 1]} : vector<2x128xf32> to vector<2x96xf32>
    %126 = arith.negf %125 : vector<2x96xf32>
    %127 = math.exp %126 : vector<2x96xf32>
    %cst_37 = arith.constant 1.000000e+00 : f32
    %128 = vector.broadcast %cst_37 : f32 to vector<2x96xf32>
    %129 = arith.addf %128, %127 : vector<2x96xf32>
    %130 = arith.divf %128, %129 : vector<2x96xf32>
    %131 = vector.extract_strided_slice %124 {offsets = [0, 96], sizes = [2, 32], strides = [1, 1]} : vector<2x128xf32> to vector<2x32xf32>
    %132 = math.tanh %131 : vector<2x32xf32>
    %133 = vector.extract_strided_slice %130 {offsets = [0, 32], sizes = [2, 32], strides = [1, 1]} : vector<2x96xf32> to vector<2x32xf32>
    %134 = arith.mulf %133, %117 : vector<2x32xf32>
    %135 = vector.extract_strided_slice %130 {offsets = [0, 0], sizes = [2, 32], strides = [1, 1]} : vector<2x96xf32> to vector<2x32xf32>
    %136 = arith.mulf %135, %132 : vector<2x32xf32>
    %137 = arith.addf %134, %136 : vector<2x32xf32>
    %138 = vector.extract_strided_slice %130 {offsets = [0, 64], sizes = [2, 32], strides = [1, 1]} : vector<2x96xf32> to vector<2x32xf32>
    %139 = math.tanh %137 : vector<2x32xf32>
    %140 = arith.mulf %138, %139 : vector<2x32xf32>
    %c10 = arith.constant 10 : index
    %c0_38 = arith.constant 0 : index
    %141 = vector.load %arg12[%c10, %c0_38] : memref<16x32xf32, #tpu.memory_space<vmem>>, vector<2x32xf32>
    tpu.vector_store %arg12[%c10, %c0_38], %140 {strides = array<i32>} : memref<16x32xf32, #tpu.memory_space<vmem>>, vector<2x32xf32>,
    %142 = vector.extract_strided_slice %19 {offsets = [12, 0], sizes = [2, 128], strides = [1, 1]} : vector<16x128xf32> to vector<2x128xf32>
    %cst_39 = arith.constant dense<0.000000e+00> : vector<2x128xf32>
    %143 = tpu.matmul %140, %11, %cst_39 {dimension_numbers = #tpu.dot_dimension_numbers<[1], [0], [0], [1], [0, 0, 1, 1], [], []>} : vector<2x32xf32>, vector<32x128xf32>, vector<2x128xf32> -> vector<2x128xf32>
    %144 = arith.addf %142, %143 : vector<2x128xf32>
    %145 = vector.extract_strided_slice %144 {offsets = [0, 0], sizes = [2, 96], strides = [1, 1]} : vector<2x128xf32> to vector<2x96xf32>
    %146 = arith.negf %145 : vector<2x96xf32>
    %147 = math.exp %146 : vector<2x96xf32>
    %cst_40 = arith.constant 1.000000e+00 : f32
    %148 = vector.broadcast %cst_40 : f32 to vector<2x96xf32>
    %149 = arith.addf %148, %147 : vector<2x96xf32>
    %150 = arith.divf %148, %149 : vector<2x96xf32>
    %151 = vector.extract_strided_slice %144 {offsets = [0, 96], sizes = [2, 32], strides = [1, 1]} : vector<2x128xf32> to vector<2x32xf32>
    %152 = math.tanh %151 : vector<2x32xf32>
    %153 = vector.extract_strided_slice %150 {offsets = [0, 32], sizes = [2, 32], strides = [1, 1]} : vector<2x96xf32> to vector<2x32xf32>
    %154 = arith.mulf %153, %137 : vector<2x32xf32>
    %155 = vector.extract_strided_slice %150 {offsets = [0, 0], sizes = [2, 32], strides = [1, 1]} : vector<2x96xf32> to vector<2x32xf32>
    %156 = arith.mulf %155, %152 : vector<2x32xf32>
    %157 = arith.addf %154, %156 : vector<2x32xf32>
    %158 = vector.extract_strided_slice %150 {offsets = [0, 64], sizes = [2, 32], strides = [1, 1]} : vector<2x96xf32> to vector<2x32xf32>
    %159 = math.tanh %157 : vector<2x32xf32>
    %160 = arith.mulf %158, %159 : vector<2x32xf32>
    %c12 = arith.constant 12 : index
    %c0_41 = arith.constant 0 : index
    %161 = vector.load %arg12[%c12, %c0_41] : memref<16x32xf32, #tpu.memory_space<vmem>>, vector<2x32xf32>
    tpu.vector_store %arg12[%c12, %c0_41], %160 {strides = array<i32>} : memref<16x32xf32, #tpu.memory_space<vmem>>, vector<2x32xf32>,
    %162 = vector.extract_strided_slice %19 {offsets = [14, 0], sizes = [2, 128], strides = [1, 1]} : vector<16x128xf32> to vector<2x128xf32>
    %cst_42 = arith.constant dense<0.000000e+00> : vector<2x128xf32>
    %163 = tpu.matmul %160, %11, %cst_42 {dimension_numbers = #tpu.dot_dimension_numbers<[1], [0], [0], [1], [0, 0, 1, 1], [], []>} : vector<2x32xf32>, vector<32x128xf32>, vector<2x128xf32> -> vector<2x128xf32>
    %164 = arith.addf %162, %163 : vector<2x128xf32>
    %165 = vector.extract_strided_slice %164 {offsets = [0, 0], sizes = [2, 96], strides = [1, 1]} : vector<2x128xf32> to vector<2x96xf32>
    %166 = arith.negf %165 : vector<2x96xf32>
    %167 = math.exp %166 : vector<2x96xf32>
    %cst_43 = arith.constant 1.000000e+00 : f32
    %168 = vector.broadcast %cst_43 : f32 to vector<2x96xf32>
    %169 = arith.addf %168, %167 : vector<2x96xf32>
    %170 = arith.divf %168, %169 : vector<2x96xf32>
    %171 = vector.extract_strided_slice %164 {offsets = [0, 96], sizes = [2, 32], strides = [1, 1]} : vector<2x128xf32> to vector<2x32xf32>
    %172 = math.tanh %171 : vector<2x32xf32>
    %173 = vector.extract_strided_slice %170 {offsets = [0, 32], sizes = [2, 32], strides = [1, 1]} : vector<2x96xf32> to vector<2x32xf32>
    %174 = arith.mulf %173, %157 : vector<2x32xf32>
    %175 = vector.extract_strided_slice %170 {offsets = [0, 0], sizes = [2, 32], strides = [1, 1]} : vector<2x96xf32> to vector<2x32xf32>
    %176 = arith.mulf %175, %172 : vector<2x32xf32>
    %177 = arith.addf %174, %176 : vector<2x32xf32>
    %178 = vector.extract_strided_slice %170 {offsets = [0, 64], sizes = [2, 32], strides = [1, 1]} : vector<2x96xf32> to vector<2x32xf32>
    %179 = math.tanh %177 : vector<2x32xf32>
    %180 = arith.mulf %178, %179 : vector<2x32xf32>
    %c14 = arith.constant 14 : index
    %c0_44 = arith.constant 0 : index
    %181 = vector.load %arg12[%c14, %c0_44] : memref<16x32xf32, #tpu.memory_space<vmem>>, vector<2x32xf32>
    tpu.vector_store %arg12[%c14, %c0_44], %180 {strides = array<i32>} : memref<16x32xf32, #tpu.memory_space<vmem>>, vector<2x32xf32>,
    %c1 = arith.constant 1 : index
    %c0_45 = arith.constant 0 : index
    %c0_46 = arith.constant 0 : index
    %182 = vector.load %arg3[%c1, %c0_45, %c0_46] : memref<2x32x128xf32, #tpu.memory_space<vmem>>, vector<1x32x128xf32>
    %183 = vector.shape_cast %182 : vector<1x32x128xf32> to vector<32x128xf32>
    %c0_47 = arith.constant 0 : index
    %c0_48 = arith.constant 0 : index
    %184 = vector.load %arg12[%c0_47, %c0_48] : memref<16x32xf32, #tpu.memory_space<vmem>>, vector<16x32xf32>
    %c1_49 = arith.constant 1 : index
    %c0_50 = arith.constant 0 : index
    %c0_51 = arith.constant 0 : index
    %185 = vector.load %arg2[%c1_49, %c0_50, %c0_51] : memref<2x32x128xf32, #tpu.memory_space<vmem>>, vector<1x32x128xf32>
    %186 = vector.shape_cast %185 : vector<1x32x128xf32> to vector<32x128xf32>
    %cst_52 = arith.constant dense<0.000000e+00> : vector<16x128xf32>
    %187 = tpu.matmul %184, %186, %cst_52 {dimension_numbers = #tpu.dot_dimension_numbers<[1], [0], [0], [1], [0, 0, 1, 1], [], []>} : vector<16x32xf32>, vector<32x128xf32>, vector<16x128xf32> -> vector<16x128xf32>
    %c1_53 = arith.constant 1 : index
    %c0_54 = arith.constant 0 : index
    %c0_55 = arith.constant 0 : index
    %188 = vector.load %arg4[%c1_53, %c0_54, %c0_55] : memref<2x1x128xf32, #tpu.memory_space<vmem>>, vector<1x1x128xf32>
    %189 = vector.shape_cast %188 : vector<1x1x128xf32> to vector<1x128xf32>
    %190 = vector.broadcast %189 : vector<1x128xf32> to vector<16x128xf32>
    %191 = arith.addf %187, %190 : vector<16x128xf32>
    %cst_56 = arith.constant 0.000000e+00 : f32
    %192 = vector.broadcast %cst_56 : f32 to vector<2x32xf32>
    %cst_57 = arith.constant 0.000000e+00 : f32
    %193 = vector.broadcast %cst_57 : f32 to vector<2x32xf32>
    %194 = vector.extract_strided_slice %191 {offsets = [0, 0], sizes = [2, 128], strides = [1, 1]} : vector<16x128xf32> to vector<2x128xf32>
    %cst_58 = arith.constant dense<0.000000e+00> : vector<2x128xf32>
    %195 = tpu.matmul %192, %183, %cst_58 {dimension_numbers = #tpu.dot_dimension_numbers<[1], [0], [0], [1], [0, 0, 1, 1], [], []>} : vector<2x32xf32>, vector<32x128xf32>, vector<2x128xf32> -> vector<2x128xf32>
    %196 = arith.addf %194, %195 : vector<2x128xf32>
    %197 = vector.extract_strided_slice %196 {offsets = [0, 0], sizes = [2, 96], strides = [1, 1]} : vector<2x128xf32> to vector<2x96xf32>
    %198 = arith.negf %197 : vector<2x96xf32>
    %199 = math.exp %198 : vector<2x96xf32>
    %cst_59 = arith.constant 1.000000e+00 : f32
    %200 = vector.broadcast %cst_59 : f32 to vector<2x96xf32>
    %201 = arith.addf %200, %199 : vector<2x96xf32>
    %202 = arith.divf %200, %201 : vector<2x96xf32>
    %203 = vector.extract_strided_slice %196 {offsets = [0, 96], sizes = [2, 32], strides = [1, 1]} : vector<2x128xf32> to vector<2x32xf32>
    %204 = math.tanh %203 : vector<2x32xf32>
    %205 = vector.extract_strided_slice %202 {offsets = [0, 32], sizes = [2, 32], strides = [1, 1]} : vector<2x96xf32> to vector<2x32xf32>
    %206 = arith.mulf %205, %193 : vector<2x32xf32>
    %207 = vector.extract_strided_slice %202 {offsets = [0, 0], sizes = [2, 32], strides = [1, 1]} : vector<2x96xf32> to vector<2x32xf32>
    %208 = arith.mulf %207, %204 : vector<2x32xf32>
    %209 = arith.addf %206, %208 : vector<2x32xf32>
    %210 = vector.extract_strided_slice %202 {offsets = [0, 64], sizes = [2, 32], strides = [1, 1]} : vector<2x96xf32> to vector<2x32xf32>
    %211 = math.tanh %209 : vector<2x32xf32>
    %212 = arith.mulf %210, %211 : vector<2x32xf32>
    %213 = arith.mulf %212, %212 : vector<2x32xf32>
    %cst_60 = arith.constant dense<0.000000e+00> : vector<2xf32>
    %214 = vector.multi_reduction <add>, %213, %cst_60 [1] : vector<2x32xf32> to vector<2xf32>
    %215 = vector.shape_cast %214 : vector<2xf32> to vector<2x1xf32>
    %216 = math.sqrt %215 : vector<2x1xf32>
    %cst_61 = arith.constant 9.99999996E-13 : f32
    %217 = vector.broadcast %cst_61 : f32 to vector<2x1xf32>
    %218 = arith.maximumf %216, %217 : vector<2x1xf32>
    %219 = vector.broadcast %218 : vector<2x1xf32> to vector<2x32xf32>
    %220 = arith.divf %212, %219 : vector<2x32xf32>
    %221 = arith.addf %9, %220 : vector<2x32xf32>
    %222 = vector.extract_strided_slice %191 {offsets = [2, 0], sizes = [2, 128], strides = [1, 1]} : vector<16x128xf32> to vector<2x128xf32>
    %cst_62 = arith.constant dense<0.000000e+00> : vector<2x128xf32>
    %223 = tpu.matmul %212, %183, %cst_62 {dimension_numbers = #tpu.dot_dimension_numbers<[1], [0], [0], [1], [0, 0, 1, 1], [], []>} : vector<2x32xf32>, vector<32x128xf32>, vector<2x128xf32> -> vector<2x128xf32>
    %224 = arith.addf %222, %223 : vector<2x128xf32>
    %225 = vector.extract_strided_slice %224 {offsets = [0, 0], sizes = [2, 96], strides = [1, 1]} : vector<2x128xf32> to vector<2x96xf32>
    %226 = arith.negf %225 : vector<2x96xf32>
    %227 = math.exp %226 : vector<2x96xf32>
    %cst_63 = arith.constant 1.000000e+00 : f32
    %228 = vector.broadcast %cst_63 : f32 to vector<2x96xf32>
    %229 = arith.addf %228, %227 : vector<2x96xf32>
    %230 = arith.divf %228, %229 : vector<2x96xf32>
    %231 = vector.extract_strided_slice %224 {offsets = [0, 96], sizes = [2, 32], strides = [1, 1]} : vector<2x128xf32> to vector<2x32xf32>
    %232 = math.tanh %231 : vector<2x32xf32>
    %233 = vector.extract_strided_slice %230 {offsets = [0, 32], sizes = [2, 32], strides = [1, 1]} : vector<2x96xf32> to vector<2x32xf32>
    %234 = arith.mulf %233, %209 : vector<2x32xf32>
    %235 = vector.extract_strided_slice %230 {offsets = [0, 0], sizes = [2, 32], strides = [1, 1]} : vector<2x96xf32> to vector<2x32xf32>
    %236 = arith.mulf %235, %232 : vector<2x32xf32>
    %237 = arith.addf %234, %236 : vector<2x32xf32>
    %238 = vector.extract_strided_slice %230 {offsets = [0, 64], sizes = [2, 32], strides = [1, 1]} : vector<2x96xf32> to vector<2x32xf32>
    %239 = math.tanh %237 : vector<2x32xf32>
    %240 = arith.mulf %238, %239 : vector<2x32xf32>
    %241 = arith.mulf %240, %240 : vector<2x32xf32>
    %cst_64 = arith.constant dense<0.000000e+00> : vector<2xf32>
    %242 = vector.multi_reduction <add>, %241, %cst_64 [1] : vector<2x32xf32> to vector<2xf32>
    %243 = vector.shape_cast %242 : vector<2xf32> to vector<2x1xf32>
    %244 = math.sqrt %243 : vector<2x1xf32>
    %cst_65 = arith.constant 9.99999996E-13 : f32
    %245 = vector.broadcast %cst_65 : f32 to vector<2x1xf32>
    %246 = arith.maximumf %244, %245 : vector<2x1xf32>
    %247 = vector.broadcast %246 : vector<2x1xf32> to vector<2x32xf32>
    %248 = arith.divf %240, %247 : vector<2x32xf32>
    %249 = arith.addf %221, %248 : vector<2x32xf32>
    %250 = vector.extract_strided_slice %191 {offsets = [4, 0], sizes = [2, 128], strides = [1, 1]} : vector<16x128xf32> to vector<2x128xf32>
    %cst_66 = arith.constant dense<0.000000e+00> : vector<2x128xf32>
    %251 = tpu.matmul %240, %183, %cst_66 {dimension_numbers = #tpu.dot_dimension_numbers<[1], [0], [0], [1], [0, 0, 1, 1], [], []>} : vector<2x32xf32>, vector<32x128xf32>, vector<2x128xf32> -> vector<2x128xf32>
    %252 = arith.addf %250, %251 : vector<2x128xf32>
    %253 = vector.extract_strided_slice %252 {offsets = [0, 0], sizes = [2, 96], strides = [1, 1]} : vector<2x128xf32> to vector<2x96xf32>
    %254 = arith.negf %253 : vector<2x96xf32>
    %255 = math.exp %254 : vector<2x96xf32>
    %cst_67 = arith.constant 1.000000e+00 : f32
    %256 = vector.broadcast %cst_67 : f32 to vector<2x96xf32>
    %257 = arith.addf %256, %255 : vector<2x96xf32>
    %258 = arith.divf %256, %257 : vector<2x96xf32>
    %259 = vector.extract_strided_slice %252 {offsets = [0, 96], sizes = [2, 32], strides = [1, 1]} : vector<2x128xf32> to vector<2x32xf32>
    %260 = math.tanh %259 : vector<2x32xf32>
    %261 = vector.extract_strided_slice %258 {offsets = [0, 32], sizes = [2, 32], strides = [1, 1]} : vector<2x96xf32> to vector<2x32xf32>
    %262 = arith.mulf %261, %237 : vector<2x32xf32>
    %263 = vector.extract_strided_slice %258 {offsets = [0, 0], sizes = [2, 32], strides = [1, 1]} : vector<2x96xf32> to vector<2x32xf32>
    %264 = arith.mulf %263, %260 : vector<2x32xf32>
    %265 = arith.addf %262, %264 : vector<2x32xf32>
    %266 = vector.extract_strided_slice %258 {offsets = [0, 64], sizes = [2, 32], strides = [1, 1]} : vector<2x96xf32> to vector<2x32xf32>
    %267 = math.tanh %265 : vector<2x32xf32>
    %268 = arith.mulf %266, %267 : vector<2x32xf32>
    %269 = arith.mulf %268, %268 : vector<2x32xf32>
    %cst_68 = arith.constant dense<0.000000e+00> : vector<2xf32>
    %270 = vector.multi_reduction <add>, %269, %cst_68 [1] : vector<2x32xf32> to vector<2xf32>
    %271 = vector.shape_cast %270 : vector<2xf32> to vector<2x1xf32>
    %272 = math.sqrt %271 : vector<2x1xf32>
    %cst_69 = arith.constant 9.99999996E-13 : f32
    %273 = vector.broadcast %cst_69 : f32 to vector<2x1xf32>
    %274 = arith.maximumf %272, %273 : vector<2x1xf32>
    %275 = vector.broadcast %274 : vector<2x1xf32> to vector<2x32xf32>
    %276 = arith.divf %268, %275 : vector<2x32xf32>
    %277 = arith.addf %249, %276 : vector<2x32xf32>
    %278 = vector.extract_strided_slice %191 {offsets = [6, 0], sizes = [2, 128], strides = [1, 1]} : vector<16x128xf32> to vector<2x128xf32>
    %cst_70 = arith.constant dense<0.000000e+00> : vector<2x128xf32>
    %279 = tpu.matmul %268, %183, %cst_70 {dimension_numbers = #tpu.dot_dimension_numbers<[1], [0], [0], [1], [0, 0, 1, 1], [], []>} : vector<2x32xf32>, vector<32x128xf32>, vector<2x128xf32> -> vector<2x128xf32>
    %280 = arith.addf %278, %279 : vector<2x128xf32>
    %281 = vector.extract_strided_slice %280 {offsets = [0, 0], sizes = [2, 96], strides = [1, 1]} : vector<2x128xf32> to vector<2x96xf32>
    %282 = arith.negf %281 : vector<2x96xf32>
    %283 = math.exp %282 : vector<2x96xf32>
    %cst_71 = arith.constant 1.000000e+00 : f32
    %284 = vector.broadcast %cst_71 : f32 to vector<2x96xf32>
    %285 = arith.addf %284, %283 : vector<2x96xf32>
    %286 = arith.divf %284, %285 : vector<2x96xf32>
    %287 = vector.extract_strided_slice %280 {offsets = [0, 96], sizes = [2, 32], strides = [1, 1]} : vector<2x128xf32> to vector<2x32xf32>
    %288 = math.tanh %287 : vector<2x32xf32>
    %289 = vector.extract_strided_slice %286 {offsets = [0, 32], sizes = [2, 32], strides = [1, 1]} : vector<2x96xf32> to vector<2x32xf32>
    %290 = arith.mulf %289, %265 : vector<2x32xf32>
    %291 = vector.extract_strided_slice %286 {offsets = [0, 0], sizes = [2, 32], strides = [1, 1]} : vector<2x96xf32> to vector<2x32xf32>
    %292 = arith.mulf %291, %288 : vector<2x32xf32>
    %293 = arith.addf %290, %292 : vector<2x32xf32>
    %294 = vector.extract_strided_slice %286 {offsets = [0, 64], sizes = [2, 32], strides = [1, 1]} : vector<2x96xf32> to vector<2x32xf32>
    %295 = math.tanh %293 : vector<2x32xf32>
    %296 = arith.mulf %294, %295 : vector<2x32xf32>
    %297 = arith.mulf %296, %296 : vector<2x32xf32>
    %cst_72 = arith.constant dense<0.000000e+00> : vector<2xf32>
    %298 = vector.multi_reduction <add>, %297, %cst_72 [1] : vector<2x32xf32> to vector<2xf32>
    %299 = vector.shape_cast %298 : vector<2xf32> to vector<2x1xf32>
    %300 = math.sqrt %299 : vector<2x1xf32>
    %cst_73 = arith.constant 9.99999996E-13 : f32
    %301 = vector.broadcast %cst_73 : f32 to vector<2x1xf32>
    %302 = arith.maximumf %300, %301 : vector<2x1xf32>
    %303 = vector.broadcast %302 : vector<2x1xf32> to vector<2x32xf32>
    %304 = arith.divf %296, %303 : vector<2x32xf32>
    %305 = arith.addf %277, %304 : vector<2x32xf32>
    %306 = vector.extract_strided_slice %191 {offsets = [8, 0], sizes = [2, 128], strides = [1, 1]} : vector<16x128xf32> to vector<2x128xf32>
    %cst_74 = arith.constant dense<0.000000e+00> : vector<2x128xf32>
    %307 = tpu.matmul %296, %183, %cst_74 {dimension_numbers = #tpu.dot_dimension_numbers<[1], [0], [0], [1], [0, 0, 1, 1], [], []>} : vector<2x32xf32>, vector<32x128xf32>, vector<2x128xf32> -> vector<2x128xf32>
    %308 = arith.addf %306, %307 : vector<2x128xf32>
    %309 = vector.extract_strided_slice %308 {offsets = [0, 0], sizes = [2, 96], strides = [1, 1]} : vector<2x128xf32> to vector<2x96xf32>
    %310 = arith.negf %309 : vector<2x96xf32>
    %311 = math.exp %310 : vector<2x96xf32>
    %cst_75 = arith.constant 1.000000e+00 : f32
    %312 = vector.broadcast %cst_75 : f32 to vector<2x96xf32>
    %313 = arith.addf %312, %311 : vector<2x96xf32>
    %314 = arith.divf %312, %313 : vector<2x96xf32>
    %315 = vector.extract_strided_slice %308 {offsets = [0, 96], sizes = [2, 32], strides = [1, 1]} : vector<2x128xf32> to vector<2x32xf32>
    %316 = math.tanh %315 : vector<2x32xf32>
    %317 = vector.extract_strided_slice %314 {offsets = [0, 32], sizes = [2, 32], strides = [1, 1]} : vector<2x96xf32> to vector<2x32xf32>
    %318 = arith.mulf %317, %293 : vector<2x32xf32>
    %319 = vector.extract_strided_slice %314 {offsets = [0, 0], sizes = [2, 32], strides = [1, 1]} : vector<2x96xf32> to vector<2x32xf32>
    %320 = arith.mulf %319, %316 : vector<2x32xf32>
    %321 = arith.addf %318, %320 : vector<2x32xf32>
    %322 = vector.extract_strided_slice %314 {offsets = [0, 64], sizes = [2, 32], strides = [1, 1]} : vector<2x96xf32> to vector<2x32xf32>
    %323 = math.tanh %321 : vector<2x32xf32>
    %324 = arith.mulf %322, %323 : vector<2x32xf32>
    %325 = arith.mulf %324, %324 : vector<2x32xf32>
    %cst_76 = arith.constant dense<0.000000e+00> : vector<2xf32>
    %326 = vector.multi_reduction <add>, %325, %cst_76 [1] : vector<2x32xf32> to vector<2xf32>
    %327 = vector.shape_cast %326 : vector<2xf32> to vector<2x1xf32>
    %328 = math.sqrt %327 : vector<2x1xf32>
    %cst_77 = arith.constant 9.99999996E-13 : f32
    %329 = vector.broadcast %cst_77 : f32 to vector<2x1xf32>
    %330 = arith.maximumf %328, %329 : vector<2x1xf32>
    %331 = vector.broadcast %330 : vector<2x1xf32> to vector<2x32xf32>
    %332 = arith.divf %324, %331 : vector<2x32xf32>
    %333 = arith.addf %305, %332 : vector<2x32xf32>
    %334 = vector.extract_strided_slice %191 {offsets = [10, 0], sizes = [2, 128], strides = [1, 1]} : vector<16x128xf32> to vector<2x128xf32>
    %cst_78 = arith.constant dense<0.000000e+00> : vector<2x128xf32>
    %335 = tpu.matmul %324, %183, %cst_78 {dimension_numbers = #tpu.dot_dimension_numbers<[1], [0], [0], [1], [0, 0, 1, 1], [], []>} : vector<2x32xf32>, vector<32x128xf32>, vector<2x128xf32> -> vector<2x128xf32>
    %336 = arith.addf %334, %335 : vector<2x128xf32>
    %337 = vector.extract_strided_slice %336 {offsets = [0, 0], sizes = [2, 96], strides = [1, 1]} : vector<2x128xf32> to vector<2x96xf32>
    %338 = arith.negf %337 : vector<2x96xf32>
    %339 = math.exp %338 : vector<2x96xf32>
    %cst_79 = arith.constant 1.000000e+00 : f32
    %340 = vector.broadcast %cst_79 : f32 to vector<2x96xf32>
    %341 = arith.addf %340, %339 : vector<2x96xf32>
    %342 = arith.divf %340, %341 : vector<2x96xf32>
    %343 = vector.extract_strided_slice %336 {offsets = [0, 96], sizes = [2, 32], strides = [1, 1]} : vector<2x128xf32> to vector<2x32xf32>
    %344 = math.tanh %343 : vector<2x32xf32>
    %345 = vector.extract_strided_slice %342 {offsets = [0, 32], sizes = [2, 32], strides = [1, 1]} : vector<2x96xf32> to vector<2x32xf32>
    %346 = arith.mulf %345, %321 : vector<2x32xf32>
    %347 = vector.extract_strided_slice %342 {offsets = [0, 0], sizes = [2, 32], strides = [1, 1]} : vector<2x96xf32> to vector<2x32xf32>
    %348 = arith.mulf %347, %344 : vector<2x32xf32>
    %349 = arith.addf %346, %348 : vector<2x32xf32>
    %350 = vector.extract_strided_slice %342 {offsets = [0, 64], sizes = [2, 32], strides = [1, 1]} : vector<2x96xf32> to vector<2x32xf32>
    %351 = math.tanh %349 : vector<2x32xf32>
    %352 = arith.mulf %350, %351 : vector<2x32xf32>
    %353 = arith.mulf %352, %352 : vector<2x32xf32>
    %cst_80 = arith.constant dense<0.000000e+00> : vector<2xf32>
    %354 = vector.multi_reduction <add>, %353, %cst_80 [1] : vector<2x32xf32> to vector<2xf32>
    %355 = vector.shape_cast %354 : vector<2xf32> to vector<2x1xf32>
    %356 = math.sqrt %355 : vector<2x1xf32>
    %cst_81 = arith.constant 9.99999996E-13 : f32
    %357 = vector.broadcast %cst_81 : f32 to vector<2x1xf32>
    %358 = arith.maximumf %356, %357 : vector<2x1xf32>
    %359 = vector.broadcast %358 : vector<2x1xf32> to vector<2x32xf32>
    %360 = arith.divf %352, %359 : vector<2x32xf32>
    %361 = arith.addf %333, %360 : vector<2x32xf32>
    %362 = vector.extract_strided_slice %191 {offsets = [12, 0], sizes = [2, 128], strides = [1, 1]} : vector<16x128xf32> to vector<2x128xf32>
    %cst_82 = arith.constant dense<0.000000e+00> : vector<2x128xf32>
    %363 = tpu.matmul %352, %183, %cst_82 {dimension_numbers = #tpu.dot_dimension_numbers<[1], [0], [0], [1], [0, 0, 1, 1], [], []>} : vector<2x32xf32>, vector<32x128xf32>, vector<2x128xf32> -> vector<2x128xf32>
    %364 = arith.addf %362, %363 : vector<2x128xf32>
    %365 = vector.extract_strided_slice %364 {offsets = [0, 0], sizes = [2, 96], strides = [1, 1]} : vector<2x128xf32> to vector<2x96xf32>
    %366 = arith.negf %365 : vector<2x96xf32>
    %367 = math.exp %366 : vector<2x96xf32>
    %cst_83 = arith.constant 1.000000e+00 : f32
    %368 = vector.broadcast %cst_83 : f32 to vector<2x96xf32>
    %369 = arith.addf %368, %367 : vector<2x96xf32>
    %370 = arith.divf %368, %369 : vector<2x96xf32>
    %371 = vector.extract_strided_slice %364 {offsets = [0, 96], sizes = [2, 32], strides = [1, 1]} : vector<2x128xf32> to vector<2x32xf32>
    %372 = math.tanh %371 : vector<2x32xf32>
    %373 = vector.extract_strided_slice %370 {offsets = [0, 32], sizes = [2, 32], strides = [1, 1]} : vector<2x96xf32> to vector<2x32xf32>
    %374 = arith.mulf %373, %349 : vector<2x32xf32>
    %375 = vector.extract_strided_slice %370 {offsets = [0, 0], sizes = [2, 32], strides = [1, 1]} : vector<2x96xf32> to vector<2x32xf32>
    %376 = arith.mulf %375, %372 : vector<2x32xf32>
    %377 = arith.addf %374, %376 : vector<2x32xf32>
    %378 = vector.extract_strided_slice %370 {offsets = [0, 64], sizes = [2, 32], strides = [1, 1]} : vector<2x96xf32> to vector<2x32xf32>
    %379 = math.tanh %377 : vector<2x32xf32>
    %380 = arith.mulf %378, %379 : vector<2x32xf32>
    %381 = arith.mulf %380, %380 : vector<2x32xf32>
    %cst_84 = arith.constant dense<0.000000e+00> : vector<2xf32>
    %382 = vector.multi_reduction <add>, %381, %cst_84 [1] : vector<2x32xf32> to vector<2xf32>
    %383 = vector.shape_cast %382 : vector<2xf32> to vector<2x1xf32>
    %384 = math.sqrt %383 : vector<2x1xf32>
    %cst_85 = arith.constant 9.99999996E-13 : f32
    %385 = vector.broadcast %cst_85 : f32 to vector<2x1xf32>
    %386 = arith.maximumf %384, %385 : vector<2x1xf32>
    %387 = vector.broadcast %386 : vector<2x1xf32> to vector<2x32xf32>
    %388 = arith.divf %380, %387 : vector<2x32xf32>
    %389 = arith.addf %361, %388 : vector<2x32xf32>
    %390 = vector.extract_strided_slice %191 {offsets = [14, 0], sizes = [2, 128], strides = [1, 1]} : vector<16x128xf32> to vector<2x128xf32>
    %cst_86 = arith.constant dense<0.000000e+00> : vector<2x128xf32>
    %391 = tpu.matmul %380, %183, %cst_86 {dimension_numbers = #tpu.dot_dimension_numbers<[1], [0], [0], [1], [0, 0, 1, 1], [], []>} : vector<2x32xf32>, vector<32x128xf32>, vector<2x128xf32> -> vector<2x128xf32>
    %392 = arith.addf %390, %391 : vector<2x128xf32>
    %393 = vector.extract_strided_slice %392 {offsets = [0, 0], sizes = [2, 96], strides = [1, 1]} : vector<2x128xf32> to vector<2x96xf32>
    %394 = arith.negf %393 : vector<2x96xf32>
    %395 = math.exp %394 : vector<2x96xf32>
    %cst_87 = arith.constant 1.000000e+00 : f32
    %396 = vector.broadcast %cst_87 : f32 to vector<2x96xf32>
    %397 = arith.addf %396, %395 : vector<2x96xf32>
    %398 = arith.divf %396, %397 : vector<2x96xf32>
    %399 = vector.extract_strided_slice %392 {offsets = [0, 96], sizes = [2, 32], strides = [1, 1]} : vector<2x128xf32> to vector<2x32xf32>
    %400 = math.tanh %399 : vector<2x32xf32>
    %401 = vector.extract_strided_slice %398 {offsets = [0, 32], sizes = [2, 32], strides = [1, 1]} : vector<2x96xf32> to vector<2x32xf32>
    %402 = arith.mulf %401, %377 : vector<2x32xf32>
    %403 = vector.extract_strided_slice %398 {offsets = [0, 0], sizes = [2, 32], strides = [1, 1]} : vector<2x96xf32> to vector<2x32xf32>
    %404 = arith.mulf %403, %400 : vector<2x32xf32>
    %405 = arith.addf %402, %404 : vector<2x32xf32>
    %406 = vector.extract_strided_slice %398 {offsets = [0, 64], sizes = [2, 32], strides = [1, 1]} : vector<2x96xf32> to vector<2x32xf32>
    %407 = math.tanh %405 : vector<2x32xf32>
    %408 = arith.mulf %406, %407 : vector<2x32xf32>
    %409 = arith.mulf %408, %408 : vector<2x32xf32>
    %cst_88 = arith.constant dense<0.000000e+00> : vector<2xf32>
    %410 = vector.multi_reduction <add>, %409, %cst_88 [1] : vector<2x32xf32> to vector<2xf32>
    %411 = vector.shape_cast %410 : vector<2xf32> to vector<2x1xf32>
    %412 = math.sqrt %411 : vector<2x1xf32>
    %cst_89 = arith.constant 9.99999996E-13 : f32
    %413 = vector.broadcast %cst_89 : f32 to vector<2x1xf32>
    %414 = arith.maximumf %412, %413 : vector<2x1xf32>
    %415 = vector.broadcast %414 : vector<2x1xf32> to vector<2x32xf32>
    %416 = arith.divf %408, %415 : vector<2x32xf32>
    %417 = arith.addf %389, %416 : vector<2x32xf32>
    %cst_90 = arith.constant 1.250000e-01 : f32
    %418 = vector.broadcast %cst_90 : f32 to vector<2x32xf32>
    %419 = arith.mulf %417, %418 : vector<2x32xf32>
    %420 = arith.mulf %419, %419 : vector<2x32xf32>
    %cst_91 = arith.constant dense<0.000000e+00> : vector<2xf32>
    %421 = vector.multi_reduction <add>, %420, %cst_91 [1] : vector<2x32xf32> to vector<2xf32>
    %422 = vector.shape_cast %421 : vector<2xf32> to vector<2x1xf32>
    %423 = math.sqrt %422 : vector<2x1xf32>
    %cst_92 = arith.constant 9.99999996E-13 : f32
    %424 = vector.broadcast %cst_92 : f32 to vector<2x1xf32>
    %425 = arith.maximumf %423, %424 : vector<2x1xf32>
    %426 = vector.broadcast %425 : vector<2x1xf32> to vector<2x32xf32>
    %427 = arith.divf %419, %426 : vector<2x32xf32>
    %c0_93 = arith.constant 0 : index
    %c0_94 = arith.constant 0 : index
    %428 = vector.load %arg5[%c0_93, %c0_94] : memref<32x32xf32, #tpu.memory_space<vmem>>, vector<32x32xf32>
    %cst_95 = arith.constant dense<0.000000e+00> : vector<2x32xf32>
    %429 = tpu.matmul %427, %428, %cst_95 {dimension_numbers = #tpu.dot_dimension_numbers<[1], [0], [0], [1], [0, 0, 1, 1], [], []>} : vector<2x32xf32>, vector<32x32xf32>, vector<2x32xf32> -> vector<2x32xf32>
    %c0_96 = arith.constant 0 : index
    %c0_97 = arith.constant 0 : index
    %430 = vector.load %arg6[%c0_96, %c0_97] : memref<1x32xf32, #tpu.memory_space<vmem>>, vector<1x32xf32>
    %431 = vector.broadcast %430 : vector<1x32xf32> to vector<2x32xf32>
    %432 = arith.addf %429, %431 : vector<2x32xf32>
    %c0_98 = arith.constant 0 : index
    %c0_99 = arith.constant 0 : index
    %433 = vector.load %arg7[%c0_98, %c0_99] : memref<32x32xf32, #tpu.memory_space<vmem>>, vector<32x32xf32>
    %cst_100 = arith.constant dense<0.000000e+00> : vector<2x32xf32>
    %434 = tpu.matmul %432, %433, %cst_100 {dimension_numbers = #tpu.dot_dimension_numbers<[1], [0], [0], [1], [0, 0, 1, 1], [], []>} : vector<2x32xf32>, vector<32x32xf32>, vector<2x32xf32> -> vector<2x32xf32>
    %c0_101 = arith.constant 0 : index
    %c0_102 = arith.constant 0 : index
    %435 = vector.load %arg8[%c0_101, %c0_102] : memref<1x32xf32, #tpu.memory_space<vmem>>, vector<1x32xf32>
    %436 = vector.broadcast %435 : vector<1x32xf32> to vector<2x32xf32>
    %437 = arith.addf %434, %436 : vector<2x32xf32>
    %c0_103 = arith.constant 0 : index
    %c0_104 = arith.constant 0 : index
    %438 = vector.load %arg9[%c0_103, %c0_104] : memref<32x1xf32, #tpu.memory_space<vmem>>, vector<32x1xf32>
    %cst_105 = arith.constant dense<0.000000e+00> : vector<2x1xf32>
    %439 = tpu.matmul %437, %438, %cst_105 {dimension_numbers = #tpu.dot_dimension_numbers<[1], [0], [0], [1], [0, 0, 1, 1], [], []>} : vector<2x32xf32>, vector<32x1xf32>, vector<2x1xf32> -> vector<2x1xf32>
    %c0_106 = arith.constant 0 : index
    %c0_107 = arith.constant 0 : index
    %440 = vector.load %arg10[%c0_106, %c0_107] : memref<1x1xf32, #tpu.memory_space<vmem>>, vector<1x1xf32>
    %441 = vector.broadcast %440 : vector<1x1xf32> to vector<2x1xf32>
    %442 = arith.addf %439, %441 : vector<2x1xf32>
    %443 = arith.negf %442 : vector<2x1xf32>
    %444 = math.exp %443 : vector<2x1xf32>
    %cst_108 = arith.constant 1.000000e+00 : f32
    %445 = vector.broadcast %cst_108 : f32 to vector<2x1xf32>
    %446 = arith.addf %445, %444 : vector<2x1xf32>
    %447 = arith.divf %445, %446 : vector<2x1xf32>
    %c0_109 = arith.constant 0 : index
    %c0_110 = arith.constant 0 : index
    %448 = vector.load %arg11[%c0_109, %c0_110] : memref<2x1xf32, #tpu.memory_space<vmem>>, vector<2x1xf32>
    tpu.vector_store %arg11[%c0_109, %c0_110], %447 {strides = array<i32>} : memref<2x1xf32, #tpu.memory_space<vmem>>, vector<2x1xf32>,
    return
  }
}

</mosaic_0001>

<llo_original>
// kernel: tpu_custom_call.1
$region0: #{tpu_custom_call.1}
  #allocation0 [shape = 'u32[]', space=smem, size = 0x4, offset = 0x4, fixed_abs, tag = 'smem constant byte address 0x4 - core index']
  #allocation1 [shape = 'u32[144,128]{1,0:T(1,128)}', space=vmem, size = 0x12000, scoped, tag = 'internal scratch']
  #allocation2 [shape = 'f32[16,32]{1,0:T(8,128)}', space=vmem, size = 0x2000, scoped, tag = 'scratch operand']
  #allocation3 [shape = 'f32[1,1]{1,0:T(1,128)S(1)}', space=vmem, size = 0x200, scoped, tag = 'scoped memory for tpu_custom_call.1']
  %s0 = inlined_call_operand.vmem [shape: s32[16,1], index: 0, kind: input, shape index: {}]
  %s1 = inlined_call_operand.hbm [shape: f32[16,32], index: 1, kind: input, shape index: {}]
  %s2 = inlined_call_operand.hbm [shape: f32[2,32,128], index: 2, kind: input, shape index: {}]
  %s3 = inlined_call_operand.vmem [shape: f32[2,32,128], index: 3, kind: input, shape index: {}]
  %s4 = inlined_call_operand.vmem [shape: f32[2,1,128], index: 4, kind: input, shape index: {}]
  %s5 = inlined_call_operand.hbm [shape: f32[32,32], index: 5, kind: input, shape index: {}]
  %s6 = inlined_call_operand.vmem [shape: f32[1,32], index: 6, kind: input, shape index: {}]
  %s7 = inlined_call_operand.hbm [shape: f32[32,32], index: 7, kind: input, shape index: {}]
  %s8 = inlined_call_operand.vmem [shape: f32[1,32], index: 8, kind: input, shape index: {}]
  %s9 = inlined_call_operand.vmem [shape: f32[32,1], index: 9, kind: input, shape index: {}]
  %s10 = inlined_call_operand.<no memory space> [shape: f32[1,1], index: 10, kind: input, shape index: {}]
  %s11 = inlined_call_operand.vmem [shape: f32[2,1], index: 11, kind: output, shape index: {}]
  %s12 = sld [smem:[#allocation0]]
  $region70: #{tpu_custom_call.1} parent=0
    _
  %s14 = ssub.s32 1, %s12
  %s15 = scalar_select 0, %s14, %s12
  %v16 = vstv %s10
  %17 = vst [vmem:[#allocation3] sm:$0x1] %v16
  $region1: #{tpu_custom_call.1} parent=0
    #allocation4 [shape = 'u8[8192]{0}', space=vmem, size = 0x2000, scoped, tag = 'input window, operand 1, single buffered']
    #allocation5 [shape = 's32[1]{0}', space=sflag, size = 0x4, scoped, tag = 'scoped memory for tpu_custom_call.1']
    #allocation6 [shape = 'u8[32768]{0}', space=vmem, size = 0x8000, scoped, tag = 'input window, operand 2, single buffered']
    #allocation7 [shape = 's32[1]{0}', space=sflag, size = 0x4, scoped, tag = 'scoped memory for tpu_custom_call.1']
    #allocation8 [shape = 'u8[16384]{0}', space=vmem, size = 0x4000, scoped, tag = 'input window, operand 5, single buffered']
    #allocation9 [shape = 'u8[16384]{0}', space=vmem, size = 0x4000, scoped, tag = 'input window, operand 7, single buffered']
    #allocation10 [shape = 's32[1]{0}', space=sflag, size = 0x4, scoped, tag = 'scoped memory for tpu_custom_call.1']
    %18 = vsyncpa [#allocation5], 0
    %19 = vsyncpa [#allocation7], 0
    %20 = vsyncpa [#allocation10], 0
    // Predicated region
    $region2: #{tpu_custom_call.1} parent=1 // pred_check
      _
    $region3: #{tpu_custom_call.1} parent=1 // pred_check_branch
      %22 = sbr.rel (0) target = $region5
    $region4: #{tpu_custom_call.1} parent=1 // pred_region
      _
    $region5: #{tpu_custom_call.1} parent=1 // pred_fallthru
      _
    // Predicated region
    $region6: #{tpu_custom_call.1} parent=1 // pred_check
      _
    $region7: #{tpu_custom_call.1} parent=1 // pred_check_branch
      %24 = sbr.rel (0) target = $region9
    $region8: #{tpu_custom_call.1} parent=1 // pred_region
      %s26 = ssub.s32 256, 256
      %27 = vsyncadd [#allocation5], %s26
      %s28 = sshll.u32 [#allocation4], 4
      %s29 = int_to_ptr.vmem [resolvable:$true] %s28
      %34 = dma.hbm_to_vmem [thread:$0]  %s1, 256, %s29, [#allocation5], 128, 128, 8
    $region9: #{tpu_custom_call.1} parent=1 // pred_fallthru
      _
    // Predicated region
    $region10: #{tpu_custom_call.1} parent=1 // pred_check
      _
    $region11: #{tpu_custom_call.1} parent=1 // pred_check_branch
      %36 = sbr.rel (0) target = $region13
    $region12: #{tpu_custom_call.1} parent=1 // pred_region
      %s38 = ssub.s32 1024, 1024
      %39 = vsyncadd [#allocation7], %s38
      %s40 = sshll.u32 [#allocation6], 4
      %s41 = int_to_ptr.vmem [resolvable:$true] %s40
      %46 = dma.hbm_to_vmem [thread:$0]  %s2, 1024, %s41, [#allocation7], 128, 128, 8
    $region13: #{tpu_custom_call.1} parent=1 // pred_fallthru
      _
    // Predicated region
    $region14: #{tpu_custom_call.1} parent=1 // pred_check
      _
    $region15: #{tpu_custom_call.1} parent=1 // pred_check_branch
      %48 = sbr.rel (0) target = $region17
    $region16: #{tpu_custom_call.1} parent=1 // pred_region
      _
    $region17: #{tpu_custom_call.1} parent=1 // pred_fallthru
      _
    // Predicated region
    $region18: #{tpu_custom_call.1} parent=1 // pred_check
      _
    $region19: #{tpu_custom_call.1} parent=1 // pred_check_branch
      %50 = sbr.rel (0) target = $region21
    $region20: #{tpu_custom_call.1} parent=1 // pred_region
      _
    $region21: #{tpu_custom_call.1} parent=1 // pred_fallthru
      _
    // Predicated region
    $region22: #{tpu_custom_call.1} parent=1 // pred_check
      _
    $region23: #{tpu_custom_call.1} parent=1 // pred_check_branch
      %52 = sbr.rel (0) target = $region25
    $region24: #{tpu_custom_call.1} parent=1 // pred_region
      %s54 = ssub.s32 512, 512
      %55 = vsyncadd [#allocation7], %s54
      %s56 = sshll.u32 [#allocation8], 4
      %s57 = int_to_ptr.vmem [resolvable:$true] %s56
      %62 = dma.hbm_to_vmem [thread:$0]  %s5, 512, %s57, [#allocation7], 128, 128, 8
    $region25: #{tpu_custom_call.1} parent=1 // pred_fallthru
      _
    // Predicated region
    $region26: #{tpu_custom_call.1} parent=1 // pred_check
      _
    $region27: #{tpu_custom_call.1} parent=1 // pred_check_branch
      %64 = sbr.rel (0) target = $region29
    $region28: #{tpu_custom_call.1} parent=1 // pred_region
      _
    $region29: #{tpu_custom_call.1} parent=1 // pred_fallthru
      _
    // Predicated region
    $region30: #{tpu_custom_call.1} parent=1 // pred_check
      _
    $region31: #{tpu_custom_call.1} parent=1 // pred_check_branch
      %66 = sbr.rel (0) target = $region33
    $region32: #{tpu_custom_call.1} parent=1 // pred_region
      %s68 = ssub.s32 512, 512
      %69 = vsyncadd [#allocation10], %s68
      %s70 = sshll.u32 [#allocation9], 4
      %s71 = int_to_ptr.vmem [resolvable:$true] %s70
      %76 = dma.hbm_to_vmem [thread:$0]  %s7, 512, %s71, [#allocation10], 128, 128, 8
    $region33: #{tpu_custom_call.1} parent=1 // pred_fallthru
      _
    // Predicated region
    $region34: #{tpu_custom_call.1} parent=1 // pred_check
      _
    $region35: #{tpu_custom_call.1} parent=1 // pred_check_branch
      %78 = sbr.rel (0) target = $region37
    $region36: #{tpu_custom_call.1} parent=1 // pred_region
      _
    $region37: #{tpu_custom_call.1} parent=1 // pred_fallthru
      _
    // Predicated region
    $region38: #{tpu_custom_call.1} parent=1 // pred_check
      _
    $region39: #{tpu_custom_call.1} parent=1 // pred_check_branch
      %80 = sbr.rel (0) target = $region41
    $region40: #{tpu_custom_call.1} parent=1 // pred_region
      _
    $region41: #{tpu_custom_call.1} parent=1 // pred_fallthru
      _
    // Predicated region
    $region42: #{tpu_custom_call.1} parent=1 // pred_check
      _
    $region43: #{tpu_custom_call.1} parent=1 // pred_check_branch
      %82 = sbr.rel (0) target = $region45
    $region44: #{tpu_custom_call.1} parent=1 // pred_region
      _
    $region45: #{tpu_custom_call.1} parent=1 // pred_fallthru
      _
    // Predicated region
    $region46: #{tpu_custom_call.1} parent=1 // pred_check
      _
    $region47: #{tpu_custom_call.1} parent=1 // pred_check_branch
      %84 = sbr.rel (0) target = $region49
    $region48: #{tpu_custom_call.1} parent=1 // pred_region
      %85 = dma.done [#allocation5], 256
    $region49: #{tpu_custom_call.1} parent=1 // pred_fallthru
      _
    // Predicated region
    $region50: #{tpu_custom_call.1} parent=1 // pred_check
      _
    $region51: #{tpu_custom_call.1} parent=1 // pred_check_branch
      %87 = sbr.rel (0) target = $region53
    $region52: #{tpu_custom_call.1} parent=1 // pred_region
      %88 = dma.done [#allocation7], 1024
    $region53: #{tpu_custom_call.1} parent=1 // pred_fallthru
      _
    // Predicated region
    $region54: #{tpu_custom_call.1} parent=1 // pred_check
      _
    $region55: #{tpu_custom_call.1} parent=1 // pred_check_branch
      %90 = sbr.rel (0) target = $region57
    $region56: #{tpu_custom_call.1} parent=1 // pred_region
      %91 = dma.done [#allocation7], 512
    $region57: #{tpu_custom_call.1} parent=1 // pred_fallthru
      _
    // Predicated region
    $region58: #{tpu_custom_call.1} parent=1 // pred_check
      _
    $region59: #{tpu_custom_call.1} parent=1 // pred_check_branch
      %93 = sbr.rel (0) target = $region61
    $region60: #{tpu_custom_call.1} parent=1 // pred_region
      %94 = dma.done [#allocation10], 512
    $region61: #{tpu_custom_call.1} parent=1 // pred_fallthru
      _
    %v95 = vlaneseq
    %v96 = vand.u32 %v95, 127
    %v97 = vld [vmem:[%s0] sm:$0xff]
    %v98 = vld [vmem:[%s0 + $0x8] sm:$0xff]
    %99 = vset.pattern.permute.xlu0 0
    %100 = vperm.xlu0 %99, %v97
    %v101 = vpop.permute.xlu0 %100
    %102 = vset.pattern.permute.xlu0 0
    %103 = vperm.xlu0 %102, %v98
    %v104 = vpop.permute.xlu0 %103
    %vm105 = vcmp.eq.s32.totalorder %v101, %v96
    %vm106 = vcmp.eq.s32.totalorder %v104, %v96
    %v107 = vsel %vm105, 1, 0
    %v108 = vsel %vm106, 1, 0
    %v109 = vcvt.s32.f32 %v107
    %v110 = vcvt.s32.f32 %v108
    %v111 = vld [vmem:[#allocation4] sm:$0xff]
    %v112 = vld [vmem:[#allocation4 + $0x8] sm:$0xff]
    %vm113 = vcmask 130048
    %v115 = vsel %vm113, %v109, 0
    %v118 = vsel %vm113, %v110, 0
    %120 = vmatprep.subr.mxu0 0.0
    %121 = vmatpush1.msra.mxu0 %v111
    %122 = vmatprep.subr.mxu0 0.0
    %123 = vmatpush1.msra.mxu0 %v112
    %124 = vmatprep.subr.mxu0 0.0
    %125 = vmatpush1.msra.mxu0 0.0
    %126 = vmatprep.subr.mxu0 0.0
    %127 = vmatpush1.msra.mxu0 0.0
    %128 = vmatprep.subr.mxu0 0.0
    %129 = vmatpush1.msra.mxu0 0.0
    %130 = vmatprep.subr.mxu0 0.0
    %131 = vmatpush1.msra.mxu0 0.0
    %132 = vmatprep.subr.mxu0 0.0
    %133 = vmatpush1.msra.mxu0 0.0
    %134 = vmatprep.subr.mxu0 0.0
    %135 = vmatpush1.msra.mxu0 0.0
    %136 = vmatprep.subr.mxu0 0.0
    %137 = vmatpush1.msra.mxu0 0.0
    %138 = vmatprep.subr.mxu0 0.0
    %139 = vmatpush1.msra.mxu0 0.0
    %140 = vmatprep.subr.mxu0 0.0
    %141 = vmatpush1.msra.mxu0 0.0
    %142 = vmatprep.subr.mxu0 0.0
    %143 = vmatpush1.msra.mxu0 0.0
    %144 = vmatprep.subr.mxu0 0.0
    %145 = vmatpush1.msra.mxu0 0.0
    %146 = vmatprep.subr.mxu0 0.0
    %147 = vmatpush1.msra.mxu0 0.0
    %148 = vmatprep.subr.mxu0 0.0
    %149 = vmatpush1.msra.mxu0 0.0
    %150 = vmatprep.subr.mxu0 0.0
    %151 = vmatpush1.msra.mxu0 0.0
    %152 = vmatprep.subr.mxu0 0.0
    %153 = vmatpush1.msra.mxu0 0.0
    %154 = vmatprep.subr.mxu0 0.0
    %155 = vmatpush1.msra.mxu0 0.0
    %156 = vmatprep.subr.mxu0 0.0
    %157 = vmatpush1.msra.mxu0 0.0
    %158 = vmatprep.subr.mxu0 0.0
    %159 = vmatpush1.msra.mxu0 0.0
    %160 = vmatprep.subr.mxu0 0.0
    %161 = vmatpush1.msra.mxu0 0.0
    %162 = vmatprep.subr.mxu0 0.0
    %163 = vmatpush1.msra.mxu0 0.0
    %164 = vmatprep.subr.mxu0 0.0
    %165 = vmatpush1.msra.mxu0 0.0
    %166 = vmatprep.subr.mxu0 0.0
    %167 = vmatpush1.msra.mxu0 0.0
    %168 = vmatprep.subr.mxu0 0.0
    %169 = vmatpush1.msra.mxu0 0.0
    %170 = vmatprep.subr.mxu0 0.0
    %171 = vmatpush1.msra.mxu0 0.0
    %172 = vmatprep.subr.mxu0 0.0
    %173 = vmatpush1.msra.mxu0 0.0
    %174 = vmatprep.subr.mxu0 0.0
    %175 = vmatpush1.msra.mxu0 0.0
    %176 = vmatprep.subr.mxu0 0.0
    %177 = vmatpush1.msra.mxu0 0.0
    %178 = vmatprep.subr.mxu0 0.0
    %179 = vmatpush1.msra.mxu0 0.0
    %180 = vmatprep.subr.mxu0 0.0
    %181 = vmatpush1.msra.mxu0 0.0
    %182 = vmatprep.subr.mxu0 0.0
    %183 = vmatpush1.msra.mxu0 0.0
    %184 = vmatprep.mubr.f32.mxu0 0.0
    %185 = vmatmul.mubr.f32.gmra.mrb[0].mxu0 %v115
    %v186 = vpop.f32.mrb[0].mxu0
    %v187 = vadd.f32 0.0, %v186
    %v188 = vpop.f32.mrb[0].mxu0
    %189 = vmatprep.mubr.f32.mxu0 0.0
    %190 = vmatmul.mubr.f32.gmra.mrb[0].mxu0 %v118
    %v191 = vpop.f32.mrb[0].mxu0
    %v192 = vadd.f32 0.0, %v191
    %v193 = vpop.f32.mrb[0].mxu0
    %194 = vdwg.mxu0
    %vm195 = vcmask 261120
    %196 = vst.msk [vmem:[#allocation2] sm:$0xff] %vm195, %v187
    %197 = vst.msk [vmem:[#allocation2 + $0x8] sm:$0xff] %vm195, %v192
    %v198 = vld [vmem:[%s3] sm:$0xff]
    %v199 = vld [vmem:[%s3 + $0x8] sm:$0xff]
    %v200 = vld [vmem:[%s3 + $0x10] sm:$0xff]
    %v201 = vld [vmem:[%s3 + $0x18] sm:$0xff]
    %v202 = vld [vmem:[#allocation2] sm:$0xff]
    %v203 = vld [vmem:[#allocation2 + $0x8] sm:$0xff]
    %v204 = vld [vmem:[#allocation6] sm:$0xff]
    %v205 = vld [vmem:[#allocation6 + $0x8] sm:$0xff]
    %v206 = vld [vmem:[#allocation6 + $0x10] sm:$0xff]
    %v207 = vld [vmem:[#allocation6 + $0x18] sm:$0xff]
    %v208 = vld [vmem:[%s4] sm:$0x1]
    %v210 = vlaneseq
    %v211 = vshrl.u32 %v210, 7
    %v212 = vsub.s32 0, %v211
    %v213 = vrot.slane %v208, %v212
    %v216 = vsel %vm195, %v202, 0
    %v219 = vsel %vm195, %v203, 0
    %221 = vmatprep.subr.mxu0 0.0
    %222 = vmatpush1.msra.mxu0 %v204
    %223 = vmatprep.subr.mxu0 0.0
    %224 = vmatpush1.msra.mxu0 %v205
    %225 = vmatprep.subr.mxu0 0.0
    %226 = vmatpush1.msra.mxu0 %v206
    %227 = vmatprep.subr.mxu0 0.0
    %228 = vmatpush1.msra.mxu0 %v207
    %229 = vmatprep.subr.mxu0 0.0
    %230 = vmatpush1.msra.mxu0 0.0
    %231 = vmatprep.subr.mxu0 0.0
    %232 = vmatpush1.msra.mxu0 0.0
    %233 = vmatprep.subr.mxu0 0.0
    %234 = vmatpush1.msra.mxu0 0.0
    %235 = vmatprep.subr.mxu0 0.0
    %236 = vmatpush1.msra.mxu0 0.0
    %237 = vmatprep.subr.mxu0 0.0
    %238 = vmatpush1.msra.mxu0 0.0
    %239 = vmatprep.subr.mxu0 0.0
    %240 = vmatpush1.msra.mxu0 0.0
    %241 = vmatprep.subr.mxu0 0.0
    %242 = vmatpush1.msra.mxu0 0.0
    %243 = vmatprep.subr.mxu0 0.0
    %244 = vmatpush1.msra.mxu0 0.0
    %245 = vmatprep.subr.mxu0 0.0
    %246 = vmatpush1.msra.mxu0 0.0
    %247 = vmatprep.subr.mxu0 0.0
    %248 = vmatpush1.msra.mxu0 0.0
    %249 = vmatprep.subr.mxu0 0.0
    %250 = vmatpush1.msra.mxu0 0.0
    %251 = vmatprep.subr.mxu0 0.0
    %252 = vmatpush1.msra.mxu0 0.0
    %253 = vmatprep.subr.mxu0 0.0
    %254 = vmatpush1.msra.mxu0 0.0
    %255 = vmatprep.subr.mxu0 0.0
    %256 = vmatpush1.msra.mxu0 0.0
    %257 = vmatprep.subr.mxu0 0.0
    %258 = vmatpush1.msra.mxu0 0.0
    %259 = vmatprep.subr.mxu0 0.0
    %260 = vmatpush1.msra.mxu0 0.0
    %261 = vmatprep.subr.mxu0 0.0
    %262 = vmatpush1.msra.mxu0 0.0
    %263 = vmatprep.subr.mxu0 0.0
    %264 = vmatpush1.msra.mxu0 0.0
    %265 = vmatprep.subr.mxu0 0.0
    %266 = vmatpush1.msra.mxu0 0.0
    %267 = vmatprep.subr.mxu0 0.0
    %268 = vmatpush1.msra.mxu0 0.0
    %269 = vmatprep.subr.mxu0 0.0
    %270 = vmatpush1.msra.mxu0 0.0
    %271 = vmatprep.subr.mxu0 0.0
    %272 = vmatpush1.msra.mxu0 0.0
    %273 = vmatprep.subr.mxu0 0.0
    %274 = vmatpush1.msra.mxu0 0.0
    %275 = vmatprep.subr.mxu0 0.0
    %276 = vmatpush1.msra.mxu0 0.0
    %277 = vmatprep.subr.mxu0 0.0
    %278 = vmatpush1.msra.mxu0 0.0
    %279 = vmatprep.subr.mxu0 0.0
    %280 = vmatpush1.msra.mxu0 0.0
    %281 = vmatprep.subr.mxu0 0.0
    %282 = vmatpush1.msra.mxu0 0.0
    %283 = vmatprep.subr.mxu0 0.0
    %284 = vmatpush1.msra.mxu0 0.0
    %285 = vmatprep.mubr.f32.mxu0 0.0
    %286 = vmatmul.mubr.f32.gmra.mrb[0].mxu0 %v216
    %v287 = vpop.f32.mrb[0].mxu0
    %v288 = vadd.f32 %v213, %v287
    %v289 = vpop.f32.mrb[0].mxu0
    %290 = vmatprep.mubr.f32.mxu0 0.0
    %291 = vmatmul.mubr.f32.gmra.mrb[0].mxu0 %v219
    %v292 = vpop.f32.mrb[0].mxu0
    %v293 = vadd.f32 %v213, %v292
    %v294 = vpop.f32.mrb[0].mxu0
    %295 = vdwg.mxu0
    %v297 = vsel %vm195, 0.0, 0
    %299 = vmatprep.subr.mxu0 0.0
    %300 = vmatpush1.msra.mxu0 %v198
    %301 = vmatprep.subr.mxu0 0.0
    %302 = vmatpush1.msra.mxu0 %v199
    %303 = vmatprep.subr.mxu0 0.0
    %304 = vmatpush1.msra.mxu0 %v200
    %305 = vmatprep.subr.mxu0 0.0
    %306 = vmatpush1.msra.mxu0 %v201
    %307 = vmatprep.subr.mxu0 0.0
    %308 = vmatpush1.msra.mxu0 0.0
    %309 = vmatprep.subr.mxu0 0.0
    %310 = vmatpush1.msra.mxu0 0.0
    %311 = vmatprep.subr.mxu0 0.0
    %312 = vmatpush1.msra.mxu0 0.0
    %313 = vmatprep.subr.mxu0 0.0
    %314 = vmatpush1.msra.mxu0 0.0
    %315 = vmatprep.subr.mxu0 0.0
    %316 = vmatpush1.msra.mxu0 0.0
    %317 = vmatprep.subr.mxu0 0.0
    %318 = vmatpush1.msra.mxu0 0.0
    %319 = vmatprep.subr.mxu0 0.0
    %320 = vmatpush1.msra.mxu0 0.0
    %321 = vmatprep.subr.mxu0 0.0
    %322 = vmatpush1.msra.mxu0 0.0
    %323 = vmatprep.subr.mxu0 0.0
    %324 = vmatpush1.msra.mxu0 0.0
    %325 = vmatprep.subr.mxu0 0.0
    %326 = vmatpush1.msra.mxu0 0.0
    %327 = vmatprep.subr.mxu0 0.0
    %328 = vmatpush1.msra.mxu0 0.0
    %329 = vmatprep.subr.mxu0 0.0
    %330 = vmatpush1.msra.mxu0 0.0
    %331 = vmatprep.subr.mxu0 0.0
    %332 = vmatpush1.msra.mxu0 0.0
    %333 = vmatprep.subr.mxu0 0.0
    %334 = vmatpush1.msra.mxu0 0.0
    %335 = vmatprep.subr.mxu0 0.0
    %336 = vmatpush1.msra.mxu0 0.0
    %337 = vmatprep.subr.mxu0 0.0
    %338 = vmatpush1.msra.mxu0 0.0
    %339 = vmatprep.subr.mxu0 0.0
    %340 = vmatpush1.msra.mxu0 0.0
    %341 = vmatprep.subr.mxu0 0.0
    %342 = vmatpush1.msra.mxu0 0.0
    %343 = vmatprep.subr.mxu0 0.0
    %344 = vmatpush1.msra.mxu0 0.0
    %345 = vmatprep.subr.mxu0 0.0
    %346 = vmatpush1.msra.mxu0 0.0
    %347 = vmatprep.subr.mxu0 0.0
    %348 = vmatpush1.msra.mxu0 0.0
    %349 = vmatprep.subr.mxu0 0.0
    %350 = vmatpush1.msra.mxu0 0.0
    %351 = vmatprep.subr.mxu0 0.0
    %352 = vmatpush1.msra.mxu0 0.0
    %353 = vmatprep.subr.mxu0 0.0
    %354 = vmatpush1.msra.mxu0 0.0
    %355 = vmatprep.subr.mxu0 0.0
    %356 = vmatpush1.msra.mxu0 0.0
    %357 = vmatprep.subr.mxu0 0.0
    %358 = vmatpush1.msra.mxu0 0.0
    %359 = vmatprep.subr.mxu0 0.0
    %360 = vmatpush1.msra.mxu0 0.0
    %361 = vmatprep.subr.mxu0 0.0
    %362 = vmatpush1.msra.mxu0 0.0
    %363 = vmatprep.mubr.f32.mxu0 0.0
    %364 = vmatmul.mubr.f32.gmra.mrb[0].mxu0 %v297
    %v365 = vpop.f32.mrb[0].mxu0
    %v366 = vadd.f32 0.0, %v365
    %v367 = vpop.f32.mrb[0].mxu0
    %368 = vdwg.mxu0
    %v369 = vadd.f32 %v288, %v366
    %v370 = vxor.u32 %v369, 2147483648
    %v371 = vmul.f32 %v370, 1.442695
    %v372 = vpow.pop %v371
    %v373 = vadd.f32 %v372, 1.0
    %v374 = vrcp.pop %v373
    %v375 = vmul.f32 1.0, %v374
    %v376 = vtanh.pop %v369
    %v377 = vmul.f32 %v375, 0.0
    %379 = vrot.lane.b32.xlu0 %v376, 32
    %v380 = vpop.permute.xlu0 %379
    %v382 = vmul.f32 %v375, %v380
    %384 = vrot.lane.b32.xlu0 %v382, 32
    %v385 = vpop.permute.xlu0 %384
    %v387 = vadd.f32 %v377, %v385
    %v388 = vtanh.pop %v387
    %390 = vrot.lane.b32.xlu0 %v388, 32
    %v391 = vpop.permute.xlu0 %390
    %v393 = vmul.f32 %v375, %v391
    %395 = vrot.lane.b32.xlu0 %v393, 64
    %v396 = vpop.permute.xlu0 %395
    %vm398 = vcmask 254976
    %399 = vst.msk [vmem:[#allocation2] sm:$0x3] %vm398, %v396
    %v400 = vsel %vm195, %v396, 0
    %402 = vmatprep.subr.mxu0 0.0
    %403 = vmatpush1.msra.mxu0 %v198
    %404 = vmatprep.subr.mxu0 0.0
    %405 = vmatpush1.msra.mxu0 %v199
    %406 = vmatprep.subr.mxu0 0.0
    %407 = vmatpush1.msra.mxu0 %v200
    %408 = vmatprep.subr.mxu0 0.0
    %409 = vmatpush1.msra.mxu0 %v201
    %410 = vmatprep.subr.mxu0 0.0
    %411 = vmatpush1.msra.mxu0 0.0
    %412 = vmatprep.subr.mxu0 0.0
    %413 = vmatpush1.msra.mxu0 0.0
    %414 = vmatprep.subr.mxu0 0.0
    %415 = vmatpush1.msra.mxu0 0.0
    %416 = vmatprep.subr.mxu0 0.0
    %417 = vmatpush1.msra.mxu0 0.0
    %418 = vmatprep.subr.mxu0 0.0
    %419 = vmatpush1.msra.mxu0 0.0
    %420 = vmatprep.subr.mxu0 0.0
    %421 = vmatpush1.msra.mxu0 0.0
    %422 = vmatprep.subr.mxu0 0.0
    %423 = vmatpush1.msra.mxu0 0.0
    %424 = vmatprep.subr.mxu0 0.0
    %425 = vmatpush1.msra.mxu0 0.0
    %426 = vmatprep.subr.mxu0 0.0
    %427 = vmatpush1.msra.mxu0 0.0
    %428 = vmatprep.subr.mxu0 0.0
    %429 = vmatpush1.msra.mxu0 0.0
    %430 = vmatprep.subr.mxu0 0.0
    %431 = vmatpush1.msra.mxu0 0.0
    %432 = vmatprep.subr.mxu0 0.0
    %433 = vmatpush1.msra.mxu0 0.0
    %434 = vmatprep.subr.mxu0 0.0
    %435 = vmatpush1.msra.mxu0 0.0
    %436 = vmatprep.subr.mxu0 0.0
    %437 = vmatpush1.msra.mxu0 0.0
    %438 = vmatprep.subr.mxu0 0.0
    %439 = vmatpush1.msra.mxu0 0.0
    %440 = vmatprep.subr.mxu0 0.0
    %441 = vmatpush1.msra.mxu0 0.0
    %442 = vmatprep.subr.mxu0 0.0
    %443 = vmatpush1.msra.mxu0 0.0
    %444 = vmatprep.subr.mxu0 0.0
    %445 = vmatpush1.msra.mxu0 0.0
    %446 = vmatprep.subr.mxu0 0.0
    %447 = vmatpush1.msra.mxu0 0.0
    %448 = vmatprep.subr.mxu0 0.0
    %449 = vmatpush1.msra.mxu0 0.0
    %450 = vmatprep.subr.mxu0 0.0
    %451 = vmatpush1.msra.mxu0 0.0
    %452 = vmatprep.subr.mxu0 0.0
    %453 = vmatpush1.msra.mxu0 0.0
    %454 = vmatprep.subr.mxu0 0.0
    %455 = vmatpush1.msra.mxu0 0.0
    %456 = vmatprep.subr.mxu0 0.0
    %457 = vmatpush1.msra.mxu0 0.0
    %458 = vmatprep.subr.mxu0 0.0
    %459 = vmatpush1.msra.mxu0 0.0
    %460 = vmatprep.subr.mxu0 0.0
    %461 = vmatpush1.msra.mxu0 0.0
    %462 = vmatprep.subr.mxu0 0.0
    %463 = vmatpush1.msra.mxu0 0.0
    %464 = vmatprep.subr.mxu0 0.0
    %465 = vmatpush1.msra.mxu0 0.0
    %466 = vmatprep.mubr.f32.mxu0 0.0
    %467 = vmatmul.mubr.f32.gmra.mrb[0].mxu0 %v400
    %v468 = vpop.f32.mrb[0].mxu0
    %v469 = vadd.f32 0.0, %v468
    %v470 = vpop.f32.mrb[0].mxu0
    %471 = vdwg.mxu0
    %v473 = vrot.slane %v469, 6
    %v475 = vadd.f32 %v288, %v473
    %v476 = vxor.u32 %v475, 2147483648
    %v477 = vmul.f32 %v476, 1.442695
    %v478 = vpow.pop %v477
    %v479 = vadd.f32 %v478, 1.0
    %v480 = vrcp.pop %v479
    %v481 = vmul.f32 1.0, %v480
    %v482 = vtanh.pop %v475
    %v484 = vrot.slane %v387, 6
    %v486 = vmul.f32 %v481, %v484
    %488 = vrot.lane.b32.xlu0 %v482, 32
    %v489 = vpop.permute.xlu0 %488
    %v491 = vmul.f32 %v481, %v489
    %493 = vrot.lane.b32.xlu0 %v491, 32
    %v494 = vpop.permute.xlu0 %493
    %v496 = vadd.f32 %v486, %v494
    %v497 = vtanh.pop %v496
    %499 = vrot.lane.b32.xlu0 %v497, 32
    %v500 = vpop.permute.xlu0 %499
    %v502 = vmul.f32 %v481, %v500
    %504 = vrot.lane.b32.xlu0 %v502, 64
    %v505 = vpop.permute.xlu0 %504
    %vm507 = vcmask 257026
    %508 = vst.msk [vmem:[#allocation2] sm:$0xc] %vm507, %v505
    %v509 = vrot.slane %v502, 2
    %510 = vrot.lane.b32.xlu0 %v509, 64
    %v511 = vpop.permute.xlu0 %510
    %v512 = vsel %vm195, %v511, 0
    %514 = vmatprep.subr.mxu0 0.0
    %515 = vmatpush1.msra.mxu0 %v198
    %516 = vmatprep.subr.mxu0 0.0
    %517 = vmatpush1.msra.mxu0 %v199
    %518 = vmatprep.subr.mxu0 0.0
    %519 = vmatpush1.msra.mxu0 %v200
    %520 = vmatprep.subr.mxu0 0.0
    %521 = vmatpush1.msra.mxu0 %v201
    %522 = vmatprep.subr.mxu0 0.0
    %523 = vmatpush1.msra.mxu0 0.0
    %524 = vmatprep.subr.mxu0 0.0
    %525 = vmatpush1.msra.mxu0 0.0
    %526 = vmatprep.subr.mxu0 0.0
    %527 = vmatpush1.msra.mxu0 0.0
    %528 = vmatprep.subr.mxu0 0.0
    %529 = vmatpush1.msra.mxu0 0.0
    %530 = vmatprep.subr.mxu0 0.0
    %531 = vmatpush1.msra.mxu0 0.0
    %532 = vmatprep.subr.mxu0 0.0
    %533 = vmatpush1.msra.mxu0 0.0
    %534 = vmatprep.subr.mxu0 0.0
    %535 = vmatpush1.msra.mxu0 0.0
    %536 = vmatprep.subr.mxu0 0.0
    %537 = vmatpush1.msra.mxu0 0.0
    %538 = vmatprep.subr.mxu0 0.0
    %539 = vmatpush1.msra.mxu0 0.0
    %540 = vmatprep.subr.mxu0 0.0
    %541 = vmatpush1.msra.mxu0 0.0
    %542 = vmatprep.subr.mxu0 0.0
    %543 = vmatpush1.msra.mxu0 0.0
    %544 = vmatprep.subr.mxu0 0.0
    %545 = vmatpush1.msra.mxu0 0.0
    %546 = vmatprep.subr.mxu0 0.0
    %547 = vmatpush1.msra.mxu0 0.0
    %548 = vmatprep.subr.mxu0 0.0
    %549 = vmatpush1.msra.mxu0 0.0
    %550 = vmatprep.subr.mxu0 0.0
    %551 = vmatpush1.msra.mxu0 0.0
    %552 = vmatprep.subr.mxu0 0.0
    %553 = vmatpush1.msra.mxu0 0.0
    %554 = vmatprep.subr.mxu0 0.0
    %555 = vmatpush1.msra.mxu0 0.0
    %556 = vmatprep.subr.mxu0 0.0
    %557 = vmatpush1.msra.mxu0 0.0
    %558 = vmatprep.subr.mxu0 0.0
    %559 = vmatpush1.msra.mxu0 0.0
    %560 = vmatprep.subr.mxu0 0.0
    %561 = vmatpush1.msra.mxu0 0.0
    %562 = vmatprep.subr.mxu0 0.0
    %563 = vmatpush1.msra.mxu0 0.0
    %564 = vmatprep.subr.mxu0 0.0
    %565 = vmatpush1.msra.mxu0 0.0
    %566 = vmatprep.subr.mxu0 0.0
    %567 = vmatpush1.msra.mxu0 0.0
    %568 = vmatprep.subr.mxu0 0.0
    %569 = vmatpush1.msra.mxu0 0.0
    %570 = vmatprep.subr.mxu0 0.0
    %571 = vmatpush1.msra.mxu0 0.0
    %572 = vmatprep.subr.mxu0 0.0
    %573 = vmatpush1.msra.mxu0 0.0
    %574 = vmatprep.subr.mxu0 0.0
    %575 = vmatpush1.msra.mxu0 0.0
    %576 = vmatprep.subr.mxu0 0.0
    %577 = vmatpush1.msra.mxu0 0.0
    %578 = vmatprep.mubr.f32.mxu0 0.0
    %579 = vmatmul.mubr.f32.gmra.mrb[0].mxu0 %v512
    %v580 = vpop.f32.mrb[0].mxu0
    %v581 = vadd.f32 0.0, %v580
    %v582 = vpop.f32.mrb[0].mxu0
    %583 = vdwg.mxu0
    %v585 = vrot.slane %v581, 4
    %v587 = vadd.f32 %v288, %v585
    %v588 = vxor.u32 %v587, 2147483648
    %v589 = vmul.f32 %v588, 1.442695
    %v590 = vpow.pop %v589
    %v591 = vadd.f32 %v590, 1.0
    %v592 = vrcp.pop %v591
    %v593 = vmul.f32 1.0, %v592
    %v594 = vtanh.pop %v587
    %v596 = vrot.slane %v496, 6
    %v598 = vmul.f32 %v593, %v596
    %600 = vrot.lane.b32.xlu0 %v594, 32
    %v601 = vpop.permute.xlu0 %600
    %v603 = vmul.f32 %v593, %v601
    %605 = vrot.lane.b32.xlu0 %v603, 32
    %v606 = vpop.permute.xlu0 %605
    %v608 = vadd.f32 %v598, %v606
    %v609 = vtanh.pop %v608
    %611 = vrot.lane.b32.xlu0 %v609, 32
    %v612 = vpop.permute.xlu0 %611
    %v614 = vmul.f32 %v593, %v612
    %616 = vrot.lane.b32.xlu0 %v614, 64
    %v617 = vpop.permute.xlu0 %616
    %vm619 = vcmask 259076
    %620 = vst.msk [vmem:[#allocation2] sm:$0x30] %vm619, %v617
    %v621 = vrot.slane %v614, 4
    %622 = vrot.lane.b32.xlu0 %v621, 64
    %v623 = vpop.permute.xlu0 %622
    %v624 = vsel %vm195, %v623, 0
    %626 = vmatprep.subr.mxu0 0.0
    %627 = vmatpush1.msra.mxu0 %v198
    %628 = vmatprep.subr.mxu0 0.0
    %629 = vmatpush1.msra.mxu0 %v199
    %630 = vmatprep.subr.mxu0 0.0
    %631 = vmatpush1.msra.mxu0 %v200
    %632 = vmatprep.subr.mxu0 0.0
    %633 = vmatpush1.msra.mxu0 %v201
    %634 = vmatprep.subr.mxu0 0.0
    %635 = vmatpush1.msra.mxu0 0.0
    %636 = vmatprep.subr.mxu0 0.0
    %637 = vmatpush1.msra.mxu0 0.0
    %638 = vmatprep.subr.mxu0 0.0
    %639 = vmatpush1.msra.mxu0 0.0
    %640 = vmatprep.subr.mxu0 0.0
    %641 = vmatpush1.msra.mxu0 0.0
    %642 = vmatprep.subr.mxu0 0.0
    %643 = vmatpush1.msra.mxu0 0.0
    %644 = vmatprep.subr.mxu0 0.0
    %645 = vmatpush1.msra.mxu0 0.0
    %646 = vmatprep.subr.mxu0 0.0
    %647 = vmatpush1.msra.mxu0 0.0
    %648 = vmatprep.subr.mxu0 0.0
    %649 = vmatpush1.msra.mxu0 0.0
    %650 = vmatprep.subr.mxu0 0.0
    %651 = vmatpush1.msra.mxu0 0.0
    %652 = vmatprep.subr.mxu0 0.0
    %653 = vmatpush1.msra.mxu0 0.0
    %654 = vmatprep.subr.mxu0 0.0
    %655 = vmatpush1.msra.mxu0 0.0
    %656 = vmatprep.subr.mxu0 0.0
    %657 = vmatpush1.msra.mxu0 0.0
    %658 = vmatprep.subr.mxu0 0.0
    %659 = vmatpush1.msra.mxu0 0.0
    %660 = vmatprep.subr.mxu0 0.0
    %661 = vmatpush1.msra.mxu0 0.0
    %662 = vmatprep.subr.mxu0 0.0
    %663 = vmatpush1.msra.mxu0 0.0
    %664 = vmatprep.subr.mxu0 0.0
    %665 = vmatpush1.msra.mxu0 0.0
    %666 = vmatprep.subr.mxu0 0.0
    %667 = vmatpush1.msra.mxu0 0.0
    %668 = vmatprep.subr.mxu0 0.0
    %669 = vmatpush1.msra.mxu0 0.0
    %670 = vmatprep.subr.mxu0 0.0
    %671 = vmatpush1.msra.mxu0 0.0
    %672 = vmatprep.subr.mxu0 0.0
    %673 = vmatpush1.msra.mxu0 0.0
    %674 = vmatprep.subr.mxu0 0.0
    %675 = vmatpush1.msra.mxu0 0.0
    %676 = vmatprep.subr.mxu0 0.0
    %677 = vmatpush1.msra.mxu0 0.0
    %678 = vmatprep.subr.mxu0 0.0
    %679 = vmatpush1.msra.mxu0 0.0
    %680 = vmatprep.subr.mxu0 0.0
    %681 = vmatpush1.msra.mxu0 0.0
    %682 = vmatprep.subr.mxu0 0.0
    %683 = vmatpush1.msra.mxu0 0.0
    %684 = vmatprep.subr.mxu0 0.0
    %685 = vmatpush1.msra.mxu0 0.0
    %686 = vmatprep.subr.mxu0 0.0
    %687 = vmatpush1.msra.mxu0 0.0
    %688 = vmatprep.subr.mxu0 0.0
    %689 = vmatpush1.msra.mxu0 0.0
    %690 = vmatprep.mubr.f32.mxu0 0.0
    %691 = vmatmul.mubr.f32.gmra.mrb[0].mxu0 %v624
    %v692 = vpop.f32.mrb[0].mxu0
    %v693 = vadd.f32 0.0, %v692
    %v694 = vpop.f32.mrb[0].mxu0
    %695 = vdwg.mxu0
    %v697 = vrot.slane %v693, 2
    %v699 = vadd.f32 %v288, %v697
    %v700 = vxor.u32 %v699, 2147483648
    %v701 = vmul.f32 %v700, 1.442695
    %v702 = vpow.pop %v701
    %v703 = vadd.f32 %v702, 1.0
    %v704 = vrcp.pop %v703
    %v705 = vmul.f32 1.0, %v704
    %v706 = vtanh.pop %v699
    %v708 = vrot.slane %v608, 6
    %v710 = vmul.f32 %v705, %v708
    %712 = vrot.lane.b32.xlu0 %v706, 32
    %v713 = vpop.permute.xlu0 %712
    %v715 = vmul.f32 %v705, %v713
    %717 = vrot.lane.b32.xlu0 %v715, 32
    %v718 = vpop.permute.xlu0 %717
    %v720 = vadd.f32 %v710, %v718
    %v721 = vtanh.pop %v720
    %723 = vrot.lane.b32.xlu0 %v721, 32
    %v724 = vpop.permute.xlu0 %723
    %v726 = vmul.f32 %v705, %v724
    %728 = vrot.lane.b32.xlu0 %v726, 64
    %v729 = vpop.permute.xlu0 %728
    %vm731 = vcmask 261126
    %732 = vst.msk [vmem:[#allocation2] sm:$0xc0] %vm731, %v729
    %v733 = vrot.slane %v726, 6
    %734 = vrot.lane.b32.xlu0 %v733, 64
    %v735 = vpop.permute.xlu0 %734
    %v736 = vsel %vm195, %v735, 0
    %738 = vmatprep.subr.mxu0 0.0
    %739 = vmatpush1.msra.mxu0 %v198
    %740 = vmatprep.subr.mxu0 0.0
    %741 = vmatpush1.msra.mxu0 %v199
    %742 = vmatprep.subr.mxu0 0.0
    %743 = vmatpush1.msra.mxu0 %v200
    %744 = vmatprep.subr.mxu0 0.0
    %745 = vmatpush1.msra.mxu0 %v201
    %746 = vmatprep.subr.mxu0 0.0
    %747 = vmatpush1.msra.mxu0 0.0
    %748 = vmatprep.subr.mxu0 0.0
    %749 = vmatpush1.msra.mxu0 0.0
    %750 = vmatprep.subr.mxu0 0.0
    %751 = vmatpush1.msra.mxu0 0.0
    %752 = vmatprep.subr.mxu0 0.0
    %753 = vmatpush1.msra.mxu0 0.0
    %754 = vmatprep.subr.mxu0 0.0
    %755 = vmatpush1.msra.mxu0 0.0
    %756 = vmatprep.subr.mxu0 0.0
    %757 = vmatpush1.msra.mxu0 0.0
    %758 = vmatprep.subr.mxu0 0.0
    %759 = vmatpush1.msra.mxu0 0.0
    %760 = vmatprep.subr.mxu0 0.0
    %761 = vmatpush1.msra.mxu0 0.0
    %762 = vmatprep.subr.mxu0 0.0
    %763 = vmatpush1.msra.mxu0 0.0
    %764 = vmatprep.subr.mxu0 0.0
    %765 = vmatpush1.msra.mxu0 0.0
    %766 = vmatprep.subr.mxu0 0.0
    %767 = vmatpush1.msra.mxu0 0.0
    %768 = vmatprep.subr.mxu0 0.0
    %769 = vmatpush1.msra.mxu0 0.0
    %770 = vmatprep.subr.mxu0 0.0
    %771 = vmatpush1.msra.mxu0 0.0
    %772 = vmatprep.subr.mxu0 0.0
    %773 = vmatpush1.msra.mxu0 0.0
    %774 = vmatprep.subr.mxu0 0.0
    %775 = vmatpush1.msra.mxu0 0.0
    %776 = vmatprep.subr.mxu0 0.0
    %777 = vmatpush1.msra.mxu0 0.0
    %778 = vmatprep.subr.mxu0 0.0
    %779 = vmatpush1.msra.mxu0 0.0
    %780 = vmatprep.subr.mxu0 0.0
    %781 = vmatpush1.msra.mxu0 0.0
    %782 = vmatprep.subr.mxu0 0.0
    %783 = vmatpush1.msra.mxu0 0.0
    %784 = vmatprep.subr.mxu0 0.0
    %785 = vmatpush1.msra.mxu0 0.0
    %786 = vmatprep.subr.mxu0 0.0
    %787 = vmatpush1.msra.mxu0 0.0
    %788 = vmatprep.subr.mxu0 0.0
    %789 = vmatpush1.msra.mxu0 0.0
    %790 = vmatprep.subr.mxu0 0.0
    %791 = vmatpush1.msra.mxu0 0.0
    %792 = vmatprep.subr.mxu0 0.0
    %793 = vmatpush1.msra.mxu0 0.0
    %794 = vmatprep.subr.mxu0 0.0
    %795 = vmatpush1.msra.mxu0 0.0
    %796 = vmatprep.subr.mxu0 0.0
    %797 = vmatpush1.msra.mxu0 0.0
    %798 = vmatprep.subr.mxu0 0.0
    %799 = vmatpush1.msra.mxu0 0.0
    %800 = vmatprep.subr.mxu0 0.0
    %801 = vmatpush1.msra.mxu0 0.0
    %802 = vmatprep.mubr.f32.mxu0 0.0
    %803 = vmatmul.mubr.f32.gmra.mrb[0].mxu0 %v736
    %v804 = vpop.f32.mrb[0].mxu0
    %v805 = vadd.f32 0.0, %v804
    %v806 = vpop.f32.mrb[0].mxu0
    %807 = vdwg.mxu0
    %v808 = vadd.f32 %v293, %v805
    %v809 = vxor.u32 %v808, 2147483648
    %v810 = vmul.f32 %v809, 1.442695
    %v811 = vpow.pop %v810
    %v812 = vadd.f32 %v811, 1.0
    %v813 = vrcp.pop %v812
    %v814 = vmul.f32 1.0, %v813
    %v815 = vtanh.pop %v808
    %v817 = vrot.slane %v720, 6
    %v819 = vmul.f32 %v814, %v817
    %821 = vrot.lane.b32.xlu0 %v815, 32
    %v822 = vpop.permute.xlu0 %821
    %v824 = vmul.f32 %v814, %v822
    %826 = vrot.lane.b32.xlu0 %v824, 32
    %v827 = vpop.permute.xlu0 %826
    %v829 = vadd.f32 %v819, %v827
    %v830 = vtanh.pop %v829
    %832 = vrot.lane.b32.xlu0 %v830, 32
    %v833 = vpop.permute.xlu0 %832
    %v835 = vmul.f32 %v814, %v833
    %837 = vrot.lane.b32.xlu0 %v835, 64
    %v838 = vpop.permute.xlu0 %837
    %840 = vst.msk [vmem:[#allocation2 + $0x8] sm:$0x3] %vm398, %v838
    %v841 = vsel %vm195, %v838, 0
    %843 = vmatprep.subr.mxu0 0.0
    %844 = vmatpush1.msra.mxu0 %v198
    %845 = vmatprep.subr.mxu0 0.0
    %846 = vmatpush1.msra.mxu0 %v199
    %847 = vmatprep.subr.mxu0 0.0
    %848 = vmatpush1.msra.mxu0 %v200
    %849 = vmatprep.subr.mxu0 0.0
    %850 = vmatpush1.msra.mxu0 %v201
    %851 = vmatprep.subr.mxu0 0.0
    %852 = vmatpush1.msra.mxu0 0.0
    %853 = vmatprep.subr.mxu0 0.0
    %854 = vmatpush1.msra.mxu0 0.0
    %855 = vmatprep.subr.mxu0 0.0
    %856 = vmatpush1.msra.mxu0 0.0
    %857 = vmatprep.subr.mxu0 0.0
    %858 = vmatpush1.msra.mxu0 0.0
    %859 = vmatprep.subr.mxu0 0.0
    %860 = vmatpush1.msra.mxu0 0.0
    %861 = vmatprep.subr.mxu0 0.0
    %862 = vmatpush1.msra.mxu0 0.0
    %863 = vmatprep.subr.mxu0 0.0
    %864 = vmatpush1.msra.mxu0 0.0
    %865 = vmatprep.subr.mxu0 0.0
    %866 = vmatpush1.msra.mxu0 0.0
    %867 = vmatprep.subr.mxu0 0.0
    %868 = vmatpush1.msra.mxu0 0.0
    %869 = vmatprep.subr.mxu0 0.0
    %870 = vmatpush1.msra.mxu0 0.0
    %871 = vmatprep.subr.mxu0 0.0
    %872 = vmatpush1.msra.mxu0 0.0
    %873 = vmatprep.subr.mxu0 0.0
    %874 = vmatpush1.msra.mxu0 0.0
    %875 = vmatprep.subr.mxu0 0.0
    %876 = vmatpush1.msra.mxu0 0.0
    %877 = vmatprep.subr.mxu0 0.0
    %878 = vmatpush1.msra.mxu0 0.0
    %879 = vmatprep.subr.mxu0 0.0
    %880 = vmatpush1.msra.mxu0 0.0
    %881 = vmatprep.subr.mxu0 0.0
    %882 = vmatpush1.msra.mxu0 0.0
    %883 = vmatprep.subr.mxu0 0.0
    %884 = vmatpush1.msra.mxu0 0.0
    %885 = vmatprep.subr.mxu0 0.0
    %886 = vmatpush1.msra.mxu0 0.0
    %887 = vmatprep.subr.mxu0 0.0
    %888 = vmatpush1.msra.mxu0 0.0
    %889 = vmatprep.subr.mxu0 0.0
    %890 = vmatpush1.msra.mxu0 0.0
    %891 = vmatprep.subr.mxu0 0.0
    %892 = vmatpush1.msra.mxu0 0.0
    %893 = vmatprep.subr.mxu0 0.0
    %894 = vmatpush1.msra.mxu0 0.0
    %895 = vmatprep.subr.mxu0 0.0
    %896 = vmatpush1.msra.mxu0 0.0
    %897 = vmatprep.subr.mxu0 0.0
    %898 = vmatpush1.msra.mxu0 0.0
    %899 = vmatprep.subr.mxu0 0.0
    %900 = vmatpush1.msra.mxu0 0.0
    %901 = vmatprep.subr.mxu0 0.0
    %902 = vmatpush1.msra.mxu0 0.0
    %903 = vmatprep.subr.mxu0 0.0
    %904 = vmatpush1.msra.mxu0 0.0
    %905 = vmatprep.subr.mxu0 0.0
    %906 = vmatpush1.msra.mxu0 0.0
    %907 = vmatprep.mubr.f32.mxu0 0.0
    %908 = vmatmul.mubr.f32.gmra.mrb[0].mxu0 %v841
    %v909 = vpop.f32.mrb[0].mxu0
    %v910 = vadd.f32 0.0, %v909
    %v911 = vpop.f32.mrb[0].mxu0
    %912 = vdwg.mxu0
    %v914 = vrot.slane %v910, 6
    %v916 = vadd.f32 %v293, %v914
    %v917 = vxor.u32 %v916, 2147483648
    %v918 = vmul.f32 %v917, 1.442695
    %v919 = vpow.pop %v918
    %v920 = vadd.f32 %v919, 1.0
    %v921 = vrcp.pop %v920
    %v922 = vmul.f32 1.0, %v921
    %v923 = vtanh.pop %v916
    %v925 = vrot.slane %v829, 6
    %v927 = vmul.f32 %v922, %v925
    %929 = vrot.lane.b32.xlu0 %v923, 32
    %v930 = vpop.permute.xlu0 %929
    %v932 = vmul.f32 %v922, %v930
    %934 = vrot.lane.b32.xlu0 %v932, 32
    %v935 = vpop.permute.xlu0 %934
    %v937 = vadd.f32 %v927, %v935
    %v938 = vtanh.pop %v937
    %940 = vrot.lane.b32.xlu0 %v938, 32
    %v941 = vpop.permute.xlu0 %940
    %v943 = vmul.f32 %v922, %v941
    %945 = vrot.lane.b32.xlu0 %v943, 64
    %v946 = vpop.permute.xlu0 %945
    %948 = vst.msk [vmem:[#allocation2 + $0x8] sm:$0xc] %vm507, %v946
    %v949 = vrot.slane %v943, 2
    %950 = vrot.lane.b32.xlu0 %v949, 64
    %v951 = vpop.permute.xlu0 %950
    %v952 = vsel %vm195, %v951, 0
    %954 = vmatprep.subr.mxu0 0.0
    %955 = vmatpush1.msra.mxu0 %v198
    %956 = vmatprep.subr.mxu0 0.0
    %957 = vmatpush1.msra.mxu0 %v199
    %958 = vmatprep.subr.mxu0 0.0
    %959 = vmatpush1.msra.mxu0 %v200
    %960 = vmatprep.subr.mxu0 0.0
    %961 = vmatpush1.msra.mxu0 %v201
    %962 = vmatprep.subr.mxu0 0.0
    %963 = vmatpush1.msra.mxu0 0.0
    %964 = vmatprep.subr.mxu0 0.0
    %965 = vmatpush1.msra.mxu0 0.0
    %966 = vmatprep.subr.mxu0 0.0
    %967 = vmatpush1.msra.mxu0 0.0
    %968 = vmatprep.subr.mxu0 0.0
    %969 = vmatpush1.msra.mxu0 0.0
    %970 = vmatprep.subr.mxu0 0.0
    %971 = vmatpush1.msra.mxu0 0.0
    %972 = vmatprep.subr.mxu0 0.0
    %973 = vmatpush1.msra.mxu0 0.0
    %974 = vmatprep.subr.mxu0 0.0
    %975 = vmatpush1.msra.mxu0 0.0
    %976 = vmatprep.subr.mxu0 0.0
    %977 = vmatpush1.msra.mxu0 0.0
    %978 = vmatprep.subr.mxu0 0.0
    %979 = vmatpush1.msra.mxu0 0.0
    %980 = vmatprep.subr.mxu0 0.0
    %981 = vmatpush1.msra.mxu0 0.0
    %982 = vmatprep.subr.mxu0 0.0
    %983 = vmatpush1.msra.mxu0 0.0
    %984 = vmatprep.subr.mxu0 0.0
    %985 = vmatpush1.msra.mxu0 0.0
    %986 = vmatprep.subr.mxu0 0.0
    %987 = vmatpush1.msra.mxu0 0.0
    %988 = vmatprep.subr.mxu0 0.0
    %989 = vmatpush1.msra.mxu0 0.0
    %990 = vmatprep.subr.mxu0 0.0
    %991 = vmatpush1.msra.mxu0 0.0
    %992 = vmatprep.subr.mxu0 0.0
    %993 = vmatpush1.msra.mxu0 0.0
    %994 = vmatprep.subr.mxu0 0.0
    %995 = vmatpush1.msra.mxu0 0.0
    %996 = vmatprep.subr.mxu0 0.0
    %997 = vmatpush1.msra.mxu0 0.0
    %998 = vmatprep.subr.mxu0 0.0
    %999 = vmatpush1.msra.mxu0 0.0
    %1000 = vmatprep.subr.mxu0 0.0
    %1001 = vmatpush1.msra.mxu0 0.0
    %1002 = vmatprep.subr.mxu0 0.0
    %1003 = vmatpush1.msra.mxu0 0.0
    %1004 = vmatprep.subr.mxu0 0.0
    %1005 = vmatpush1.msra.mxu0 0.0
    %1006 = vmatprep.subr.mxu0 0.0
    %1007 = vmatpush1.msra.mxu0 0.0
    %1008 = vmatprep.subr.mxu0 0.0
    %1009 = vmatpush1.msra.mxu0 0.0
    %1010 = vmatprep.subr.mxu0 0.0
    %1011 = vmatpush1.msra.mxu0 0.0
    %1012 = vmatprep.subr.mxu0 0.0
    %1013 = vmatpush1.msra.mxu0 0.0
    %1014 = vmatprep.subr.mxu0 0.0
    %1015 = vmatpush1.msra.mxu0 0.0
    %1016 = vmatprep.subr.mxu0 0.0
    %1017 = vmatpush1.msra.mxu0 0.0
    %1018 = vmatprep.mubr.f32.mxu0 0.0
    %1019 = vmatmul.mubr.f32.gmra.mrb[0].mxu0 %v952
    %v1020 = vpop.f32.mrb[0].mxu0
    %v1021 = vadd.f32 0.0, %v1020
    %v1022 = vpop.f32.mrb[0].mxu0
    %1023 = vdwg.mxu0
    %v1025 = vrot.slane %v1021, 4
    %v1027 = vadd.f32 %v293, %v1025
    %v1028 = vxor.u32 %v1027, 2147483648
    %v1029 = vmul.f32 %v1028, 1.442695
    %v1030 = vpow.pop %v1029
    %v1031 = vadd.f32 %v1030, 1.0
    %v1032 = vrcp.pop %v1031
    %v1033 = vmul.f32 1.0, %v1032
    %v1034 = vtanh.pop %v1027
    %v1036 = vrot.slane %v937, 6
    %v1038 = vmul.f32 %v1033, %v1036
    %1040 = vrot.lane.b32.xlu0 %v1034, 32
    %v1041 = vpop.permute.xlu0 %1040
    %v1043 = vmul.f32 %v1033, %v1041
    %1045 = vrot.lane.b32.xlu0 %v1043, 32
    %v1046 = vpop.permute.xlu0 %1045
    %v1048 = vadd.f32 %v1038, %v1046
    %v1049 = vtanh.pop %v1048
    %1051 = vrot.lane.b32.xlu0 %v1049, 32
    %v1052 = vpop.permute.xlu0 %1051
    %v1054 = vmul.f32 %v1033, %v1052
    %1056 = vrot.lane.b32.xlu0 %v1054, 64
    %v1057 = vpop.permute.xlu0 %1056
    %1059 = vst.msk [vmem:[#allocation2 + $0x8] sm:$0x30] %vm619, %v1057
    %v1060 = vrot.slane %v1054, 4
    %1061 = vrot.lane.b32.xlu0 %v1060, 64
    %v1062 = vpop.permute.xlu0 %1061
    %v1063 = vsel %vm195, %v1062, 0
    %1065 = vmatprep.subr.mxu0 0.0
    %1066 = vmatpush1.msra.mxu0 %v198
    %1067 = vmatprep.subr.mxu0 0.0
    %1068 = vmatpush1.msra.mxu0 %v199
    %1069 = vmatprep.subr.mxu0 0.0
    %1070 = vmatpush1.msra.mxu0 %v200
    %1071 = vmatprep.subr.mxu0 0.0
    %1072 = vmatpush1.msra.mxu0 %v201
    %1073 = vmatprep.subr.mxu0 0.0
    %1074 = vmatpush1.msra.mxu0 0.0
    %1075 = vmatprep.subr.mxu0 0.0
    %1076 = vmatpush1.msra.mxu0 0.0
    %1077 = vmatprep.subr.mxu0 0.0
    %1078 = vmatpush1.msra.mxu0 0.0
    %1079 = vmatprep.subr.mxu0 0.0
    %1080 = vmatpush1.msra.mxu0 0.0
    %1081 = vmatprep.subr.mxu0 0.0
    %1082 = vmatpush1.msra.mxu0 0.0
    %1083 = vmatprep.subr.mxu0 0.0
    %1084 = vmatpush1.msra.mxu0 0.0
    %1085 = vmatprep.subr.mxu0 0.0
    %1086 = vmatpush1.msra.mxu0 0.0
    %1087 = vmatprep.subr.mxu0 0.0
    %1088 = vmatpush1.msra.mxu0 0.0
    %1089 = vmatprep.subr.mxu0 0.0
    %1090 = vmatpush1.msra.mxu0 0.0
    %1091 = vmatprep.subr.mxu0 0.0
    %1092 = vmatpush1.msra.mxu0 0.0
    %1093 = vmatprep.subr.mxu0 0.0
    %1094 = vmatpush1.msra.mxu0 0.0
    %1095 = vmatprep.subr.mxu0 0.0
    %1096 = vmatpush1.msra.mxu0 0.0
    %1097 = vmatprep.subr.mxu0 0.0
    %1098 = vmatpush1.msra.mxu0 0.0
    %1099 = vmatprep.subr.mxu0 0.0
    %1100 = vmatpush1.msra.mxu0 0.0
    %1101 = vmatprep.subr.mxu0 0.0
    %1102 = vmatpush1.msra.mxu0 0.0
    %1103 = vmatprep.subr.mxu0 0.0
    %1104 = vmatpush1.msra.mxu0 0.0
    %1105 = vmatprep.subr.mxu0 0.0
    %1106 = vmatpush1.msra.mxu0 0.0
    %1107 = vmatprep.subr.mxu0 0.0
    %1108 = vmatpush1.msra.mxu0 0.0
    %1109 = vmatprep.subr.mxu0 0.0
    %1110 = vmatpush1.msra.mxu0 0.0
    %1111 = vmatprep.subr.mxu0 0.0
    %1112 = vmatpush1.msra.mxu0 0.0
    %1113 = vmatprep.subr.mxu0 0.0
    %1114 = vmatpush1.msra.mxu0 0.0
    %1115 = vmatprep.subr.mxu0 0.0
    %1116 = vmatpush1.msra.mxu0 0.0
    %1117 = vmatprep.subr.mxu0 0.0
    %1118 = vmatpush1.msra.mxu0 0.0
    %1119 = vmatprep.subr.mxu0 0.0
    %1120 = vmatpush1.msra.mxu0 0.0
    %1121 = vmatprep.subr.mxu0 0.0
    %1122 = vmatpush1.msra.mxu0 0.0
    %1123 = vmatprep.subr.mxu0 0.0
    %1124 = vmatpush1.msra.mxu0 0.0
    %1125 = vmatprep.subr.mxu0 0.0
    %1126 = vmatpush1.msra.mxu0 0.0
    %1127 = vmatprep.subr.mxu0 0.0
    %1128 = vmatpush1.msra.mxu0 0.0
    %1129 = vmatprep.mubr.f32.mxu0 0.0
    %1130 = vmatmul.mubr.f32.gmra.mrb[0].mxu0 %v1063
    %v1131 = vpop.f32.mrb[0].mxu0
    %v1132 = vadd.f32 0.0, %v1131
    %v1133 = vpop.f32.mrb[0].mxu0
    %1134 = vdwg.mxu0
    %v1136 = vrot.slane %v1132, 2
    %v1138 = vadd.f32 %v293, %v1136
    %v1139 = vxor.u32 %v1138, 2147483648
    %v1140 = vmul.f32 %v1139, 1.442695
    %v1141 = vpow.pop %v1140
    %v1142 = vadd.f32 %v1141, 1.0
    %v1143 = vrcp.pop %v1142
    %v1144 = vmul.f32 1.0, %v1143
    %v1145 = vtanh.pop %v1138
    %v1147 = vrot.slane %v1048, 6
    %v1149 = vmul.f32 %v1144, %v1147
    %1151 = vrot.lane.b32.xlu0 %v1145, 32
    %v1152 = vpop.permute.xlu0 %1151
    %v1154 = vmul.f32 %v1144, %v1152
    %1156 = vrot.lane.b32.xlu0 %v1154, 32
    %v1157 = vpop.permute.xlu0 %1156
    %v1159 = vadd.f32 %v1149, %v1157
    %v1160 = vtanh.pop %v1159
    %1162 = vrot.lane.b32.xlu0 %v1160, 32
    %v1163 = vpop.permute.xlu0 %1162
    %v1165 = vmul.f32 %v1144, %v1163
    %1167 = vrot.lane.b32.xlu0 %v1165, 64
    %v1168 = vpop.permute.xlu0 %1167
    %1170 = vst.msk [vmem:[#allocation2 + $0x8] sm:$0xc0] %vm731, %v1168
    %s1171 = scalar_lea.vmem %s3, 32
    %v1172 = vld [vmem:[%s1171] sm:$0xff]
    %v1173 = vld [vmem:[%s1171 + $0x8] sm:$0xff]
    %v1174 = vld [vmem:[%s1171 + $0x10] sm:$0xff]
    %v1175 = vld [vmem:[%s1171 + $0x18] sm:$0xff]
    %v1176 = vld [vmem:[#allocation2] sm:$0xff]
    %v1177 = vld [vmem:[#allocation2 + $0x8] sm:$0xff]
    %s1178 = scalar_lea.vmem [#allocation6], 32
    %v1179 = vld [vmem:[%s1178] sm:$0xff]
    %v1180 = vld [vmem:[%s1178 + $0x8] sm:$0xff]
    %v1181 = vld [vmem:[%s1178 + $0x10] sm:$0xff]
    %v1182 = vld [vmem:[%s1178 + $0x18] sm:$0xff]
    %s1183 = scalar_lea.vmem %s4, 1
    %v1184 = vld [vmem:[%s1183] sm:$0x1]
    %v1186 = vlaneseq
    %v1187 = vshrl.u32 %v1186, 7
    %v1188 = vsub.s32 0, %v1187
    %v1189 = vrot.slane %v1184, %v1188
    %v1192 = vsel %vm195, %v1176, 0
    %v1195 = vsel %vm195, %v1177, 0
    %1197 = vmatprep.subr.mxu0 0.0
    %1198 = vmatpush1.msra.mxu0 %v1179
    %1199 = vmatprep.subr.mxu0 0.0
    %1200 = vmatpush1.msra.mxu0 %v1180
    %1201 = vmatprep.subr.mxu0 0.0
    %1202 = vmatpush1.msra.mxu0 %v1181
    %1203 = vmatprep.subr.mxu0 0.0
    %1204 = vmatpush1.msra.mxu0 %v1182
    %1205 = vmatprep.subr.mxu0 0.0
    %1206 = vmatpush1.msra.mxu0 0.0
    %1207 = vmatprep.subr.mxu0 0.0
    %1208 = vmatpush1.msra.mxu0 0.0
    %1209 = vmatprep.subr.mxu0 0.0
    %1210 = vmatpush1.msra.mxu0 0.0
    %1211 = vmatprep.subr.mxu0 0.0
    %1212 = vmatpush1.msra.mxu0 0.0
    %1213 = vmatprep.subr.mxu0 0.0
    %1214 = vmatpush1.msra.mxu0 0.0
    %1215 = vmatprep.subr.mxu0 0.0
    %1216 = vmatpush1.msra.mxu0 0.0
    %1217 = vmatprep.subr.mxu0 0.0
    %1218 = vmatpush1.msra.mxu0 0.0
    %1219 = vmatprep.subr.mxu0 0.0
    %1220 = vmatpush1.msra.mxu0 0.0
    %1221 = vmatprep.subr.mxu0 0.0
    %1222 = vmatpush1.msra.mxu0 0.0
    %1223 = vmatprep.subr.mxu0 0.0
    %1224 = vmatpush1.msra.mxu0 0.0
    %1225 = vmatprep.subr.mxu0 0.0
    %1226 = vmatpush1.msra.mxu0 0.0
    %1227 = vmatprep.subr.mxu0 0.0
    %1228 = vmatpush1.msra.mxu0 0.0
    %1229 = vmatprep.subr.mxu0 0.0
    %1230 = vmatpush1.msra.mxu0 0.0
    %1231 = vmatprep.subr.mxu0 0.0
    %1232 = vmatpush1.msra.mxu0 0.0
    %1233 = vmatprep.subr.mxu0 0.0
    %1234 = vmatpush1.msra.mxu0 0.0
    %1235 = vmatprep.subr.mxu0 0.0
    %1236 = vmatpush1.msra.mxu0 0.0
    %1237 = vmatprep.subr.mxu0 0.0
    %1238 = vmatpush1.msra.mxu0 0.0
    %1239 = vmatprep.subr.mxu0 0.0
    %1240 = vmatpush1.msra.mxu0 0.0
    %1241 = vmatprep.subr.mxu0 0.0
    %1242 = vmatpush1.msra.mxu0 0.0
    %1243 = vmatprep.subr.mxu0 0.0
    %1244 = vmatpush1.msra.mxu0 0.0
    %1245 = vmatprep.subr.mxu0 0.0
    %1246 = vmatpush1.msra.mxu0 0.0
    %1247 = vmatprep.subr.mxu0 0.0
    %1248 = vmatpush1.msra.mxu0 0.0
    %1249 = vmatprep.subr.mxu0 0.0
    %1250 = vmatpush1.msra.mxu0 0.0
    %1251 = vmatprep.subr.mxu0 0.0
    %1252 = vmatpush1.msra.mxu0 0.0
    %1253 = vmatprep.subr.mxu0 0.0
    %1254 = vmatpush1.msra.mxu0 0.0
    %1255 = vmatprep.subr.mxu0 0.0
    %1256 = vmatpush1.msra.mxu0 0.0
    %1257 = vmatprep.subr.mxu0 0.0
    %1258 = vmatpush1.msra.mxu0 0.0
    %1259 = vmatprep.subr.mxu0 0.0
    %1260 = vmatpush1.msra.mxu0 0.0
    %1261 = vmatprep.mubr.f32.mxu0 0.0
    %1262 = vmatmul.mubr.f32.gmra.mrb[0].mxu0 %v1192
    %v1263 = vpop.f32.mrb[0].mxu0
    %v1264 = vadd.f32 %v1189, %v1263
    %v1265 = vpop.f32.mrb[0].mxu0
    %1266 = vmatprep.mubr.f32.mxu0 0.0
    %1267 = vmatmul.mubr.f32.gmra.mrb[0].mxu0 %v1195
    %v1268 = vpop.f32.mrb[0].mxu0
    %v1269 = vadd.f32 %v1189, %v1268
    %v1270 = vpop.f32.mrb[0].mxu0
    %1271 = vdwg.mxu0
    %1272 = vmatprep.subr.mxu0 0.0
    %1273 = vmatpush1.msra.mxu0 %v1172
    %1274 = vmatprep.subr.mxu0 0.0
    %1275 = vmatpush1.msra.mxu0 %v1173
    %1276 = vmatprep.subr.mxu0 0.0
    %1277 = vmatpush1.msra.mxu0 %v1174
    %1278 = vmatprep.subr.mxu0 0.0
    %1279 = vmatpush1.msra.mxu0 %v1175
    %1280 = vmatprep.subr.mxu0 0.0
    %1281 = vmatpush1.msra.mxu0 0.0
    %1282 = vmatprep.subr.mxu0 0.0
    %1283 = vmatpush1.msra.mxu0 0.0
    %1284 = vmatprep.subr.mxu0 0.0
    %1285 = vmatpush1.msra.mxu0 0.0
    %1286 = vmatprep.subr.mxu0 0.0
    %1287 = vmatpush1.msra.mxu0 0.0
    %1288 = vmatprep.subr.mxu0 0.0
    %1289 = vmatpush1.msra.mxu0 0.0
    %1290 = vmatprep.subr.mxu0 0.0
    %1291 = vmatpush1.msra.mxu0 0.0
    %1292 = vmatprep.subr.mxu0 0.0
    %1293 = vmatpush1.msra.mxu0 0.0
    %1294 = vmatprep.subr.mxu0 0.0
    %1295 = vmatpush1.msra.mxu0 0.0
    %1296 = vmatprep.subr.mxu0 0.0
    %1297 = vmatpush1.msra.mxu0 0.0
    %1298 = vmatprep.subr.mxu0 0.0
    %1299 = vmatpush1.msra.mxu0 0.0
    %1300 = vmatprep.subr.mxu0 0.0
    %1301 = vmatpush1.msra.mxu0 0.0
    %1302 = vmatprep.subr.mxu0 0.0
    %1303 = vmatpush1.msra.mxu0 0.0
    %1304 = vmatprep.subr.mxu0 0.0
    %1305 = vmatpush1.msra.mxu0 0.0
    %1306 = vmatprep.subr.mxu0 0.0
    %1307 = vmatpush1.msra.mxu0 0.0
    %1308 = vmatprep.subr.mxu0 0.0
    %1309 = vmatpush1.msra.mxu0 0.0
    %1310 = vmatprep.subr.mxu0 0.0
    %1311 = vmatpush1.msra.mxu0 0.0
    %1312 = vmatprep.subr.mxu0 0.0
    %1313 = vmatpush1.msra.mxu0 0.0
    %1314 = vmatprep.subr.mxu0 0.0
    %1315 = vmatpush1.msra.mxu0 0.0
    %1316 = vmatprep.subr.mxu0 0.0
    %1317 = vmatpush1.msra.mxu0 0.0
    %1318 = vmatprep.subr.mxu0 0.0
    %1319 = vmatpush1.msra.mxu0 0.0
    %1320 = vmatprep.subr.mxu0 0.0
    %1321 = vmatpush1.msra.mxu0 0.0
    %1322 = vmatprep.subr.mxu0 0.0
    %1323 = vmatpush1.msra.mxu0 0.0
    %1324 = vmatprep.subr.mxu0 0.0
    %1325 = vmatpush1.msra.mxu0 0.0
    %1326 = vmatprep.subr.mxu0 0.0
    %1327 = vmatpush1.msra.mxu0 0.0
    %1328 = vmatprep.subr.mxu0 0.0
    %1329 = vmatpush1.msra.mxu0 0.0
    %1330 = vmatprep.subr.mxu0 0.0
    %1331 = vmatpush1.msra.mxu0 0.0
    %1332 = vmatprep.subr.mxu0 0.0
    %1333 = vmatpush1.msra.mxu0 0.0
    %1334 = vmatprep.subr.mxu0 0.0
    %1335 = vmatpush1.msra.mxu0 0.0
    %1336 = vmatprep.mubr.f32.mxu0 0.0
    %1337 = vmatmul.mubr.f32.gmra.mrb[0].mxu0 %v297
    %v1338 = vpop.f32.mrb[0].mxu0
    %v1339 = vadd.f32 0.0, %v1338
    %v1340 = vpop.f32.mrb[0].mxu0
    %1341 = vdwg.mxu0
    %v1342 = vadd.f32 %v1264, %v1339
    %v1343 = vxor.u32 %v1342, 2147483648
    %v1344 = vmul.f32 %v1343, 1.442695
    %v1345 = vpow.pop %v1344
    %v1346 = vadd.f32 %v1345, 1.0
    %v1347 = vrcp.pop %v1346
    %v1348 = vmul.f32 1.0, %v1347
    %v1349 = vtanh.pop %v1342
    %v1350 = vmul.f32 %v1348, 0.0
    %1352 = vrot.lane.b32.xlu0 %v1349, 32
    %v1353 = vpop.permute.xlu0 %1352
    %v1355 = vmul.f32 %v1348, %v1353
    %1357 = vrot.lane.b32.xlu0 %v1355, 32
    %v1358 = vpop.permute.xlu0 %1357
    %v1360 = vadd.f32 %v1350, %v1358
    %v1361 = vtanh.pop %v1360
    %1363 = vrot.lane.b32.xlu0 %v1361, 32
    %v1364 = vpop.permute.xlu0 %1363
    %v1366 = vmul.f32 %v1348, %v1364
    %v1367 = vmul.f32 %v1366, %v1366
    %1369 = vrot.lane.b32.xlu0 %v1367, 64
    %v1370 = vpop.permute.xlu0 %1369
    %v1372 = vsel %vm398, %v1370, 0.0
    %1373 = vadd.xlane.f32.xlu0 %v1372
    %v1374 = vpop.xlane.xlu0 %1373
    %v1375 = vrsqrt.pop %v1374
    %v1376 = vmul.f32 %v1374, %v1375
    %vm1377 = vcmp.eq.f32.partialorder %v1374, inf
    %v1378 = vsel %vm1377, %v1374, %v1376
    %vm1379 = vcmp.eq.f32.partialorder %v1374, 0.0
    %v1380 = vand.u32 %v1374, 2147483648
    %v1381 = vsel %vm1379, %v1380, %v1378
    %v1382 = vmax.f32 %v1381, 1e-12
    %v1383 = vrcp.pop %v1382
    %v1384 = vmul.f32 %v1366, %v1383
    %v1385 = vadd.f32 %v1384, 0.0
    %1387 = vrot.lane.b32.xlu0 %v1366, 64
    %v1388 = vpop.permute.xlu0 %1387
    %v1389 = vsel %vm195, %v1388, 0
    %1391 = vmatprep.subr.mxu0 0.0
    %1392 = vmatpush1.msra.mxu0 %v1172
    %1393 = vmatprep.subr.mxu0 0.0
    %1394 = vmatpush1.msra.mxu0 %v1173
    %1395 = vmatprep.subr.mxu0 0.0
    %1396 = vmatpush1.msra.mxu0 %v1174
    %1397 = vmatprep.subr.mxu0 0.0
    %1398 = vmatpush1.msra.mxu0 %v1175
    %1399 = vmatprep.subr.mxu0 0.0
    %1400 = vmatpush1.msra.mxu0 0.0
    %1401 = vmatprep.subr.mxu0 0.0
    %1402 = vmatpush1.msra.mxu0 0.0
    %1403 = vmatprep.subr.mxu0 0.0
    %1404 = vmatpush1.msra.mxu0 0.0
    %1405 = vmatprep.subr.mxu0 0.0
    %1406 = vmatpush1.msra.mxu0 0.0
    %1407 = vmatprep.subr.mxu0 0.0
    %1408 = vmatpush1.msra.mxu0 0.0
    %1409 = vmatprep.subr.mxu0 0.0
    %1410 = vmatpush1.msra.mxu0 0.0
    %1411 = vmatprep.subr.mxu0 0.0
    %1412 = vmatpush1.msra.mxu0 0.0
    %1413 = vmatprep.subr.mxu0 0.0
    %1414 = vmatpush1.msra.mxu0 0.0
    %1415 = vmatprep.subr.mxu0 0.0
    %1416 = vmatpush1.msra.mxu0 0.0
    %1417 = vmatprep.subr.mxu0 0.0
    %1418 = vmatpush1.msra.mxu0 0.0
    %1419 = vmatprep.subr.mxu0 0.0
    %1420 = vmatpush1.msra.mxu0 0.0
    %1421 = vmatprep.subr.mxu0 0.0
    %1422 = vmatpush1.msra.mxu0 0.0
    %1423 = vmatprep.subr.mxu0 0.0
    %1424 = vmatpush1.msra.mxu0 0.0
    %1425 = vmatprep.subr.mxu0 0.0
    %1426 = vmatpush1.msra.mxu0 0.0
    %1427 = vmatprep.subr.mxu0 0.0
    %1428 = vmatpush1.msra.mxu0 0.0
    %1429 = vmatprep.subr.mxu0 0.0
    %1430 = vmatpush1.msra.mxu0 0.0
    %1431 = vmatprep.subr.mxu0 0.0
    %1432 = vmatpush1.msra.mxu0 0.0
    %1433 = vmatprep.subr.mxu0 0.0
    %1434 = vmatpush1.msra.mxu0 0.0
    %1435 = vmatprep.subr.mxu0 0.0
    %1436 = vmatpush1.msra.mxu0 0.0
    %1437 = vmatprep.subr.mxu0 0.0
    %1438 = vmatpush1.msra.mxu0 0.0
    %1439 = vmatprep.subr.mxu0 0.0
    %1440 = vmatpush1.msra.mxu0 0.0
    %1441 = vmatprep.subr.mxu0 0.0
    %1442 = vmatpush1.msra.mxu0 0.0
    %1443 = vmatprep.subr.mxu0 0.0
    %1444 = vmatpush1.msra.mxu0 0.0
    %1445 = vmatprep.subr.mxu0 0.0
    %1446 = vmatpush1.msra.mxu0 0.0
    %1447 = vmatprep.subr.mxu0 0.0
    %1448 = vmatpush1.msra.mxu0 0.0
    %1449 = vmatprep.subr.mxu0 0.0
    %1450 = vmatpush1.msra.mxu0 0.0
    %1451 = vmatprep.subr.mxu0 0.0
    %1452 = vmatpush1.msra.mxu0 0.0
    %1453 = vmatprep.subr.mxu0 0.0
    %1454 = vmatpush1.msra.mxu0 0.0
    %1455 = vmatprep.mubr.f32.mxu0 0.0
    %1456 = vmatmul.mubr.f32.gmra.mrb[0].mxu0 %v1389
    %v1457 = vpop.f32.mrb[0].mxu0
    %v1458 = vadd.f32 0.0, %v1457
    %v1459 = vpop.f32.mrb[0].mxu0
    %1460 = vdwg.mxu0
    %v1462 = vrot.slane %v1458, 6
    %v1464 = vadd.f32 %v1264, %v1462
    %v1465 = vxor.u32 %v1464, 2147483648
    %v1466 = vmul.f32 %v1465, 1.442695
    %v1467 = vpow.pop %v1466
    %v1468 = vadd.f32 %v1467, 1.0
    %v1469 = vrcp.pop %v1468
    %v1470 = vmul.f32 1.0, %v1469
    %v1471 = vtanh.pop %v1464
    %v1473 = vrot.slane %v1360, 6
    %v1475 = vmul.f32 %v1470, %v1473
    %1477 = vrot.lane.b32.xlu0 %v1471, 32
    %v1478 = vpop.permute.xlu0 %1477
    %v1480 = vmul.f32 %v1470, %v1478
    %1482 = vrot.lane.b32.xlu0 %v1480, 32
    %v1483 = vpop.permute.xlu0 %1482
    %v1485 = vadd.f32 %v1475, %v1483
    %v1486 = vtanh.pop %v1485
    %1488 = vrot.lane.b32.xlu0 %v1486, 32
    %v1489 = vpop.permute.xlu0 %1488
    %v1491 = vmul.f32 %v1470, %v1489
    %v1492 = vmul.f32 %v1491, %v1491
    %1494 = vrot.lane.b32.xlu0 %v1492, 64
    %v1495 = vpop.permute.xlu0 %1494
    %v1497 = vsel %vm507, %v1495, 0.0
    %1498 = vadd.xlane.f32.xlu0 %v1497
    %v1499 = vpop.xlane.xlu0 %1498
    %v1500 = vrsqrt.pop %v1499
    %v1501 = vmul.f32 %v1499, %v1500
    %vm1502 = vcmp.eq.f32.partialorder %v1499, inf
    %v1503 = vsel %vm1502, %v1499, %v1501
    %vm1504 = vcmp.eq.f32.partialorder %v1499, 0.0
    %v1505 = vand.u32 %v1499, 2147483648
    %v1506 = vsel %vm1504, %v1505, %v1503
    %v1507 = vmax.f32 %v1506, 1e-12
    %v1508 = vrcp.pop %v1507
    %v1509 = vmul.f32 %v1491, %v1508
    %v1511 = vrot.slane %v1509, 2
    %v1513 = vadd.f32 %v1385, %v1511
    %v1515 = vrot.slane %v1491, 2
    %1516 = vrot.lane.b32.xlu0 %v1515, 64
    %v1517 = vpop.permute.xlu0 %1516
    %v1518 = vsel %vm195, %v1517, 0
    %1520 = vmatprep.subr.mxu0 0.0
    %1521 = vmatpush1.msra.mxu0 %v1172
    %1522 = vmatprep.subr.mxu0 0.0
    %1523 = vmatpush1.msra.mxu0 %v1173
    %1524 = vmatprep.subr.mxu0 0.0
    %1525 = vmatpush1.msra.mxu0 %v1174
    %1526 = vmatprep.subr.mxu0 0.0
    %1527 = vmatpush1.msra.mxu0 %v1175
    %1528 = vmatprep.subr.mxu0 0.0
    %1529 = vmatpush1.msra.mxu0 0.0
    %1530 = vmatprep.subr.mxu0 0.0
    %1531 = vmatpush1.msra.mxu0 0.0
    %1532 = vmatprep.subr.mxu0 0.0
    %1533 = vmatpush1.msra.mxu0 0.0
    %1534 = vmatprep.subr.mxu0 0.0
    %1535 = vmatpush1.msra.mxu0 0.0
    %1536 = vmatprep.subr.mxu0 0.0
    %1537 = vmatpush1.msra.mxu0 0.0
    %1538 = vmatprep.subr.mxu0 0.0
    %1539 = vmatpush1.msra.mxu0 0.0
    %1540 = vmatprep.subr.mxu0 0.0
    %1541 = vmatpush1.msra.mxu0 0.0
    %1542 = vmatprep.subr.mxu0 0.0
    %1543 = vmatpush1.msra.mxu0 0.0
    %1544 = vmatprep.subr.mxu0 0.0
    %1545 = vmatpush1.msra.mxu0 0.0
    %1546 = vmatprep.subr.mxu0 0.0
    %1547 = vmatpush1.msra.mxu0 0.0
    %1548 = vmatprep.subr.mxu0 0.0
    %1549 = vmatpush1.msra.mxu0 0.0
    %1550 = vmatprep.subr.mxu0 0.0
    %1551 = vmatpush1.msra.mxu0 0.0
    %1552 = vmatprep.subr.mxu0 0.0
    %1553 = vmatpush1.msra.mxu0 0.0
    %1554 = vmatprep.subr.mxu0 0.0
    %1555 = vmatpush1.msra.mxu0 0.0
    %1556 = vmatprep.subr.mxu0 0.0
    %1557 = vmatpush1.msra.mxu0 0.0
    %1558 = vmatprep.subr.mxu0 0.0
    %1559 = vmatpush1.msra.mxu0 0.0
    %1560 = vmatprep.subr.mxu0 0.0
    %1561 = vmatpush1.msra.mxu0 0.0
    %1562 = vmatprep.subr.mxu0 0.0
    %1563 = vmatpush1.msra.mxu0 0.0
    %1564 = vmatprep.subr.mxu0 0.0
    %1565 = vmatpush1.msra.mxu0 0.0
    %1566 = vmatprep.subr.mxu0 0.0
    %1567 = vmatpush1.msra.mxu0 0.0
    %1568 = vmatprep.subr.mxu0 0.0
    %1569 = vmatpush1.msra.mxu0 0.0
    %1570 = vmatprep.subr.mxu0 0.0
    %1571 = vmatpush1.msra.mxu0 0.0
    %1572 = vmatprep.subr.mxu0 0.0
    %1573 = vmatpush1.msra.mxu0 0.0
    %1574 = vmatprep.subr.mxu0 0.0
    %1575 = vmatpush1.msra.mxu0 0.0
    %1576 = vmatprep.subr.mxu0 0.0
    %1577 = vmatpush1.msra.mxu0 0.0
    %1578 = vmatprep.subr.mxu0 0.0
    %1579 = vmatpush1.msra.mxu0 0.0
    %1580 = vmatprep.subr.mxu0 0.0
    %1581 = vmatpush1.msra.mxu0 0.0
    %1582 = vmatprep.subr.mxu0 0.0
    %1583 = vmatpush1.msra.mxu0 0.0
    %1584 = vmatprep.mubr.f32.mxu0 0.0
    %1585 = vmatmul.mubr.f32.gmra.mrb[0].mxu0 %v1518
    %v1586 = vpop.f32.mrb[0].mxu0
    %v1587 = vadd.f32 0.0, %v1586
    %v1588 = vpop.f32.mrb[0].mxu0
    %1589 = vdwg.mxu0
    %v1591 = vrot.slane %v1587, 4
    %v1593 = vadd.f32 %v1264, %v1591
    %v1594 = vxor.u32 %v1593, 2147483648
    %v1595 = vmul.f32 %v1594, 1.442695
    %v1596 = vpow.pop %v1595
    %v1597 = vadd.f32 %v1596, 1.0
    %v1598 = vrcp.pop %v1597
    %v1599 = vmul.f32 1.0, %v1598
    %v1600 = vtanh.pop %v1593
    %v1602 = vrot.slane %v1485, 6
    %v1604 = vmul.f32 %v1599, %v1602
    %1606 = vrot.lane.b32.xlu0 %v1600, 32
    %v1607 = vpop.permute.xlu0 %1606
    %v1609 = vmul.f32 %v1599, %v1607
    %1611 = vrot.lane.b32.xlu0 %v1609, 32
    %v1612 = vpop.permute.xlu0 %1611
    %v1614 = vadd.f32 %v1604, %v1612
    %v1615 = vtanh.pop %v1614
    %1617 = vrot.lane.b32.xlu0 %v1615, 32
    %v1618 = vpop.permute.xlu0 %1617
    %v1620 = vmul.f32 %v1599, %v1618
    %v1621 = vmul.f32 %v1620, %v1620
    %1623 = vrot.lane.b32.xlu0 %v1621, 64
    %v1624 = vpop.permute.xlu0 %1623
    %v1626 = vsel %vm619, %v1624, 0.0
    %1627 = vadd.xlane.f32.xlu0 %v1626
    %v1628 = vpop.xlane.xlu0 %1627
    %v1629 = vrsqrt.pop %v1628
    %v1630 = vmul.f32 %v1628, %v1629
    %vm1631 = vcmp.eq.f32.partialorder %v1628, inf
    %v1632 = vsel %vm1631, %v1628, %v1630
    %vm1633 = vcmp.eq.f32.partialorder %v1628, 0.0
    %v1634 = vand.u32 %v1628, 2147483648
    %v1635 = vsel %vm1633, %v1634, %v1632
    %v1636 = vmax.f32 %v1635, 1e-12
    %v1637 = vrcp.pop %v1636
    %v1638 = vmul.f32 %v1620, %v1637
    %v1640 = vrot.slane %v1638, 4
    %v1642 = vadd.f32 %v1513, %v1640
    %v1644 = vrot.slane %v1620, 4
    %1645 = vrot.lane.b32.xlu0 %v1644, 64
    %v1646 = vpop.permute.xlu0 %1645
    %v1647 = vsel %vm195, %v1646, 0
    %1649 = vmatprep.subr.mxu0 0.0
    %1650 = vmatpush1.msra.mxu0 %v1172
    %1651 = vmatprep.subr.mxu0 0.0
    %1652 = vmatpush1.msra.mxu0 %v1173
    %1653 = vmatprep.subr.mxu0 0.0
    %1654 = vmatpush1.msra.mxu0 %v1174
    %1655 = vmatprep.subr.mxu0 0.0
    %1656 = vmatpush1.msra.mxu0 %v1175
    %1657 = vmatprep.subr.mxu0 0.0
    %1658 = vmatpush1.msra.mxu0 0.0
    %1659 = vmatprep.subr.mxu0 0.0
    %1660 = vmatpush1.msra.mxu0 0.0
    %1661 = vmatprep.subr.mxu0 0.0
    %1662 = vmatpush1.msra.mxu0 0.0
    %1663 = vmatprep.subr.mxu0 0.0
    %1664 = vmatpush1.msra.mxu0 0.0
    %1665 = vmatprep.subr.mxu0 0.0
    %1666 = vmatpush1.msra.mxu0 0.0
    %1667 = vmatprep.subr.mxu0 0.0
    %1668 = vmatpush1.msra.mxu0 0.0
    %1669 = vmatprep.subr.mxu0 0.0
    %1670 = vmatpush1.msra.mxu0 0.0
    %1671 = vmatprep.subr.mxu0 0.0
    %1672 = vmatpush1.msra.mxu0 0.0
    %1673 = vmatprep.subr.mxu0 0.0
    %1674 = vmatpush1.msra.mxu0 0.0
    %1675 = vmatprep.subr.mxu0 0.0
    %1676 = vmatpush1.msra.mxu0 0.0
    %1677 = vmatprep.subr.mxu0 0.0
    %1678 = vmatpush1.msra.mxu0 0.0
    %1679 = vmatprep.subr.mxu0 0.0
    %1680 = vmatpush1.msra.mxu0 0.0
    %1681 = vmatprep.subr.mxu0 0.0
    %1682 = vmatpush1.msra.mxu0 0.0
    %1683 = vmatprep.subr.mxu0 0.0
    %1684 = vmatpush1.msra.mxu0 0.0
    %1685 = vmatprep.subr.mxu0 0.0
    %1686 = vmatpush1.msra.mxu0 0.0
    %1687 = vmatprep.subr.mxu0 0.0
    %1688 = vmatpush1.msra.mxu0 0.0
    %1689 = vmatprep.subr.mxu0 0.0
    %1690 = vmatpush1.msra.mxu0 0.0
    %1691 = vmatprep.subr.mxu0 0.0
    %1692 = vmatpush1.msra.mxu0 0.0
    %1693 = vmatprep.subr.mxu0 0.0
    %1694 = vmatpush1.msra.mxu0 0.0
    %1695 = vmatprep.subr.mxu0 0.0
    %1696 = vmatpush1.msra.mxu0 0.0
    %1697 = vmatprep.subr.mxu0 0.0
    %1698 = vmatpush1.msra.mxu0 0.0
    %1699 = vmatprep.subr.mxu0 0.0
    %1700 = vmatpush1.msra.mxu0 0.0
    %1701 = vmatprep.subr.mxu0 0.0
    %1702 = vmatpush1.msra.mxu0 0.0
    %1703 = vmatprep.subr.mxu0 0.0
    %1704 = vmatpush1.msra.mxu0 0.0
    %1705 = vmatprep.subr.mxu0 0.0
    %1706 = vmatpush1.msra.mxu0 0.0
    %1707 = vmatprep.subr.mxu0 0.0
    %1708 = vmatpush1.msra.mxu0 0.0
    %1709 = vmatprep.subr.mxu0 0.0
    %1710 = vmatpush1.msra.mxu0 0.0
    %1711 = vmatprep.subr.mxu0 0.0
    %1712 = vmatpush1.msra.mxu0 0.0
    %1713 = vmatprep.mubr.f32.mxu0 0.0
    %1714 = vmatmul.mubr.f32.gmra.mrb[0].mxu0 %v1647
    %v1715 = vpop.f32.mrb[0].mxu0
    %v1716 = vadd.f32 0.0, %v1715
    %v1717 = vpop.f32.mrb[0].mxu0
    %1718 = vdwg.mxu0
    %v1720 = vrot.slane %v1716, 2
    %v1722 = vadd.f32 %v1264, %v1720
    %v1723 = vxor.u32 %v1722, 2147483648
    %v1724 = vmul.f32 %v1723, 1.442695
    %v1725 = vpow.pop %v1724
    %v1726 = vadd.f32 %v1725, 1.0
    %v1727 = vrcp.pop %v1726
    %v1728 = vmul.f32 1.0, %v1727
    %v1729 = vtanh.pop %v1722
    %v1731 = vrot.slane %v1614, 6
    %v1733 = vmul.f32 %v1728, %v1731
    %1735 = vrot.lane.b32.xlu0 %v1729, 32
    %v1736 = vpop.permute.xlu0 %1735
    %v1738 = vmul.f32 %v1728, %v1736
    %1740 = vrot.lane.b32.xlu0 %v1738, 32
    %v1741 = vpop.permute.xlu0 %1740
    %v1743 = vadd.f32 %v1733, %v1741
    %v1744 = vtanh.pop %v1743
    %1746 = vrot.lane.b32.xlu0 %v1744, 32
    %v1747 = vpop.permute.xlu0 %1746
    %v1749 = vmul.f32 %v1728, %v1747
    %v1750 = vmul.f32 %v1749, %v1749
    %1752 = vrot.lane.b32.xlu0 %v1750, 64
    %v1753 = vpop.permute.xlu0 %1752
    %v1755 = vsel %vm731, %v1753, 0.0
    %1756 = vadd.xlane.f32.xlu0 %v1755
    %v1757 = vpop.xlane.xlu0 %1756
    %v1758 = vrsqrt.pop %v1757
    %v1759 = vmul.f32 %v1757, %v1758
    %vm1760 = vcmp.eq.f32.partialorder %v1757, inf
    %v1761 = vsel %vm1760, %v1757, %v1759
    %vm1762 = vcmp.eq.f32.partialorder %v1757, 0.0
    %v1763 = vand.u32 %v1757, 2147483648
    %v1764 = vsel %vm1762, %v1763, %v1761
    %v1765 = vmax.f32 %v1764, 1e-12
    %v1766 = vrcp.pop %v1765
    %v1767 = vmul.f32 %v1749, %v1766
    %v1769 = vrot.slane %v1767, 6
    %v1771 = vadd.f32 %v1642, %v1769
    %v1773 = vrot.slane %v1749, 6
    %1774 = vrot.lane.b32.xlu0 %v1773, 64
    %v1775 = vpop.permute.xlu0 %1774
    %v1776 = vsel %vm195, %v1775, 0
    %1778 = vmatprep.subr.mxu0 0.0
    %1779 = vmatpush1.msra.mxu0 %v1172
    %1780 = vmatprep.subr.mxu0 0.0
    %1781 = vmatpush1.msra.mxu0 %v1173
    %1782 = vmatprep.subr.mxu0 0.0
    %1783 = vmatpush1.msra.mxu0 %v1174
    %1784 = vmatprep.subr.mxu0 0.0
    %1785 = vmatpush1.msra.mxu0 %v1175
    %1786 = vmatprep.subr.mxu0 0.0
    %1787 = vmatpush1.msra.mxu0 0.0
    %1788 = vmatprep.subr.mxu0 0.0
    %1789 = vmatpush1.msra.mxu0 0.0
    %1790 = vmatprep.subr.mxu0 0.0
    %1791 = vmatpush1.msra.mxu0 0.0
    %1792 = vmatprep.subr.mxu0 0.0
    %1793 = vmatpush1.msra.mxu0 0.0
    %1794 = vmatprep.subr.mxu0 0.0
    %1795 = vmatpush1.msra.mxu0 0.0
    %1796 = vmatprep.subr.mxu0 0.0
    %1797 = vmatpush1.msra.mxu0 0.0
    %1798 = vmatprep.subr.mxu0 0.0
    %1799 = vmatpush1.msra.mxu0 0.0
    %1800 = vmatprep.subr.mxu0 0.0
    %1801 = vmatpush1.msra.mxu0 0.0
    %1802 = vmatprep.subr.mxu0 0.0
    %1803 = vmatpush1.msra.mxu0 0.0
    %1804 = vmatprep.subr.mxu0 0.0
    %1805 = vmatpush1.msra.mxu0 0.0
    %1806 = vmatprep.subr.mxu0 0.0
    %1807 = vmatpush1.msra.mxu0 0.0
    %1808 = vmatprep.subr.mxu0 0.0
    %1809 = vmatpush1.msra.mxu0 0.0
    %1810 = vmatprep.subr.mxu0 0.0
    %1811 = vmatpush1.msra.mxu0 0.0
    %1812 = vmatprep.subr.mxu0 0.0
    %1813 = vmatpush1.msra.mxu0 0.0
    %1814 = vmatprep.subr.mxu0 0.0
    %1815 = vmatpush1.msra.mxu0 0.0
    %1816 = vmatprep.subr.mxu0 0.0
    %1817 = vmatpush1.msra.mxu0 0.0
    %1818 = vmatprep.subr.mxu0 0.0
    %1819 = vmatpush1.msra.mxu0 0.0
    %1820 = vmatprep.subr.mxu0 0.0
    %1821 = vmatpush1.msra.mxu0 0.0
    %1822 = vmatprep.subr.mxu0 0.0
    %1823 = vmatpush1.msra.mxu0 0.0
    %1824 = vmatprep.subr.mxu0 0.0
    %1825 = vmatpush1.msra.mxu0 0.0
    %1826 = vmatprep.subr.mxu0 0.0
    %1827 = vmatpush1.msra.mxu0 0.0
    %1828 = vmatprep.subr.mxu0 0.0
    %1829 = vmatpush1.msra.mxu0 0.0
    %1830 = vmatprep.subr.mxu0 0.0
    %1831 = vmatpush1.msra.mxu0 0.0
    %1832 = vmatprep.subr.mxu0 0.0
    %1833 = vmatpush1.msra.mxu0 0.0
    %1834 = vmatprep.subr.mxu0 0.0
    %1835 = vmatpush1.msra.mxu0 0.0
    %1836 = vmatprep.subr.mxu0 0.0
    %1837 = vmatpush1.msra.mxu0 0.0
    %1838 = vmatprep.subr.mxu0 0.0
    %1839 = vmatpush1.msra.mxu0 0.0
    %1840 = vmatprep.subr.mxu0 0.0
    %1841 = vmatpush1.msra.mxu0 0.0
    %1842 = vmatprep.mubr.f32.mxu0 0.0
    %1843 = vmatmul.mubr.f32.gmra.mrb[0].mxu0 %v1776
    %v1844 = vpop.f32.mrb[0].mxu0
    %v1845 = vadd.f32 0.0, %v1844
    %v1846 = vpop.f32.mrb[0].mxu0
    %1847 = vdwg.mxu0
    %v1848 = vadd.f32 %v1269, %v1845
    %v1849 = vxor.u32 %v1848, 2147483648
    %v1850 = vmul.f32 %v1849, 1.442695
    %v1851 = vpow.pop %v1850
    %v1852 = vadd.f32 %v1851, 1.0
    %v1853 = vrcp.pop %v1852
    %v1854 = vmul.f32 1.0, %v1853
    %v1855 = vtanh.pop %v1848
    %v1857 = vrot.slane %v1743, 6
    %v1859 = vmul.f32 %v1854, %v1857
    %1861 = vrot.lane.b32.xlu0 %v1855, 32
    %v1862 = vpop.permute.xlu0 %1861
    %v1864 = vmul.f32 %v1854, %v1862
    %1866 = vrot.lane.b32.xlu0 %v1864, 32
    %v1867 = vpop.permute.xlu0 %1866
    %v1869 = vadd.f32 %v1859, %v1867
    %v1870 = vtanh.pop %v1869
    %1872 = vrot.lane.b32.xlu0 %v1870, 32
    %v1873 = vpop.permute.xlu0 %1872
    %v1875 = vmul.f32 %v1854, %v1873
    %v1876 = vmul.f32 %v1875, %v1875
    %1878 = vrot.lane.b32.xlu0 %v1876, 64
    %v1879 = vpop.permute.xlu0 %1878
    %v1881 = vsel %vm398, %v1879, 0.0
    %1882 = vadd.xlane.f32.xlu0 %v1881
    %v1883 = vpop.xlane.xlu0 %1882
    %v1884 = vrsqrt.pop %v1883
    %v1885 = vmul.f32 %v1883, %v1884
    %vm1886 = vcmp.eq.f32.partialorder %v1883, inf
    %v1887 = vsel %vm1886, %v1883, %v1885
    %vm1888 = vcmp.eq.f32.partialorder %v1883, 0.0
    %v1889 = vand.u32 %v1883, 2147483648
    %v1890 = vsel %vm1888, %v1889, %v1887
    %v1891 = vmax.f32 %v1890, 1e-12
    %v1892 = vrcp.pop %v1891
    %v1893 = vmul.f32 %v1875, %v1892
    %v1894 = vadd.f32 %v1771, %v1893
    %1896 = vrot.lane.b32.xlu0 %v1875, 64
    %v1897 = vpop.permute.xlu0 %1896
    %v1898 = vsel %vm195, %v1897, 0
    %1900 = vmatprep.subr.mxu0 0.0
    %1901 = vmatpush1.msra.mxu0 %v1172
    %1902 = vmatprep.subr.mxu0 0.0
    %1903 = vmatpush1.msra.mxu0 %v1173
    %1904 = vmatprep.subr.mxu0 0.0
    %1905 = vmatpush1.msra.mxu0 %v1174
    %1906 = vmatprep.subr.mxu0 0.0
    %1907 = vmatpush1.msra.mxu0 %v1175
    %1908 = vmatprep.subr.mxu0 0.0
    %1909 = vmatpush1.msra.mxu0 0.0
    %1910 = vmatprep.subr.mxu0 0.0
    %1911 = vmatpush1.msra.mxu0 0.0
    %1912 = vmatprep.subr.mxu0 0.0
    %1913 = vmatpush1.msra.mxu0 0.0
    %1914 = vmatprep.subr.mxu0 0.0
    %1915 = vmatpush1.msra.mxu0 0.0
    %1916 = vmatprep.subr.mxu0 0.0
    %1917 = vmatpush1.msra.mxu0 0.0
    %1918 = vmatprep.subr.mxu0 0.0
    %1919 = vmatpush1.msra.mxu0 0.0
    %1920 = vmatprep.subr.mxu0 0.0
    %1921 = vmatpush1.msra.mxu0 0.0
    %1922 = vmatprep.subr.mxu0 0.0
    %1923 = vmatpush1.msra.mxu0 0.0
    %1924 = vmatprep.subr.mxu0 0.0
    %1925 = vmatpush1.msra.mxu0 0.0
    %1926 = vmatprep.subr.mxu0 0.0
    %1927 = vmatpush1.msra.mxu0 0.0
    %1928 = vmatprep.subr.mxu0 0.0
    %1929 = vmatpush1.msra.mxu0 0.0
    %1930 = vmatprep.subr.mxu0 0.0
    %1931 = vmatpush1.msra.mxu0 0.0
    %1932 = vmatprep.subr.mxu0 0.0
    %1933 = vmatpush1.msra.mxu0 0.0
    %1934 = vmatprep.subr.mxu0 0.0
    %1935 = vmatpush1.msra.mxu0 0.0
    %1936 = vmatprep.subr.mxu0 0.0
    %1937 = vmatpush1.msra.mxu0 0.0
    %1938 = vmatprep.subr.mxu0 0.0
    %1939 = vmatpush1.msra.mxu0 0.0
    %1940 = vmatprep.subr.mxu0 0.0
    %1941 = vmatpush1.msra.mxu0 0.0
    %1942 = vmatprep.subr.mxu0 0.0
    %1943 = vmatpush1.msra.mxu0 0.0
    %1944 = vmatprep.subr.mxu0 0.0
    %1945 = vmatpush1.msra.mxu0 0.0
    %1946 = vmatprep.subr.mxu0 0.0
    %1947 = vmatpush1.msra.mxu0 0.0
    %1948 = vmatprep.subr.mxu0 0.0
    %1949 = vmatpush1.msra.mxu0 0.0
    %1950 = vmatprep.subr.mxu0 0.0
    %1951 = vmatpush1.msra.mxu0 0.0
    %1952 = vmatprep.subr.mxu0 0.0
    %1953 = vmatpush1.msra.mxu0 0.0
    %1954 = vmatprep.subr.mxu0 0.0
    %1955 = vmatpush1.msra.mxu0 0.0
    %1956 = vmatprep.subr.mxu0 0.0
    %1957 = vmatpush1.msra.mxu0 0.0
    %1958 = vmatprep.subr.mxu0 0.0
    %1959 = vmatpush1.msra.mxu0 0.0
    %1960 = vmatprep.subr.mxu0 0.0
    %1961 = vmatpush1.msra.mxu0 0.0
    %1962 = vmatprep.subr.mxu0 0.0
    %1963 = vmatpush1.msra.mxu0 0.0
    %1964 = vmatprep.mubr.f32.mxu0 0.0
    %1965 = vmatmul.mubr.f32.gmra.mrb[0].mxu0 %v1898
    %v1966 = vpop.f32.mrb[0].mxu0
    %v1967 = vadd.f32 0.0, %v1966
    %v1968 = vpop.f32.mrb[0].mxu0
    %1969 = vdwg.mxu0
    %v1971 = vrot.slane %v1967, 6
    %v1973 = vadd.f32 %v1269, %v1971
    %v1974 = vxor.u32 %v1973, 2147483648
    %v1975 = vmul.f32 %v1974, 1.442695
    %v1976 = vpow.pop %v1975
    %v1977 = vadd.f32 %v1976, 1.0
    %v1978 = vrcp.pop %v1977
    %v1979 = vmul.f32 1.0, %v1978
    %v1980 = vtanh.pop %v1973
    %v1982 = vrot.slane %v1869, 6
    %v1984 = vmul.f32 %v1979, %v1982
    %1986 = vrot.lane.b32.xlu0 %v1980, 32
    %v1987 = vpop.permute.xlu0 %1986
    %v1989 = vmul.f32 %v1979, %v1987
    %1991 = vrot.lane.b32.xlu0 %v1989, 32
    %v1992 = vpop.permute.xlu0 %1991
    %v1994 = vadd.f32 %v1984, %v1992
    %v1995 = vtanh.pop %v1994
    %1997 = vrot.lane.b32.xlu0 %v1995, 32
    %v1998 = vpop.permute.xlu0 %1997
    %v2000 = vmul.f32 %v1979, %v1998
    %v2001 = vmul.f32 %v2000, %v2000
    %2003 = vrot.lane.b32.xlu0 %v2001, 64
    %v2004 = vpop.permute.xlu0 %2003
    %v2006 = vsel %vm507, %v2004, 0.0
    %2007 = vadd.xlane.f32.xlu0 %v2006
    %v2008 = vpop.xlane.xlu0 %2007
    %v2009 = vrsqrt.pop %v2008
    %v2010 = vmul.f32 %v2008, %v2009
    %vm2011 = vcmp.eq.f32.partialorder %v2008, inf
    %v2012 = vsel %vm2011, %v2008, %v2010
    %vm2013 = vcmp.eq.f32.partialorder %v2008, 0.0
    %v2014 = vand.u32 %v2008, 2147483648
    %v2015 = vsel %vm2013, %v2014, %v2012
    %v2016 = vmax.f32 %v2015, 1e-12
    %v2017 = vrcp.pop %v2016
    %v2018 = vmul.f32 %v2000, %v2017
    %v2020 = vrot.slane %v2018, 2
    %v2022 = vadd.f32 %v1894, %v2020
    %v2024 = vrot.slane %v2000, 2
    %2025 = vrot.lane.b32.xlu0 %v2024, 64
    %v2026 = vpop.permute.xlu0 %2025
    %v2027 = vsel %vm195, %v2026, 0
    %2029 = vmatprep.subr.mxu0 0.0
    %2030 = vmatpush1.msra.mxu0 %v1172
    %2031 = vmatprep.subr.mxu0 0.0
    %2032 = vmatpush1.msra.mxu0 %v1173
    %2033 = vmatprep.subr.mxu0 0.0
    %2034 = vmatpush1.msra.mxu0 %v1174
    %2035 = vmatprep.subr.mxu0 0.0
    %2036 = vmatpush1.msra.mxu0 %v1175
    %2037 = vmatprep.subr.mxu0 0.0
    %2038 = vmatpush1.msra.mxu0 0.0
    %2039 = vmatprep.subr.mxu0 0.0
    %2040 = vmatpush1.msra.mxu0 0.0
    %2041 = vmatprep.subr.mxu0 0.0
    %2042 = vmatpush1.msra.mxu0 0.0
    %2043 = vmatprep.subr.mxu0 0.0
    %2044 = vmatpush1.msra.mxu0 0.0
    %2045 = vmatprep.subr.mxu0 0.0
    %2046 = vmatpush1.msra.mxu0 0.0
    %2047 = vmatprep.subr.mxu0 0.0
    %2048 = vmatpush1.msra.mxu0 0.0
    %2049 = vmatprep.subr.mxu0 0.0
    %2050 = vmatpush1.msra.mxu0 0.0
    %2051 = vmatprep.subr.mxu0 0.0
    %2052 = vmatpush1.msra.mxu0 0.0
    %2053 = vmatprep.subr.mxu0 0.0
    %2054 = vmatpush1.msra.mxu0 0.0
    %2055 = vmatprep.subr.mxu0 0.0
    %2056 = vmatpush1.msra.mxu0 0.0
    %2057 = vmatprep.subr.mxu0 0.0
    %2058 = vmatpush1.msra.mxu0 0.0
    %2059 = vmatprep.subr.mxu0 0.0
    %2060 = vmatpush1.msra.mxu0 0.0
    %2061 = vmatprep.subr.mxu0 0.0
    %2062 = vmatpush1.msra.mxu0 0.0
    %2063 = vmatprep.subr.mxu0 0.0
    %2064 = vmatpush1.msra.mxu0 0.0
    %2065 = vmatprep.subr.mxu0 0.0
    %2066 = vmatpush1.msra.mxu0 0.0
    %2067 = vmatprep.subr.mxu0 0.0
    %2068 = vmatpush1.msra.mxu0 0.0
    %2069 = vmatprep.subr.mxu0 0.0
    %2070 = vmatpush1.msra.mxu0 0.0
    %2071 = vmatprep.subr.mxu0 0.0
    %2072 = vmatpush1.msra.mxu0 0.0
    %2073 = vmatprep.subr.mxu0 0.0
    %2074 = vmatpush1.msra.mxu0 0.0
    %2075 = vmatprep.subr.mxu0 0.0
    %2076 = vmatpush1.msra.mxu0 0.0
    %2077 = vmatprep.subr.mxu0 0.0
    %2078 = vmatpush1.msra.mxu0 0.0
    %2079 = vmatprep.subr.mxu0 0.0
    %2080 = vmatpush1.msra.mxu0 0.0
    %2081 = vmatprep.subr.mxu0 0.0
    %2082 = vmatpush1.msra.mxu0 0.0
    %2083 = vmatprep.subr.mxu0 0.0
    %2084 = vmatpush1.msra.mxu0 0.0
    %2085 = vmatprep.subr.mxu0 0.0
    %2086 = vmatpush1.msra.mxu0 0.0
    %2087 = vmatprep.subr.mxu0 0.0
    %2088 = vmatpush1.msra.mxu0 0.0
    %2089 = vmatprep.subr.mxu0 0.0
    %2090 = vmatpush1.msra.mxu0 0.0
    %2091 = vmatprep.subr.mxu0 0.0
    %2092 = vmatpush1.msra.mxu0 0.0
    %2093 = vmatprep.mubr.f32.mxu0 0.0
    %2094 = vmatmul.mubr.f32.gmra.mrb[0].mxu0 %v2027
    %v2095 = vpop.f32.mrb[0].mxu0
    %v2096 = vadd.f32 0.0, %v2095
    %v2097 = vpop.f32.mrb[0].mxu0
    %2098 = vdwg.mxu0
    %v2100 = vrot.slane %v2096, 4
    %v2102 = vadd.f32 %v1269, %v2100
    %v2103 = vxor.u32 %v2102, 2147483648
    %v2104 = vmul.f32 %v2103, 1.442695
    %v2105 = vpow.pop %v2104
    %v2106 = vadd.f32 %v2105, 1.0
    %v2107 = vrcp.pop %v2106
    %v2108 = vmul.f32 1.0, %v2107
    %v2109 = vtanh.pop %v2102
    %v2111 = vrot.slane %v1994, 6
    %v2113 = vmul.f32 %v2108, %v2111
    %2115 = vrot.lane.b32.xlu0 %v2109, 32
    %v2116 = vpop.permute.xlu0 %2115
    %v2118 = vmul.f32 %v2108, %v2116
    %2120 = vrot.lane.b32.xlu0 %v2118, 32
    %v2121 = vpop.permute.xlu0 %2120
    %v2123 = vadd.f32 %v2113, %v2121
    %v2124 = vtanh.pop %v2123
    %2126 = vrot.lane.b32.xlu0 %v2124, 32
    %v2127 = vpop.permute.xlu0 %2126
    %v2129 = vmul.f32 %v2108, %v2127
    %v2130 = vmul.f32 %v2129, %v2129
    %2132 = vrot.lane.b32.xlu0 %v2130, 64
    %v2133 = vpop.permute.xlu0 %2132
    %v2135 = vsel %vm619, %v2133, 0.0
    %2136 = vadd.xlane.f32.xlu0 %v2135
    %v2137 = vpop.xlane.xlu0 %2136
    %v2138 = vrsqrt.pop %v2137
    %v2139 = vmul.f32 %v2137, %v2138
    %vm2140 = vcmp.eq.f32.partialorder %v2137, inf
    %v2141 = vsel %vm2140, %v2137, %v2139
    %vm2142 = vcmp.eq.f32.partialorder %v2137, 0.0
    %v2143 = vand.u32 %v2137, 2147483648
    %v2144 = vsel %vm2142, %v2143, %v2141
    %v2145 = vmax.f32 %v2144, 1e-12
    %v2146 = vrcp.pop %v2145
    %v2147 = vmul.f32 %v2129, %v2146
    %v2149 = vrot.slane %v2147, 4
    %v2151 = vadd.f32 %v2022, %v2149
    %v2153 = vrot.slane %v2129, 4
    %2154 = vrot.lane.b32.xlu0 %v2153, 64
    %v2155 = vpop.permute.xlu0 %2154
    %v2156 = vsel %vm195, %v2155, 0
    %2158 = vmatprep.subr.mxu0 0.0
    %2159 = vmatpush1.msra.mxu0 %v1172
    %2160 = vmatprep.subr.mxu0 0.0
    %2161 = vmatpush1.msra.mxu0 %v1173
    %2162 = vmatprep.subr.mxu0 0.0
    %2163 = vmatpush1.msra.mxu0 %v1174
    %2164 = vmatprep.subr.mxu0 0.0
    %2165 = vmatpush1.msra.mxu0 %v1175
    %2166 = vmatprep.subr.mxu0 0.0
    %2167 = vmatpush1.msra.mxu0 0.0
    %2168 = vmatprep.subr.mxu0 0.0
    %2169 = vmatpush1.msra.mxu0 0.0
    %2170 = vmatprep.subr.mxu0 0.0
    %2171 = vmatpush1.msra.mxu0 0.0
    %2172 = vmatprep.subr.mxu0 0.0
    %2173 = vmatpush1.msra.mxu0 0.0
    %2174 = vmatprep.subr.mxu0 0.0
    %2175 = vmatpush1.msra.mxu0 0.0
    %2176 = vmatprep.subr.mxu0 0.0
    %2177 = vmatpush1.msra.mxu0 0.0
    %2178 = vmatprep.subr.mxu0 0.0
    %2179 = vmatpush1.msra.mxu0 0.0
    %2180 = vmatprep.subr.mxu0 0.0
    %2181 = vmatpush1.msra.mxu0 0.0
    %2182 = vmatprep.subr.mxu0 0.0
    %2183 = vmatpush1.msra.mxu0 0.0
    %2184 = vmatprep.subr.mxu0 0.0
    %2185 = vmatpush1.msra.mxu0 0.0
    %2186 = vmatprep.subr.mxu0 0.0
    %2187 = vmatpush1.msra.mxu0 0.0
    %2188 = vmatprep.subr.mxu0 0.0
    %2189 = vmatpush1.msra.mxu0 0.0
    %2190 = vmatprep.subr.mxu0 0.0
    %2191 = vmatpush1.msra.mxu0 0.0
    %2192 = vmatprep.subr.mxu0 0.0
    %2193 = vmatpush1.msra.mxu0 0.0
    %2194 = vmatprep.subr.mxu0 0.0
    %2195 = vmatpush1.msra.mxu0 0.0
    %2196 = vmatprep.subr.mxu0 0.0
    %2197 = vmatpush1.msra.mxu0 0.0
    %2198 = vmatprep.subr.mxu0 0.0
    %2199 = vmatpush1.msra.mxu0 0.0
    %2200 = vmatprep.subr.mxu0 0.0
    %2201 = vmatpush1.msra.mxu0 0.0
    %2202 = vmatprep.subr.mxu0 0.0
    %2203 = vmatpush1.msra.mxu0 0.0
    %2204 = vmatprep.subr.mxu0 0.0
    %2205 = vmatpush1.msra.mxu0 0.0
    %2206 = vmatprep.subr.mxu0 0.0
    %2207 = vmatpush1.msra.mxu0 0.0
    %2208 = vmatprep.subr.mxu0 0.0
    %2209 = vmatpush1.msra.mxu0 0.0
    %2210 = vmatprep.subr.mxu0 0.0
    %2211 = vmatpush1.msra.mxu0 0.0
    %2212 = vmatprep.subr.mxu0 0.0
    %2213 = vmatpush1.msra.mxu0 0.0
    %2214 = vmatprep.subr.mxu0 0.0
    %2215 = vmatpush1.msra.mxu0 0.0
    %2216 = vmatprep.subr.mxu0 0.0
    %2217 = vmatpush1.msra.mxu0 0.0
    %2218 = vmatprep.subr.mxu0 0.0
    %2219 = vmatpush1.msra.mxu0 0.0
    %2220 = vmatprep.subr.mxu0 0.0
    %2221 = vmatpush1.msra.mxu0 0.0
    %2222 = vmatprep.mubr.f32.mxu0 0.0
    %2223 = vmatmul.mubr.f32.gmra.mrb[0].mxu0 %v2156
    %v2224 = vpop.f32.mrb[0].mxu0
    %v2225 = vadd.f32 0.0, %v2224
    %v2226 = vpop.f32.mrb[0].mxu0
    %2227 = vdwg.mxu0
    %v2229 = vrot.slane %v2225, 2
    %v2231 = vadd.f32 %v1269, %v2229
    %v2232 = vxor.u32 %v2231, 2147483648
    %v2233 = vmul.f32 %v2232, 1.442695
    %v2234 = vpow.pop %v2233
    %v2235 = vadd.f32 %v2234, 1.0
    %v2236 = vrcp.pop %v2235
    %v2237 = vmul.f32 1.0, %v2236
    %v2238 = vtanh.pop %v2231
    %v2240 = vrot.slane %v2123, 6
    %v2242 = vmul.f32 %v2237, %v2240
    %2244 = vrot.lane.b32.xlu0 %v2238, 32
    %v2245 = vpop.permute.xlu0 %2244
    %v2247 = vmul.f32 %v2237, %v2245
    %2249 = vrot.lane.b32.xlu0 %v2247, 32
    %v2250 = vpop.permute.xlu0 %2249
    %v2252 = vadd.f32 %v2242, %v2250
    %v2253 = vtanh.pop %v2252
    %2255 = vrot.lane.b32.xlu0 %v2253, 32
    %v2256 = vpop.permute.xlu0 %2255
    %v2258 = vmul.f32 %v2237, %v2256
    %v2259 = vmul.f32 %v2258, %v2258
    %2261 = vrot.lane.b32.xlu0 %v2259, 64
    %v2262 = vpop.permute.xlu0 %2261
    %v2264 = vsel %vm731, %v2262, 0.0
    %2265 = vadd.xlane.f32.xlu0 %v2264
    %v2266 = vpop.xlane.xlu0 %2265
    %v2267 = vrsqrt.pop %v2266
    %v2268 = vmul.f32 %v2266, %v2267
    %vm2269 = vcmp.eq.f32.partialorder %v2266, inf
    %v2270 = vsel %vm2269, %v2266, %v2268
    %vm2271 = vcmp.eq.f32.partialorder %v2266, 0.0
    %v2272 = vand.u32 %v2266, 2147483648
    %v2273 = vsel %vm2271, %v2272, %v2270
    %v2274 = vmax.f32 %v2273, 1e-12
    %v2275 = vrcp.pop %v2274
    %v2276 = vmul.f32 %v2258, %v2275
    %v2278 = vrot.slane %v2276, 6
    %v2280 = vadd.f32 %v2151, %v2278
    %v2281 = vmul.f32 %v2280, 0.125
    %v2282 = vmul.f32 %v2281, %v2281
    %2284 = vrot.lane.b32.xlu0 %v2282, 64
    %v2285 = vpop.permute.xlu0 %2284
    %v2287 = vsel %vm398, %v2285, 0.0
    %2288 = vadd.xlane.f32.xlu0 %v2287
    %v2289 = vpop.xlane.xlu0 %2288
    %v2290 = vrsqrt.pop %v2289
    %v2291 = vmul.f32 %v2289, %v2290
    %vm2292 = vcmp.eq.f32.partialorder %v2289, inf
    %v2293 = vsel %vm2292, %v2289, %v2291
    %vm2294 = vcmp.eq.f32.partialorder %v2289, 0.0
    %v2295 = vand.u32 %v2289, 2147483648
    %v2296 = vsel %vm2294, %v2295, %v2293
    %v2297 = vmax.f32 %v2296, 1e-12
    %v2298 = vrcp.pop %v2297
    %v2299 = vmul.f32 %v2281, %v2298
    %v2300 = vld [vmem:[#allocation8] sm:$0xff]
    %v2301 = vld [vmem:[#allocation8 + $0x8] sm:$0xff]
    %v2302 = vld [vmem:[#allocation8 + $0x10] sm:$0xff]
    %v2303 = vld [vmem:[#allocation8 + $0x18] sm:$0xff]
    %v2304 = vld [vmem:[%s6] sm:$0x1]
    %v2306 = vlaneseq
    %v2307 = vshrl.u32 %v2306, 7
    %v2308 = vsub.s32 0, %v2307
    %v2309 = vrot.slane %v2304, %v2308
    %2312 = vrot.lane.b32.xlu0 %v2299, 64
    %v2313 = vpop.permute.xlu0 %2312
    %v2314 = vsel %vm195, %v2313, 0
    %2316 = vmatprep.subr.mxu0 0.0
    %2317 = vmatpush1.msra.mxu0 %v2300
    %2318 = vmatprep.subr.mxu0 0.0
    %2319 = vmatpush1.msra.mxu0 %v2301
    %2320 = vmatprep.subr.mxu0 0.0
    %2321 = vmatpush1.msra.mxu0 %v2302
    %2322 = vmatprep.subr.mxu0 0.0
    %2323 = vmatpush1.msra.mxu0 %v2303
    %2324 = vmatprep.subr.mxu0 0.0
    %2325 = vmatpush1.msra.mxu0 0.0
    %2326 = vmatprep.subr.mxu0 0.0
    %2327 = vmatpush1.msra.mxu0 0.0
    %2328 = vmatprep.subr.mxu0 0.0
    %2329 = vmatpush1.msra.mxu0 0.0
    %2330 = vmatprep.subr.mxu0 0.0
    %2331 = vmatpush1.msra.mxu0 0.0
    %2332 = vmatprep.subr.mxu0 0.0
    %2333 = vmatpush1.msra.mxu0 0.0
    %2334 = vmatprep.subr.mxu0 0.0
    %2335 = vmatpush1.msra.mxu0 0.0
    %2336 = vmatprep.subr.mxu0 0.0
    %2337 = vmatpush1.msra.mxu0 0.0
    %2338 = vmatprep.subr.mxu0 0.0
    %2339 = vmatpush1.msra.mxu0 0.0
    %2340 = vmatprep.subr.mxu0 0.0
    %2341 = vmatpush1.msra.mxu0 0.0
    %2342 = vmatprep.subr.mxu0 0.0
    %2343 = vmatpush1.msra.mxu0 0.0
    %2344 = vmatprep.subr.mxu0 0.0
    %2345 = vmatpush1.msra.mxu0 0.0
    %2346 = vmatprep.subr.mxu0 0.0
    %2347 = vmatpush1.msra.mxu0 0.0
    %2348 = vmatprep.subr.mxu0 0.0
    %2349 = vmatpush1.msra.mxu0 0.0
    %2350 = vmatprep.subr.mxu0 0.0
    %2351 = vmatpush1.msra.mxu0 0.0
    %2352 = vmatprep.subr.mxu0 0.0
    %2353 = vmatpush1.msra.mxu0 0.0
    %2354 = vmatprep.subr.mxu0 0.0
    %2355 = vmatpush1.msra.mxu0 0.0
    %2356 = vmatprep.subr.mxu0 0.0
    %2357 = vmatpush1.msra.mxu0 0.0
    %2358 = vmatprep.subr.mxu0 0.0
    %2359 = vmatpush1.msra.mxu0 0.0
    %2360 = vmatprep.subr.mxu0 0.0
    %2361 = vmatpush1.msra.mxu0 0.0
    %2362 = vmatprep.subr.mxu0 0.0
    %2363 = vmatpush1.msra.mxu0 0.0
    %2364 = vmatprep.subr.mxu0 0.0
    %2365 = vmatpush1.msra.mxu0 0.0
    %2366 = vmatprep.subr.mxu0 0.0
    %2367 = vmatpush1.msra.mxu0 0.0
    %2368 = vmatprep.subr.mxu0 0.0
    %2369 = vmatpush1.msra.mxu0 0.0
    %2370 = vmatprep.subr.mxu0 0.0
    %2371 = vmatpush1.msra.mxu0 0.0
    %2372 = vmatprep.subr.mxu0 0.0
    %2373 = vmatpush1.msra.mxu0 0.0
    %2374 = vmatprep.subr.mxu0 0.0
    %2375 = vmatpush1.msra.mxu0 0.0
    %2376 = vmatprep.subr.mxu0 0.0
    %2377 = vmatpush1.msra.mxu0 0.0
    %2378 = vmatprep.subr.mxu0 0.0
    %2379 = vmatpush1.msra.mxu0 0.0
    %2380 = vmatprep.mubr.f32.mxu0 0.0
    %2381 = vmatmul.mubr.f32.gmra.mrb[0].mxu0 %v2314
    %v2382 = vpop.f32.mrb[0].mxu0
    %v2383 = vadd.f32 %v2309, %v2382
    %v2384 = vpop.f32.mrb[0].mxu0
    %2385 = vdwg.mxu0
    %v2386 = vld [vmem:[#allocation9] sm:$0xff]
    %v2387 = vld [vmem:[#allocation9 + $0x8] sm:$0xff]
    %v2388 = vld [vmem:[#allocation9 + $0x10] sm:$0xff]
    %v2389 = vld [vmem:[#allocation9 + $0x18] sm:$0xff]
    %v2390 = vld [vmem:[%s8] sm:$0x1]
    %v2392 = vlaneseq
    %v2393 = vshrl.u32 %v2392, 7
    %v2394 = vsub.s32 0, %v2393
    %v2395 = vrot.slane %v2390, %v2394
    %v2398 = vsel %vm195, %v2383, 0
    %2400 = vmatprep.subr.mxu0 0.0
    %2401 = vmatpush1.msra.mxu0 %v2386
    %2402 = vmatprep.subr.mxu0 0.0
    %2403 = vmatpush1.msra.mxu0 %v2387
    %2404 = vmatprep.subr.mxu0 0.0
    %2405 = vmatpush1.msra.mxu0 %v2388
    %2406 = vmatprep.subr.mxu0 0.0
    %2407 = vmatpush1.msra.mxu0 %v2389
    %2408 = vmatprep.subr.mxu0 0.0
    %2409 = vmatpush1.msra.mxu0 0.0
    %2410 = vmatprep.subr.mxu0 0.0
    %2411 = vmatpush1.msra.mxu0 0.0
    %2412 = vmatprep.subr.mxu0 0.0
    %2413 = vmatpush1.msra.mxu0 0.0
    %2414 = vmatprep.subr.mxu0 0.0
    %2415 = vmatpush1.msra.mxu0 0.0
    %2416 = vmatprep.subr.mxu0 0.0
    %2417 = vmatpush1.msra.mxu0 0.0
    %2418 = vmatprep.subr.mxu0 0.0
    %2419 = vmatpush1.msra.mxu0 0.0
    %2420 = vmatprep.subr.mxu0 0.0
    %2421 = vmatpush1.msra.mxu0 0.0
    %2422 = vmatprep.subr.mxu0 0.0
    %2423 = vmatpush1.msra.mxu0 0.0
    %2424 = vmatprep.subr.mxu0 0.0
    %2425 = vmatpush1.msra.mxu0 0.0
    %2426 = vmatprep.subr.mxu0 0.0
    %2427 = vmatpush1.msra.mxu0 0.0
    %2428 = vmatprep.subr.mxu0 0.0
    %2429 = vmatpush1.msra.mxu0 0.0
    %2430 = vmatprep.subr.mxu0 0.0
    %2431 = vmatpush1.msra.mxu0 0.0
    %2432 = vmatprep.subr.mxu0 0.0
    %2433 = vmatpush1.msra.mxu0 0.0
    %2434 = vmatprep.subr.mxu0 0.0
    %2435 = vmatpush1.msra.mxu0 0.0
    %2436 = vmatprep.subr.mxu0 0.0
    %2437 = vmatpush1.msra.mxu0 0.0
    %2438 = vmatprep.subr.mxu0 0.0
    %2439 = vmatpush1.msra.mxu0 0.0
    %2440 = vmatprep.subr.mxu0 0.0
    %2441 = vmatpush1.msra.mxu0 0.0
    %2442 = vmatprep.subr.mxu0 0.0
    %2443 = vmatpush1.msra.mxu0 0.0
    %2444 = vmatprep.subr.mxu0 0.0
    %2445 = vmatpush1.msra.mxu0 0.0
    %2446 = vmatprep.subr.mxu0 0.0
    %2447 = vmatpush1.msra.mxu0 0.0
    %2448 = vmatprep.subr.mxu0 0.0
    %2449 = vmatpush1.msra.mxu0 0.0
    %2450 = vmatprep.subr.mxu0 0.0
    %2451 = vmatpush1.msra.mxu0 0.0
    %2452 = vmatprep.subr.mxu0 0.0
    %2453 = vmatpush1.msra.mxu0 0.0
    %2454 = vmatprep.subr.mxu0 0.0
    %2455 = vmatpush1.msra.mxu0 0.0
    %2456 = vmatprep.subr.mxu0 0.0
    %2457 = vmatpush1.msra.mxu0 0.0
    %2458 = vmatprep.subr.mxu0 0.0
    %2459 = vmatpush1.msra.mxu0 0.0
    %2460 = vmatprep.subr.mxu0 0.0
    %2461 = vmatpush1.msra.mxu0 0.0
    %2462 = vmatprep.subr.mxu0 0.0
    %2463 = vmatpush1.msra.mxu0 0.0
    %2464 = vmatprep.mubr.f32.mxu0 0.0
    %2465 = vmatmul.mubr.f32.gmra.mrb[0].mxu0 %v2398
    %v2466 = vpop.f32.mrb[0].mxu0
    %v2467 = vadd.f32 %v2395, %v2466
    %v2468 = vpop.f32.mrb[0].mxu0
    %2469 = vdwg.mxu0
    %v2470 = vld [vmem:[%s9] sm:$0xff]
    %v2471 = vld [vmem:[%s9 + $0x8] sm:$0xff]
    %v2472 = vld [vmem:[%s9 + $0x10] sm:$0xff]
    %v2473 = vld [vmem:[%s9 + $0x18] sm:$0xff]
    %v2474 = vld [vmem:[#allocation3] sm:$0x1]
    %v2476 = vlaneseq
    %v2477 = vshrl.u32 %v2476, 7
    %v2478 = vsub.s32 0, %v2477
    %v2479 = vrot.slane %v2474, %v2478
    %v2482 = vsel %vm195, %v2467, 0
    %2484 = vmatprep.subr.mxu0 0.0
    %2485 = vmatpush1.msra.mxu0 %v2470
    %2486 = vmatprep.subr.mxu0 0.0
    %2487 = vmatpush1.msra.mxu0 %v2471
    %2488 = vmatprep.subr.mxu0 0.0
    %2489 = vmatpush1.msra.mxu0 %v2472
    %2490 = vmatprep.subr.mxu0 0.0
    %2491 = vmatpush1.msra.mxu0 %v2473
    %2492 = vmatprep.subr.mxu0 0.0
    %2493 = vmatpush1.msra.mxu0 0.0
    %2494 = vmatprep.subr.mxu0 0.0
    %2495 = vmatpush1.msra.mxu0 0.0
    %2496 = vmatprep.subr.mxu0 0.0
    %2497 = vmatpush1.msra.mxu0 0.0
    %2498 = vmatprep.subr.mxu0 0.0
    %2499 = vmatpush1.msra.mxu0 0.0
    %2500 = vmatprep.subr.mxu0 0.0
    %2501 = vmatpush1.msra.mxu0 0.0
    %2502 = vmatprep.subr.mxu0 0.0
    %2503 = vmatpush1.msra.mxu0 0.0
    %2504 = vmatprep.subr.mxu0 0.0
    %2505 = vmatpush1.msra.mxu0 0.0
    %2506 = vmatprep.subr.mxu0 0.0
    %2507 = vmatpush1.msra.mxu0 0.0
    %2508 = vmatprep.subr.mxu0 0.0
    %2509 = vmatpush1.msra.mxu0 0.0
    %2510 = vmatprep.subr.mxu0 0.0
    %2511 = vmatpush1.msra.mxu0 0.0
    %2512 = vmatprep.subr.mxu0 0.0
    %2513 = vmatpush1.msra.mxu0 0.0
    %2514 = vmatprep.subr.mxu0 0.0
    %2515 = vmatpush1.msra.mxu0 0.0
    %2516 = vmatprep.subr.mxu0 0.0
    %2517 = vmatpush1.msra.mxu0 0.0
    %2518 = vmatprep.subr.mxu0 0.0
    %2519 = vmatpush1.msra.mxu0 0.0
    %2520 = vmatprep.subr.mxu0 0.0
    %2521 = vmatpush1.msra.mxu0 0.0
    %2522 = vmatprep.subr.mxu0 0.0
    %2523 = vmatpush1.msra.mxu0 0.0
    %2524 = vmatprep.subr.mxu0 0.0
    %2525 = vmatpush1.msra.mxu0 0.0
    %2526 = vmatprep.subr.mxu0 0.0
    %2527 = vmatpush1.msra.mxu0 0.0
    %2528 = vmatprep.subr.mxu0 0.0
    %2529 = vmatpush1.msra.mxu0 0.0
    %2530 = vmatprep.subr.mxu0 0.0
    %2531 = vmatpush1.msra.mxu0 0.0
    %2532 = vmatprep.subr.mxu0 0.0
    %2533 = vmatpush1.msra.mxu0 0.0
    %2534 = vmatprep.subr.mxu0 0.0
    %2535 = vmatpush1.msra.mxu0 0.0
    %2536 = vmatprep.subr.mxu0 0.0
    %2537 = vmatpush1.msra.mxu0 0.0
    %2538 = vmatprep.subr.mxu0 0.0
    %2539 = vmatpush1.msra.mxu0 0.0
    %2540 = vmatprep.subr.mxu0 0.0
    %2541 = vmatpush1.msra.mxu0 0.0
    %2542 = vmatprep.subr.mxu0 0.0
    %2543 = vmatpush1.msra.mxu0 0.0
    %2544 = vmatprep.subr.mxu0 0.0
    %2545 = vmatpush1.msra.mxu0 0.0
    %2546 = vmatprep.subr.mxu0 0.0
    %2547 = vmatpush1.msra.mxu0 0.0
    %2548 = vmatprep.mubr.f32.mxu0 0.0
    %2549 = vmatmul.mubr.f32.gmra.mrb[0].mxu0 %v2482
    %v2550 = vpop.f32.mrb[0].mxu0
    %v2551 = vadd.f32 %v2479, %v2550
    %v2552 = vpop.f32.mrb[0].mxu0
    %2553 = vdwg.mxu0
    %v2554 = vxor.u32 %v2551, 2147483648
    %v2555 = vmul.f32 %v2554, 1.442695
    %v2556 = vpow.pop %v2555
    %v2557 = vadd.f32 %v2556, 1.0
    %v2558 = vrcp.pop %v2557
    %v2559 = vmul.f32 1.0, %v2558
    %vm2560 = vcmask 1024
    %2561 = vst.msk [vmem:[%s11] sm:$0x3] %vm2560, %v2559
    // Predicated region
    $region62: #{tpu_custom_call.1} parent=1 // pred_check
      _
    $region63: #{tpu_custom_call.1} parent=1 // pred_check_branch
      %2563 = sbr.rel (0) target = $region65
    $region64: #{tpu_custom_call.1} parent=1 // pred_region
      _
    $region65: #{tpu_custom_call.1} parent=1 // pred_fallthru
      _
    // Predicated region
    $region66: #{tpu_custom_call.1} parent=1 // pred_check
      _
    $region67: #{tpu_custom_call.1} parent=1 // pred_check_branch
      %2565 = sbr.rel (0) target = $region69
    $region68: #{tpu_custom_call.1} parent=1 // pred_region
      _
    $region69: #{tpu_custom_call.1} parent=1 // pred_fallthru
      _
    %2566 = vsyncpa [#allocation5], 1
    %2567 = vsyncpa [#allocation7], 1
    %2568 = vsyncpa [#allocation10], 1

</llo_original>
